<compile_context>
chip_gen: v5e
topology: v5e:2x2
jax: 0.10.0
libtpu: 0.0.40
codegen_flags: <defaults>
</compile_context>

<pallas_src>
import jax
import jax.numpy as jnp
from jax import lax
from jax.experimental import pallas as pl
from jax.experimental.pallas import tpu as pltpu

# ----- synthetic stand-ins for the module's (undefined) global config -----
B = 2
V_SEQ = 8          # vision encoder sequence length (plays role of 197 for ViT)
VIS_HID = 32       # vision encoder hidden_size
LM_MAX_LEN = 16    # target sequence length
VISION_DIM = 32
MODEL_DIM = 32     # `model_dim` ctor arg
LM_DIM = 32
OTK_EPS = 0.1      # OTKernel default eps
OTK_MAX_ITER = 30  # Sinkhorn iterations
LN_EPS = 1e-5      # nn.LayerNorm default eps
SLAB_LANES = 32    # common lane width of the packed parameter slab
# TODO(synk): nn.Dropout is inference-mode identity here (DROPOUT_RATE global undefined).


# --------------------------- parameter slab packing ---------------------------
def _pad_piece(x):
    """Zero-pad a 2-D piece to a multiple of 8 rows and SLAB_LANES columns."""
    r, c = x.shape
    assert c <= SLAB_LANES
    rr = ((r + 7) // 8) * 8
    out = jnp.zeros((rr, SLAB_LANES), jnp.float32)
    return out.at[:r, :c].set(x.astype(jnp.float32))


def _build_slab(params, nb):
    """Pack all weights/biases (pre-transposed, batch-specialized) into ONE f32 slab."""
    (wlen, blen, wvt, bvt, wlm, blm, wot, bot, zref, gamma, beta) = params

    # Block-diagonal len-transform weight: one MXU push covers all nb batch elements
    # of the row-stacked image features, and the result is already row-stacked.
    wlen_bd = jnp.kron(jnp.eye(nb, dtype=jnp.float32), wlen)          # (nb*M, nb*V_SEQ)
    # len-transform bias, tiled over batch and broadcast across lanes (add-ready).
    blen_b = jnp.broadcast_to(jnp.tile(blen.reshape(-1, 1), (nb, 1)),
                              (nb * LM_MAX_LEN, VIS_HID))              # (nb*M, VIS_HID)
    # Additive block-diagonal attention mask: exact per-batch softmax on row-stacked x.
    blk = jnp.kron(jnp.eye(nb, dtype=jnp.float32),
                   jnp.ones((LM_MAX_LEN, LM_MAX_LEN), jnp.float32))
    attn_mask = (1.0 - blk) * jnp.float32(-1e30)                       # (nb*M, nb*M)

    vecs = jnp.concatenate([bvt.reshape(1, -1), blm.reshape(1, -1), bot.reshape(1, -1),
                            gamma.reshape(1, -1), beta.reshape(1, -1)], axis=0)  # (5, 32)

    pieces = [
        wlen_bd,                 # 0
        blen_b,                  # 1
        attn_mask,               # 2
        wvt.T,                   # 3  (VIS_HID, VISION_DIM)
        wlm.T,                   # 4  (MODEL_DIM, LM_DIM)
        wot[:, :LM_DIM].T,       # 5  (LM_DIM, LM_DIM)
        wot[:, LM_DIM:].T,       # 6  (VISION_DIM, LM_DIM)
        zref,                    # 7  (M, LM_DIM)
        vecs,                    # 8  rows: bvt, blm, bot, gamma, beta
    ]
    padded, offs, row = [], [], 0
    for p in pieces:
        pp = _pad_piece(p)
        padded.append(pp)
        offs.append(row)
        row += pp.shape[0]
    slab = jnp.concatenate(padded, axis=0)                             # (rows, 32)
    return slab, tuple(offs)


# --------------------------------- kernel -------------------------------------
def _build_kernel(nb, offs, apply_nan_to_num):
    (O_WLEN, O_BLEN, O_MASK, O_WVT, O_WLM, O_WOTL, O_WOTV, O_ZREF, O_VEC) = offs
    RS = nb * LM_MAX_LEN          # row-stacked sequence rows handled per grid step
    CI = nb * V_SEQ               # block-diagonal len-transform contraction dim
    M = LM_MAX_LEN
    S = LM_MAX_LEN

    def kernel(img_ref, lm_ref, slab_ref, out_ref):
        f32 = jnp.float32
        contract_last = (((1,), (1,)), ((), ()))   # A @ B^T without materializing B^T

        # ---- single-DMA parameter slab; static slices are cheap local loads ----
        wlen_bd = slab_ref[O_WLEN:O_WLEN + RS, :CI]          # (RS, nb*V_SEQ)
        blen_b  = slab_ref[O_BLEN:O_BLEN + RS, :VIS_HID]     # (RS, VIS_HID)
        mask    = slab_ref[O_MASK:O_MASK + RS, :RS]          # (RS, RS) additive mask
        wvt     = slab_ref[O_WVT:O_WVT + VIS_HID, :VISION_DIM]
        wlm     = slab_ref[O_WLM:O_WLM + MODEL_DIM, :LM_DIM]
        wotl    = slab_ref[O_WOTL:O_WOTL + LM_DIM, :LM_DIM]
        wotv    = slab_ref[O_WOTV:O_WOTV + VISION_DIM, :LM_DIM]
        zref    = slab_ref[O_ZREF:O_ZREF + M, :LM_DIM]
        bvt     = slab_ref[O_VEC + 0:O_VEC + 1, :VISION_DIM]
        blm     = slab_ref[O_VEC + 1:O_VEC + 2, :LM_DIM]
        bot     = slab_ref[O_VEC + 2:O_VEC + 3, :LM_DIM]
        gamma   = slab_ref[O_VEC + 3:O_VEC + 4, :LM_DIM]
        beta    = slab_ref[O_VEC + 4:O_VEC + 5, :LM_DIM]

        img = img_ref[...]        # (nb*V_SEQ, VIS_HID) row-stacked
        lm = lm_ref[...]          # (RS, MODEL_DIM)     row-stacked

        # vision_len_transform (Linear over the sequence axis) + ReLU, all batches
        # in one MXU push via the block-diagonal weight; result already row-stacked.
        y = jnp.maximum(jnp.dot(wlen_bd, img, preferred_element_type=f32) + blen_b, 0.0)

        def sdpa(x, dim):
            """Self-attention on row-stacked x; block-diag mask => exact per-batch softmax.
            NOTE: approx reciprocal (EUP) deviates ~1e-4 rel. from exact division."""
            s = lax.dot_general(x, x, contract_last, preferred_element_type=f32)
            s = s * jnp.float32(1.0 / (dim ** 0.5)) + mask
            s = s - jnp.max(s, axis=-1, keepdims=True)
            p = jnp.exp(s)
            inv = pl.reciprocal(jnp.sum(p, axis=-1, keepdims=True), approx=True)
            return jnp.dot(p * inv, x, preferred_element_type=f32)

        # vision branch: vision_transform + ReLU -> self-attention
        v = jnp.maximum(jnp.dot(y, wvt, preferred_element_type=f32) + bvt, 0.0)
        v = sdpa(v, VISION_DIM)                               # (RS, VISION_DIM)

        # lm branch: dropout(identity) -> lm_transform + ReLU -> self-attention
        l = jnp.maximum(jnp.dot(lm, wlm, preferred_element_type=f32) + blm, 0.0)
        l = sdpa(l, LM_DIM)                                   # (RS, LM_DIM)

        # otk_layer[0:2]: Linear(LM_DIM+VISION_DIM -> LM_DIM) + ReLU; concat folded
        # into two half-dots on the pre-split weight.
        x = jnp.maximum(jnp.dot(l, wotl, preferred_element_type=f32)
                        + jnp.dot(v, wotv, preferred_element_type=f32) + bot, 0.0)

        # OTK logits per batch (M, S) = zref . x_b^T, row-max stabilized before exp
        # (row scaling is exactly absorbed by the Sinkhorn u vector).
        inv_eps = jnp.float32(1.0 / OTK_EPS)
        ks = []
        for b in range(nb):                                   # static tiny loop
            xb = x[b * S:(b + 1) * S, :]
            c = lax.dot_general(zref, xb, contract_last, preferred_element_type=f32)
            c = (c - jnp.max(c, axis=-1, keepdims=True)) * inv_eps
            ks.append(jnp.exp(c))
        K = jnp.stack(ks, axis=0)                             # (nb, M, S)

        # otk_layer[2]: OTKernel Sinkhorn scaling — VPU mults + XLU reductions,
        # batched over nb, fully unrolled. Approx reciprocals (EUP slot) on the
        # serial chain; final iteration exact to bound the error.
        a = jnp.float32(S) / jnp.float32(M)
        u0 = jnp.ones((nb, M, 1), f32)
        v0 = jnp.ones((nb, 1, S), f32)

        def body(_, uv):
            u, vv = uv
            u = a * pl.reciprocal(jnp.sum(K * vv, axis=2, keepdims=True), approx=True)
            vv = pl.reciprocal(jnp.sum(K * u, axis=1, keepdims=True), approx=True)
            return (u, vv)

        u, vv = lax.fori_loop(0, OTK_MAX_ITER - 1, body, (u0, v0), unroll=True)
        u = a / jnp.sum(K * vv, axis=2, keepdims=True)        # exact final iteration
        vv = 1.0 / jnp.sum(K * u, axis=1, keepdims=True)

        T = u * K * vv                                        # (nb, M, S)

        # Apply transport plan per batch; re-stack rows for the shared epilogue.
        o_parts = [jnp.dot(T[b], x[b * S:(b + 1) * S, :], preferred_element_type=f32)
                   for b in range(nb)]
        o = o_parts[0] if nb == 1 else jnp.concatenate(o_parts, axis=0)   # (RS, LM_DIM)

        if apply_nan_to_num:
            # o is finite by construction; kept (flag) for parity with torch.nan_to_num.
            big = jnp.finfo(f32).max
            o = jnp.where(jnp.isnan(o), jnp.float32(0.0), o)
            o = jnp.clip(o, -big, big)

        # LayerNorm(LM_DIM)
        mu = jnp.mean(o, axis=-1, keepdims=True)
        var = jnp.mean(jnp.square(o - mu), axis=-1, keepdims=True)
        o = (o - mu) * lax.rsqrt(var + jnp.float32(LN_EPS))
        out_ref[...] = (o * gamma + beta).astype(out_ref.dtype)

    return kernel


# -------------------------------- wrapper --------------------------------------
def otk_vision_forward(image_features, lm_input, params, batch_per_step=None,
                       apply_nan_to_num=True):
    bsz = image_features.shape[0]
    if batch_per_step is None:
        # Fold the whole batch into one grid step on ALL generations: the Sinkhorn
        # chain is latency-bound and batches for free, so megacore splitting (v7x)
        # only adds a second grid step + duplicate weight DMAs.
        batch_per_step = bsz
    nb = int(batch_per_step)
    assert bsz % nb == 0

    slab, offs = _build_slab(params, nb)
    kernel = _build_kernel(nb, offs, apply_nan_to_num)

    # Row-stacked inputs / output keep the kernel fully 2-D.
    img_rs = image_features.reshape(bsz * V_SEQ, VIS_HID)
    lm_rs = lm_input.reshape(bsz * LM_MAX_LEN, MODEL_DIM)
    rs = nb * LM_MAX_LEN
    slab_rows = slab.shape[0]

    # Advisory cost estimate (helps XLA schedule around the custom call).
    macs_per_b = (LM_MAX_LEN * V_SEQ * VIS_HID
                  + LM_MAX_LEN * VIS_HID * VISION_DIM
                  + LM_MAX_LEN * MODEL_DIM * LM_DIM
                  + 2 * LM_MAX_LEN * LM_MAX_LEN * VISION_DIM
                  + 2 * LM_MAX_LEN * LM_MAX_LEN * LM_DIM
                  + LM_MAX_LEN * (LM_DIM + VISION_DIM) * LM_DIM
                  + LM_MAX_LEN * LM_DIM * LM_MAX_LEN
                  + LM_MAX_LEN * LM_MAX_LEN * LM_DIM)
    flops = 2 * bsz * macs_per_b + bsz * OTK_MAX_ITER * 4 * LM_MAX_LEN * LM_MAX_LEN
    transcend = bsz * (3 * LM_MAX_LEN * LM_MAX_LEN
                       + 2 * OTK_MAX_ITER * LM_MAX_LEN + 3 * LM_MAX_LEN)
    bytes_acc = 4 * (img_rs.size + lm_rs.size + slab.size + bsz * LM_MAX_LEN * LM_DIM)

    out = pl.pallas_call(
        kernel,
        out_shape=jax.ShapeDtypeStruct((bsz * LM_MAX_LEN, LM_DIM), jnp.float32),
        grid_spec=pltpu.PrefetchScalarGridSpec(
            num_scalar_prefetch=0,
            grid=(bsz // nb,),
            in_specs=[
                pl.BlockSpec((nb * V_SEQ, VIS_HID), lambda g: (g, 0)),
                pl.BlockSpec((rs, MODEL_DIM), lambda g: (g, 0)),
                pl.BlockSpec((slab_rows, SLAB_LANES), lambda g: (0, 0)),
            ],
            out_specs=pl.BlockSpec((rs, LM_DIM), lambda g: (g, 0)),
        ),
        compiler_params=pltpu.CompilerParams(dimension_semantics=("parallel",)),
        cost_estimate=pl.CostEstimate(flops=int(flops), transcendentals=int(transcend),
                                      bytes_accessed=int(bytes_acc)),
    )(img_rs, lm_rs, slab)
    return out.reshape(bsz, LM_MAX_LEN, LM_DIM)


# ----------------------- pure-JAX reference (for sanity) -----------------------
def reference_forward(image_features, lm_input, params):
    (wlen, blen, wvt, bvt, wlm, blm, wot, bot, zref, gamma, beta) = params

    def sdpa(x, dim):
        s = jnp.einsum("bsd,btd->bst", x, x) / jnp.sqrt(jnp.float32(dim))
        s = s - jnp.max(s, axis=-1, keepdims=True)
        p = jnp.exp(s)
        p = p / jnp.sum(p, axis=-1, keepdims=True)
        return jnp.einsum("bst,btd->bsd", p, x)

    y = jnp.einsum("ts,bsh->bth", wlen, image_features) + blen.reshape(1, -1, 1)
    y = jax.nn.relu(y)
    v = jax.nn.relu(jnp.einsum("bth,dh->btd", y, wvt) + bvt.reshape(1, 1, -1))
    v = sdpa(v, VISION_DIM)
    l = jax.nn.relu(jnp.einsum("bsm,dm->bsd", lm_input, wlm) + blm.reshape(1, 1, -1))
    l = sdpa(l, LM_DIM)
    x = jnp.concatenate([l, v], axis=-1)
    x = jax.nn.relu(jnp.einsum("bsc,dc->bsd", x, wot) + bot.reshape(1, 1, -1))
    K = jnp.exp(jnp.einsum("md,bsd->bms", zref, x) / OTK_EPS)
    a = jnp.float32(LM_MAX_LEN) / jnp.float32(LM_MAX_LEN)
    u = jnp.ones((B, LM_MAX_LEN))
    vv = jnp.ones((B, LM_MAX_LEN))
    for _ in range(OTK_MAX_ITER):
        u = a / jnp.einsum("bms,bs->bm", K, vv)
        vv = 1.0 / jnp.einsum("bm,bms->bs", u, K)
    T = u[:, :, None] * K * vv[:, None, :]
    o = jnp.einsum("bms,bsd->bmd", T, x)
    o = jnp.nan_to_num(o)
    mu = jnp.mean(o, axis=-1, keepdims=True)
    var = jnp.mean((o - mu) ** 2, axis=-1, keepdims=True)
    o = (o - mu) / jnp.sqrt(var + LN_EPS)
    return o * gamma.reshape(1, 1, -1) + beta.reshape(1, 1, -1)


if __name__ == "__main__":
    key = jax.random.PRNGKey(0)
    ks = jax.random.split(key, 16)

    def unif(k, shape, fan_in):
        bound = 1.0 / jnp.sqrt(jnp.float32(fan_in))
        return jax.random.uniform(k, shape, jnp.float32, -bound, bound)

    # parameters (PyTorch (out, in) convention)
    wlen = unif(ks[0], (LM_MAX_LEN, V_SEQ), V_SEQ)
    blen = unif(ks[1], (LM_MAX_LEN, 1), V_SEQ)
    wvt = unif(ks[2], (VISION_DIM, VIS_HID), VIS_HID)
    bvt = unif(ks[3], (1, VISION_DIM), VIS_HID)
    wlm = unif(ks[4], (LM_DIM, MODEL_DIM), MODEL_DIM)
    blm = unif(ks[5], (1, LM_DIM), MODEL_DIM)
    wot = unif(ks[6], (LM_DIM, LM_DIM + VISION_DIM), LM_DIM + VISION_DIM)
    bot = unif(ks[7], (1, LM_DIM), LM_DIM + VISION_DIM)
    zref = unif(ks[8], (LM_MAX_LEN, LM_DIM), LM_MAX_LEN)  # OTKernel.weight (heads=1 squeezed)
    gamma = jnp.ones((1, LM_DIM), jnp.float32)
    beta = jnp.zeros((1, LM_DIM), jnp.float32)
    params = (wlen, blen, wvt, bvt, wlm, blm, wot, bot, zref, gamma, beta)

    # inputs: vision encoder last_hidden_state + LM hidden states
    image_features = jax.random.normal(ks[9], (B, V_SEQ, VIS_HID), jnp.float32)
    lm_input = jax.random.normal(ks[10], (B, LM_MAX_LEN, MODEL_DIM), jnp.float32)

    # Default path (fold whole batch, grid=(1,)) plus the grid-split path for coverage.
    out_fold = otk_vision_forward(image_features, lm_input, params)
    out_grid = otk_vision_forward(image_features, lm_input, params, batch_per_step=1)
    out_fold, out_grid = jax.block_until_ready((out_fold, out_grid))

    ref = reference_forward(image_features, lm_input, params)

    for out in (out_fold, out_grid):
        assert out.shape == (B, LM_MAX_LEN, LM_DIM)
        assert bool(jnp.all(jnp.isfinite(out)))
        assert bool(jnp.allclose(out, ref, rtol=1e-2, atol=1e-2))
    print("KERNEL_OK")
</pallas_src>

<mosaic_0001>
module attributes {stable_mosaic.version = 11 : i64} {
  func.func @kernel(%arg0: i32, %arg1: memref<16x32xf32, #tpu.memory_space<vmem>>, %arg2: memref<32x32xf32, #tpu.memory_space<vmem>>, %arg3: memref<248x32xf32, #tpu.memory_space<vmem>>, %arg4: memref<32x32xf32, #tpu.memory_space<vmem>>) attributes {dimension_semantics = [#tpu.dimension_semantics<parallel>], iteration_bounds = array<i64: 1>, scalar_prefetch = 0 : i64, scratch_operands = 0 : i64, tpu.core_type = #tpu.core_type<tc>, window_params = [{transform_indices = @transform_0, window_bounds = array<i64: 16, 32>}, {transform_indices = @transform_1, window_bounds = array<i64: 32, 32>}, {pipeline_mode = #tpu.pipeline_mode<synchronous>, transform_indices = @transform_2, window_bounds = array<i64: 248, 32>}, {transform_indices = @transform_3, window_bounds = array<i64: 32, 32>}]} {
    %c0 = arith.constant 0 : index
    %c0_0 = arith.constant 0 : index
    %0 = vector.load %arg3[%c0, %c0_0] : memref<248x32xf32, #tpu.memory_space<vmem>>, vector<32x16xf32>
    %c32 = arith.constant 32 : index
    %c0_1 = arith.constant 0 : index
    %1 = vector.load %arg3[%c32, %c0_1] : memref<248x32xf32, #tpu.memory_space<vmem>>, vector<32x32xf32>
    %c64 = arith.constant 64 : index
    %c0_2 = arith.constant 0 : index
    %2 = vector.load %arg3[%c64, %c0_2] : memref<248x32xf32, #tpu.memory_space<vmem>>, vector<32x32xf32>
    %c96 = arith.constant 96 : index
    %c0_3 = arith.constant 0 : index
    %3 = vector.load %arg3[%c96, %c0_3] : memref<248x32xf32, #tpu.memory_space<vmem>>, vector<32x32xf32>
    %c128 = arith.constant 128 : index
    %c0_4 = arith.constant 0 : index
    %4 = vector.load %arg3[%c128, %c0_4] : memref<248x32xf32, #tpu.memory_space<vmem>>, vector<32x32xf32>
    %c160 = arith.constant 160 : index
    %c0_5 = arith.constant 0 : index
    %5 = vector.load %arg3[%c160, %c0_5] : memref<248x32xf32, #tpu.memory_space<vmem>>, vector<32x32xf32>
    %c192 = arith.constant 192 : index
    %c0_6 = arith.constant 0 : index
    %6 = vector.load %arg3[%c192, %c0_6] : memref<248x32xf32, #tpu.memory_space<vmem>>, vector<32x32xf32>
    %c224 = arith.constant 224 : index
    %c0_7 = arith.constant 0 : index
    %7 = vector.load %arg3[%c224, %c0_7] : memref<248x32xf32, #tpu.memory_space<vmem>>, vector<16x32xf32>
    %c240 = arith.constant 240 : index
    %c0_8 = arith.constant 0 : index
    %8 = vector.load %arg3[%c240, %c0_8] : memref<248x32xf32, #tpu.memory_space<vmem>>, vector<1x32xf32>
    %c241 = arith.constant 241 : index
    %c0_9 = arith.constant 0 : index
    %9 = vector.load %arg3[%c241, %c0_9] : memref<248x32xf32, #tpu.memory_space<vmem>>, vector<1x32xf32>
    %c242 = arith.constant 242 : index
    %c0_10 = arith.constant 0 : index
    %10 = vector.load %arg3[%c242, %c0_10] : memref<248x32xf32, #tpu.memory_space<vmem>>, vector<1x32xf32>
    %c243 = arith.constant 243 : index
    %c0_11 = arith.constant 0 : index
    %11 = vector.load %arg3[%c243, %c0_11] : memref<248x32xf32, #tpu.memory_space<vmem>>, vector<1x32xf32>
    %c244 = arith.constant 244 : index
    %c0_12 = arith.constant 0 : index
    %12 = vector.load %arg3[%c244, %c0_12] : memref<248x32xf32, #tpu.memory_space<vmem>>, vector<1x32xf32>
    %c0_13 = arith.constant 0 : index
    %c0_14 = arith.constant 0 : index
    %13 = vector.load %arg1[%c0_13, %c0_14] : memref<16x32xf32, #tpu.memory_space<vmem>>, vector<16x32xf32>
    %c0_15 = arith.constant 0 : index
    %c0_16 = arith.constant 0 : index
    %14 = vector.load %arg2[%c0_15, %c0_16] : memref<32x32xf32, #tpu.memory_space<vmem>>, vector<32x32xf32>
    %cst = arith.constant dense<0.000000e+00> : vector<32x32xf32>
    %15 = tpu.matmul %0, %13, %cst {dimension_numbers = #tpu.dot_dimension_numbers<[1], [0], [0], [1], [0, 0, 1, 1], [], []>} : vector<32x16xf32>, vector<16x32xf32>, vector<32x32xf32> -> vector<32x32xf32>
    %16 = arith.addf %15, %1 : vector<32x32xf32>
    %cst_17 = arith.constant 0.000000e+00 : f32
    %17 = vector.broadcast %cst_17 : f32 to vector<32x32xf32>
    %18 = arith.maximumf %16, %17 : vector<32x32xf32>
    %cst_18 = arith.constant dense<0.000000e+00> : vector<32x32xf32>
    %19 = tpu.matmul %18, %3, %cst_18 {dimension_numbers = #tpu.dot_dimension_numbers<[1], [0], [0], [1], [0, 0, 1, 1], [], []>} : vector<32x32xf32>, vector<32x32xf32>, vector<32x32xf32> -> vector<32x32xf32>
    %20 = vector.broadcast %8 : vector<1x32xf32> to vector<32x32xf32>
    %21 = arith.addf %19, %20 : vector<32x32xf32>
    %cst_19 = arith.constant 0.000000e+00 : f32
    %22 = vector.broadcast %cst_19 : f32 to vector<32x32xf32>
    %23 = arith.maximumf %21, %22 : vector<32x32xf32>
    %cst_20 = arith.constant dense<0.000000e+00> : vector<32x32xf32>
    %24 = tpu.matmul %23, %23, %cst_20 {dimension_numbers = #tpu.dot_dimension_numbers<[1], [1], [0], [0], [0, 0, 1, 0], [], []>} : vector<32x32xf32>, vector<32x32xf32>, vector<32x32xf32> -> vector<32x32xf32>
    %cst_21 = arith.constant 0.176776692 : f32
    %25 = vector.broadcast %cst_21 : f32 to vector<32x32xf32>
    %26 = arith.mulf %24, %25 : vector<32x32xf32>
    %27 = arith.addf %26, %2 : vector<32x32xf32>
    %cst_22 = arith.constant dense<0xFF800000> : vector<32xf32>
    %28 = vector.multi_reduction <maximumf>, %27, %cst_22 [1] : vector<32x32xf32> to vector<32xf32>
    %29 = vector.shape_cast %28 : vector<32xf32> to vector<32x1xf32>
    %30 = vector.broadcast %29 : vector<32x1xf32> to vector<32x32xf32>
    %31 = arith.subf %27, %30 : vector<32x32xf32>
    %32 = math.exp %31 : vector<32x32xf32>
    %cst_23 = arith.constant dense<0.000000e+00> : vector<32xf32>
    %33 = vector.multi_reduction <add>, %32, %cst_23 [1] : vector<32x32xf32> to vector<32xf32>
    %34 = vector.shape_cast %33 : vector<32xf32> to vector<32x1xf32>
    %35 = tpu.reciprocal %34 {approx = true} : vector<32x1xf32> -> vector<32x1xf32>
    %36 = vector.broadcast %35 : vector<32x1xf32> to vector<32x32xf32>
    %37 = arith.mulf %32, %36 : vector<32x32xf32>
    %cst_24 = arith.constant dense<0.000000e+00> : vector<32x32xf32>
    %38 = tpu.matmul %37, %23, %cst_24 {dimension_numbers = #tpu.dot_dimension_numbers<[1], [0], [0], [1], [0, 0, 1, 1], [], []>} : vector<32x32xf32>, vector<32x32xf32>, vector<32x32xf32> -> vector<32x32xf32>
    %cst_25 = arith.constant dense<0.000000e+00> : vector<32x32xf32>
    %39 = tpu.matmul %14, %4, %cst_25 {dimension_numbers = #tpu.dot_dimension_numbers<[1], [0], [0], [1], [0, 0, 1, 1], [], []>} : vector<32x32xf32>, vector<32x32xf32>, vector<32x32xf32> -> vector<32x32xf32>
    %40 = vector.broadcast %9 : vector<1x32xf32> to vector<32x32xf32>
    %41 = arith.addf %39, %40 : vector<32x32xf32>
    %cst_26 = arith.constant 0.000000e+00 : f32
    %42 = vector.broadcast %cst_26 : f32 to vector<32x32xf32>
    %43 = arith.maximumf %41, %42 : vector<32x32xf32>
    %cst_27 = arith.constant dense<0.000000e+00> : vector<32x32xf32>
    %44 = tpu.matmul %43, %43, %cst_27 {dimension_numbers = #tpu.dot_dimension_numbers<[1], [1], [0], [0], [0, 0, 1, 0], [], []>} : vector<32x32xf32>, vector<32x32xf32>, vector<32x32xf32> -> vector<32x32xf32>
    %cst_28 = arith.constant 0.176776692 : f32
    %45 = vector.broadcast %cst_28 : f32 to vector<32x32xf32>
    %46 = arith.mulf %44, %45 : vector<32x32xf32>
    %47 = arith.addf %46, %2 : vector<32x32xf32>
    %cst_29 = arith.constant dense<0xFF800000> : vector<32xf32>
    %48 = vector.multi_reduction <maximumf>, %47, %cst_29 [1] : vector<32x32xf32> to vector<32xf32>
    %49 = vector.shape_cast %48 : vector<32xf32> to vector<32x1xf32>
    %50 = vector.broadcast %49 : vector<32x1xf32> to vector<32x32xf32>
    %51 = arith.subf %47, %50 : vector<32x32xf32>
    %52 = math.exp %51 : vector<32x32xf32>
    %cst_30 = arith.constant dense<0.000000e+00> : vector<32xf32>
    %53 = vector.multi_reduction <add>, %52, %cst_30 [1] : vector<32x32xf32> to vector<32xf32>
    %54 = vector.shape_cast %53 : vector<32xf32> to vector<32x1xf32>
    %55 = tpu.reciprocal %54 {approx = true} : vector<32x1xf32> -> vector<32x1xf32>
    %56 = vector.broadcast %55 : vector<32x1xf32> to vector<32x32xf32>
    %57 = arith.mulf %52, %56 : vector<32x32xf32>
    %cst_31 = arith.constant dense<0.000000e+00> : vector<32x32xf32>
    %58 = tpu.matmul %57, %43, %cst_31 {dimension_numbers = #tpu.dot_dimension_numbers<[1], [0], [0], [1], [0, 0, 1, 1], [], []>} : vector<32x32xf32>, vector<32x32xf32>, vector<32x32xf32> -> vector<32x32xf32>
    %cst_32 = arith.constant dense<0.000000e+00> : vector<32x32xf32>
    %59 = tpu.matmul %58, %5, %cst_32 {dimension_numbers = #tpu.dot_dimension_numbers<[1], [0], [0], [1], [0, 0, 1, 1], [], []>} : vector<32x32xf32>, vector<32x32xf32>, vector<32x32xf32> -> vector<32x32xf32>
    %cst_33 = arith.constant dense<0.000000e+00> : vector<32x32xf32>
    %60 = tpu.matmul %38, %6, %cst_33 {dimension_numbers = #tpu.dot_dimension_numbers<[1], [0], [0], [1], [0, 0, 1, 1], [], []>} : vector<32x32xf32>, vector<32x32xf32>, vector<32x32xf32> -> vector<32x32xf32>
    %61 = arith.addf %59, %60 : vector<32x32xf32>
    %62 = vector.broadcast %10 : vector<1x32xf32> to vector<32x32xf32>
    %63 = arith.addf %61, %62 : vector<32x32xf32>
    %cst_34 = arith.constant 0.000000e+00 : f32
    %64 = vector.broadcast %cst_34 : f32 to vector<32x32xf32>
    %65 = arith.maximumf %63, %64 : vector<32x32xf32>
    %66 = vector.extract_strided_slice %65 {offsets = [0, 0], sizes = [16, 32], strides = [1, 1]} : vector<32x32xf32> to vector<16x32xf32>
    %cst_35 = arith.constant dense<0.000000e+00> : vector<16x16xf32>
    %67 = tpu.matmul %7, %66, %cst_35 {dimension_numbers = #tpu.dot_dimension_numbers<[1], [1], [0], [0], [0, 0, 1, 0], [], []>} : vector<16x32xf32>, vector<16x32xf32>, vector<16x16xf32> -> vector<16x16xf32>
    %cst_36 = arith.constant dense<0xFF800000> : vector<16xf32>
    %68 = vector.multi_reduction <maximumf>, %67, %cst_36 [1] : vector<16x16xf32> to vector<16xf32>
    %69 = vector.shape_cast %68 : vector<16xf32> to vector<16x1xf32>
    %70 = vector.broadcast %69 : vector<16x1xf32> to vector<16x16xf32>
    %71 = arith.subf %67, %70 : vector<16x16xf32>
    %cst_37 = arith.constant 1.000000e+01 : f32
    %72 = vector.broadcast %cst_37 : f32 to vector<16x16xf32>
    %73 = arith.mulf %71, %72 : vector<16x16xf32>
    %74 = math.exp %73 : vector<16x16xf32>
    %75 = vector.extract_strided_slice %65 {offsets = [16, 0], sizes = [16, 32], strides = [1, 1]} : vector<32x32xf32> to vector<16x32xf32>
    %cst_38 = arith.constant dense<0.000000e+00> : vector<16x16xf32>
    %76 = tpu.matmul %7, %75, %cst_38 {dimension_numbers = #tpu.dot_dimension_numbers<[1], [1], [0], [0], [0, 0, 1, 0], [], []>} : vector<16x32xf32>, vector<16x32xf32>, vector<16x16xf32> -> vector<16x16xf32>
    %cst_39 = arith.constant dense<0xFF800000> : vector<16xf32>
    %77 = vector.multi_reduction <maximumf>, %76, %cst_39 [1] : vector<16x16xf32> to vector<16xf32>
    %78 = vector.shape_cast %77 : vector<16xf32> to vector<16x1xf32>
    %79 = vector.broadcast %78 : vector<16x1xf32> to vector<16x16xf32>
    %80 = arith.subf %76, %79 : vector<16x16xf32>
    %cst_40 = arith.constant 1.000000e+01 : f32
    %81 = vector.broadcast %cst_40 : f32 to vector<16x16xf32>
    %82 = arith.mulf %80, %81 : vector<16x16xf32>
    %83 = math.exp %82 : vector<16x16xf32>
    %84 = vector.shape_cast %74 : vector<16x16xf32> to vector<1x16x16xf32>
    %85 = vector.shape_cast %83 : vector<16x16xf32> to vector<1x16x16xf32>
    %86 = tpu.concatenate %84, %85 in 0 : vector<1x16x16xf32>, vector<1x16x16xf32> -> vector<2x16x16xf32>
    %cst_41 = arith.constant 1.600000e+01 : f32
    %cst_42 = arith.constant 1.600000e+01 : f32
    %87 = arith.divf %cst_41, %cst_42 : f32
    %cst_43 = arith.constant 1.000000e+00 : f32
    %88 = vector.broadcast %cst_43 : f32 to vector<2x1x16xf32>
    %c0_i32 = arith.constant 0 : i32
    %89 = vector.broadcast %88 : vector<2x1x16xf32> to vector<2x16x16xf32>
    %90 = arith.mulf %86, %89 : vector<2x16x16xf32>
    %cst_44 = arith.constant dense<0.000000e+00> : vector<2x16xf32>
    %91 = vector.multi_reduction <add>, %90, %cst_44 [2] : vector<2x16x16xf32> to vector<2x16xf32>
    %92 = vector.shape_cast %91 : vector<2x16xf32> to vector<2x16x1xf32>
    %93 = tpu.reciprocal %92 {approx = true} : vector<2x16x1xf32> -> vector<2x16x1xf32>
    %94 = vector.broadcast %87 : f32 to vector<2x16x1xf32>
    %95 = arith.mulf %94, %93 : vector<2x16x1xf32>
    %96 = vector.broadcast %95 : vector<2x16x1xf32> to vector<2x16x16xf32>
    %97 = arith.mulf %86, %96 : vector<2x16x16xf32>
    %cst_45 = arith.constant dense<0.000000e+00> : vector<2x16xf32>
    %98 = vector.multi_reduction <add>, %97, %cst_45 [1] : vector<2x16x16xf32> to vector<2x16xf32>
    %99 = vector.shape_cast %98 : vector<2x16xf32> to vector<2x1x16xf32>
    %100 = tpu.reciprocal %99 {approx = true} : vector<2x1x16xf32> -> vector<2x1x16xf32>
    %c1_i32 = arith.constant 1 : i32
    %101 = vector.broadcast %100 : vector<2x1x16xf32> to vector<2x16x16xf32>
    %102 = arith.mulf %86, %101 : vector<2x16x16xf32>
    %cst_46 = arith.constant dense<0.000000e+00> : vector<2x16xf32>
    %103 = vector.multi_reduction <add>, %102, %cst_46 [2] : vector<2x16x16xf32> to vector<2x16xf32>
    %104 = vector.shape_cast %103 : vector<2x16xf32> to vector<2x16x1xf32>
    %105 = tpu.reciprocal %104 {approx = true} : vector<2x16x1xf32> -> vector<2x16x1xf32>
    %106 = vector.broadcast %87 : f32 to vector<2x16x1xf32>
    %107 = arith.mulf %106, %105 : vector<2x16x1xf32>
    %108 = vector.broadcast %107 : vector<2x16x1xf32> to vector<2x16x16xf32>
    %109 = arith.mulf %86, %108 : vector<2x16x16xf32>
    %cst_47 = arith.constant dense<0.000000e+00> : vector<2x16xf32>
    %110 = vector.multi_reduction <add>, %109, %cst_47 [1] : vector<2x16x16xf32> to vector<2x16xf32>
    %111 = vector.shape_cast %110 : vector<2x16xf32> to vector<2x1x16xf32>
    %112 = tpu.reciprocal %111 {approx = true} : vector<2x1x16xf32> -> vector<2x1x16xf32>
    %c2_i32 = arith.constant 2 : i32
    %113 = vector.broadcast %112 : vector<2x1x16xf32> to vector<2x16x16xf32>
    %114 = arith.mulf %86, %113 : vector<2x16x16xf32>
    %cst_48 = arith.constant dense<0.000000e+00> : vector<2x16xf32>
    %115 = vector.multi_reduction <add>, %114, %cst_48 [2] : vector<2x16x16xf32> to vector<2x16xf32>
    %116 = vector.shape_cast %115 : vector<2x16xf32> to vector<2x16x1xf32>
    %117 = tpu.reciprocal %116 {approx = true} : vector<2x16x1xf32> -> vector<2x16x1xf32>
    %118 = vector.broadcast %87 : f32 to vector<2x16x1xf32>
    %119 = arith.mulf %118, %117 : vector<2x16x1xf32>
    %120 = vector.broadcast %119 : vector<2x16x1xf32> to vector<2x16x16xf32>
    %121 = arith.mulf %86, %120 : vector<2x16x16xf32>
    %cst_49 = arith.constant dense<0.000000e+00> : vector<2x16xf32>
    %122 = vector.multi_reduction <add>, %121, %cst_49 [1] : vector<2x16x16xf32> to vector<2x16xf32>
    %123 = vector.shape_cast %122 : vector<2x16xf32> to vector<2x1x16xf32>
    %124 = tpu.reciprocal %123 {approx = true} : vector<2x1x16xf32> -> vector<2x1x16xf32>
    %c3_i32 = arith.constant 3 : i32
    %125 = vector.broadcast %124 : vector<2x1x16xf32> to vector<2x16x16xf32>
    %126 = arith.mulf %86, %125 : vector<2x16x16xf32>
    %cst_50 = arith.constant dense<0.000000e+00> : vector<2x16xf32>
    %127 = vector.multi_reduction <add>, %126, %cst_50 [2] : vector<2x16x16xf32> to vector<2x16xf32>
    %128 = vector.shape_cast %127 : vector<2x16xf32> to vector<2x16x1xf32>
    %129 = tpu.reciprocal %128 {approx = true} : vector<2x16x1xf32> -> vector<2x16x1xf32>
    %130 = vector.broadcast %87 : f32 to vector<2x16x1xf32>
    %131 = arith.mulf %130, %129 : vector<2x16x1xf32>
    %132 = vector.broadcast %131 : vector<2x16x1xf32> to vector<2x16x16xf32>
    %133 = arith.mulf %86, %132 : vector<2x16x16xf32>
    %cst_51 = arith.constant dense<0.000000e+00> : vector<2x16xf32>
    %134 = vector.multi_reduction <add>, %133, %cst_51 [1] : vector<2x16x16xf32> to vector<2x16xf32>
    %135 = vector.shape_cast %134 : vector<2x16xf32> to vector<2x1x16xf32>
    %136 = tpu.reciprocal %135 {approx = true} : vector<2x1x16xf32> -> vector<2x1x16xf32>
    %c4_i32 = arith.constant 4 : i32
    %137 = vector.broadcast %136 : vector<2x1x16xf32> to vector<2x16x16xf32>
    %138 = arith.mulf %86, %137 : vector<2x16x16xf32>
    %cst_52 = arith.constant dense<0.000000e+00> : vector<2x16xf32>
    %139 = vector.multi_reduction <add>, %138, %cst_52 [2] : vector<2x16x16xf32> to vector<2x16xf32>
    %140 = vector.shape_cast %139 : vector<2x16xf32> to vector<2x16x1xf32>
    %141 = tpu.reciprocal %140 {approx = true} : vector<2x16x1xf32> -> vector<2x16x1xf32>
    %142 = vector.broadcast %87 : f32 to vector<2x16x1xf32>
    %143 = arith.mulf %142, %141 : vector<2x16x1xf32>
    %144 = vector.broadcast %143 : vector<2x16x1xf32> to vector<2x16x16xf32>
    %145 = arith.mulf %86, %144 : vector<2x16x16xf32>
    %cst_53 = arith.constant dense<0.000000e+00> : vector<2x16xf32>
    %146 = vector.multi_reduction <add>, %145, %cst_53 [1] : vector<2x16x16xf32> to vector<2x16xf32>
    %147 = vector.shape_cast %146 : vector<2x16xf32> to vector<2x1x16xf32>
    %148 = tpu.reciprocal %147 {approx = true} : vector<2x1x16xf32> -> vector<2x1x16xf32>
    %c5_i32 = arith.constant 5 : i32
    %149 = vector.broadcast %148 : vector<2x1x16xf32> to vector<2x16x16xf32>
    %150 = arith.mulf %86, %149 : vector<2x16x16xf32>
    %cst_54 = arith.constant dense<0.000000e+00> : vector<2x16xf32>
    %151 = vector.multi_reduction <add>, %150, %cst_54 [2] : vector<2x16x16xf32> to vector<2x16xf32>
    %152 = vector.shape_cast %151 : vector<2x16xf32> to vector<2x16x1xf32>
    %153 = tpu.reciprocal %152 {approx = true} : vector<2x16x1xf32> -> vector<2x16x1xf32>
    %154 = vector.broadcast %87 : f32 to vector<2x16x1xf32>
    %155 = arith.mulf %154, %153 : vector<2x16x1xf32>
    %156 = vector.broadcast %155 : vector<2x16x1xf32> to vector<2x16x16xf32>
    %157 = arith.mulf %86, %156 : vector<2x16x16xf32>
    %cst_55 = arith.constant dense<0.000000e+00> : vector<2x16xf32>
    %158 = vector.multi_reduction <add>, %157, %cst_55 [1] : vector<2x16x16xf32> to vector<2x16xf32>
    %159 = vector.shape_cast %158 : vector<2x16xf32> to vector<2x1x16xf32>
    %160 = tpu.reciprocal %159 {approx = true} : vector<2x1x16xf32> -> vector<2x1x16xf32>
    %c6_i32 = arith.constant 6 : i32
    %161 = vector.broadcast %160 : vector<2x1x16xf32> to vector<2x16x16xf32>
    %162 = arith.mulf %86, %161 : vector<2x16x16xf32>
    %cst_56 = arith.constant dense<0.000000e+00> : vector<2x16xf32>
    %163 = vector.multi_reduction <add>, %162, %cst_56 [2] : vector<2x16x16xf32> to vector<2x16xf32>
    %164 = vector.shape_cast %163 : vector<2x16xf32> to vector<2x16x1xf32>
    %165 = tpu.reciprocal %164 {approx = true} : vector<2x16x1xf32> -> vector<2x16x1xf32>
    %166 = vector.broadcast %87 : f32 to vector<2x16x1xf32>
    %167 = arith.mulf %166, %165 : vector<2x16x1xf32>
    %168 = vector.broadcast %167 : vector<2x16x1xf32> to vector<2x16x16xf32>
    %169 = arith.mulf %86, %168 : vector<2x16x16xf32>
    %cst_57 = arith.constant dense<0.000000e+00> : vector<2x16xf32>
    %170 = vector.multi_reduction <add>, %169, %cst_57 [1] : vector<2x16x16xf32> to vector<2x16xf32>
    %171 = vector.shape_cast %170 : vector<2x16xf32> to vector<2x1x16xf32>
    %172 = tpu.reciprocal %171 {approx = true} : vector<2x1x16xf32> -> vector<2x1x16xf32>
    %c7_i32 = arith.constant 7 : i32
    %173 = vector.broadcast %172 : vector<2x1x16xf32> to vector<2x16x16xf32>
    %174 = arith.mulf %86, %173 : vector<2x16x16xf32>
    %cst_58 = arith.constant dense<0.000000e+00> : vector<2x16xf32>
    %175 = vector.multi_reduction <add>, %174, %cst_58 [2] : vector<2x16x16xf32> to vector<2x16xf32>
    %176 = vector.shape_cast %175 : vector<2x16xf32> to vector<2x16x1xf32>
    %177 = tpu.reciprocal %176 {approx = true} : vector<2x16x1xf32> -> vector<2x16x1xf32>
    %178 = vector.broadcast %87 : f32 to vector<2x16x1xf32>
    %179 = arith.mulf %178, %177 : vector<2x16x1xf32>
    %180 = vector.broadcast %179 : vector<2x16x1xf32> to vector<2x16x16xf32>
    %181 = arith.mulf %86, %180 : vector<2x16x16xf32>
    %cst_59 = arith.constant dense<0.000000e+00> : vector<2x16xf32>
    %182 = vector.multi_reduction <add>, %181, %cst_59 [1] : vector<2x16x16xf32> to vector<2x16xf32>
    %183 = vector.shape_cast %182 : vector<2x16xf32> to vector<2x1x16xf32>
    %184 = tpu.reciprocal %183 {approx = true} : vector<2x1x16xf32> -> vector<2x1x16xf32>
    %c8_i32 = arith.constant 8 : i32
    %185 = vector.broadcast %184 : vector<2x1x16xf32> to vector<2x16x16xf32>
    %186 = arith.mulf %86, %185 : vector<2x16x16xf32>
    %cst_60 = arith.constant dense<0.000000e+00> : vector<2x16xf32>
    %187 = vector.multi_reduction <add>, %186, %cst_60 [2] : vector<2x16x16xf32> to vector<2x16xf32>
    %188 = vector.shape_cast %187 : vector<2x16xf32> to vector<2x16x1xf32>
    %189 = tpu.reciprocal %188 {approx = true} : vector<2x16x1xf32> -> vector<2x16x1xf32>
    %190 = vector.broadcast %87 : f32 to vector<2x16x1xf32>
    %191 = arith.mulf %190, %189 : vector<2x16x1xf32>
    %192 = vector.broadcast %191 : vector<2x16x1xf32> to vector<2x16x16xf32>
    %193 = arith.mulf %86, %192 : vector<2x16x16xf32>
    %cst_61 = arith.constant dense<0.000000e+00> : vector<2x16xf32>
    %194 = vector.multi_reduction <add>, %193, %cst_61 [1] : vector<2x16x16xf32> to vector<2x16xf32>
    %195 = vector.shape_cast %194 : vector<2x16xf32> to vector<2x1x16xf32>
    %196 = tpu.reciprocal %195 {approx = true} : vector<2x1x16xf32> -> vector<2x1x16xf32>
    %c9_i32 = arith.constant 9 : i32
    %197 = vector.broadcast %196 : vector<2x1x16xf32> to vector<2x16x16xf32>
    %198 = arith.mulf %86, %197 : vector<2x16x16xf32>
    %cst_62 = arith.constant dense<0.000000e+00> : vector<2x16xf32>
    %199 = vector.multi_reduction <add>, %198, %cst_62 [2] : vector<2x16x16xf32> to vector<2x16xf32>
    %200 = vector.shape_cast %199 : vector<2x16xf32> to vector<2x16x1xf32>
    %201 = tpu.reciprocal %200 {approx = true} : vector<2x16x1xf32> -> vector<2x16x1xf32>
    %202 = vector.broadcast %87 : f32 to vector<2x16x1xf32>
    %203 = arith.mulf %202, %201 : vector<2x16x1xf32>
    %204 = vector.broadcast %203 : vector<2x16x1xf32> to vector<2x16x16xf32>
    %205 = arith.mulf %86, %204 : vector<2x16x16xf32>
    %cst_63 = arith.constant dense<0.000000e+00> : vector<2x16xf32>
    %206 = vector.multi_reduction <add>, %205, %cst_63 [1] : vector<2x16x16xf32> to vector<2x16xf32>
    %207 = vector.shape_cast %206 : vector<2x16xf32> to vector<2x1x16xf32>
    %208 = tpu.reciprocal %207 {approx = true} : vector<2x1x16xf32> -> vector<2x1x16xf32>
    %c10_i32 = arith.constant 10 : i32
    %209 = vector.broadcast %208 : vector<2x1x16xf32> to vector<2x16x16xf32>
    %210 = arith.mulf %86, %209 : vector<2x16x16xf32>
    %cst_64 = arith.constant dense<0.000000e+00> : vector<2x16xf32>
    %211 = vector.multi_reduction <add>, %210, %cst_64 [2] : vector<2x16x16xf32> to vector<2x16xf32>
    %212 = vector.shape_cast %211 : vector<2x16xf32> to vector<2x16x1xf32>
    %213 = tpu.reciprocal %212 {approx = true} : vector<2x16x1xf32> -> vector<2x16x1xf32>
    %214 = vector.broadcast %87 : f32 to vector<2x16x1xf32>
    %215 = arith.mulf %214, %213 : vector<2x16x1xf32>
    %216 = vector.broadcast %215 : vector<2x16x1xf32> to vector<2x16x16xf32>
    %217 = arith.mulf %86, %216 : vector<2x16x16xf32>
    %cst_65 = arith.constant dense<0.000000e+00> : vector<2x16xf32>
    %218 = vector.multi_reduction <add>, %217, %cst_65 [1] : vector<2x16x16xf32> to vector<2x16xf32>
    %219 = vector.shape_cast %218 : vector<2x16xf32> to vector<2x1x16xf32>
    %220 = tpu.reciprocal %219 {approx = true} : vector<2x1x16xf32> -> vector<2x1x16xf32>
    %c11_i32 = arith.constant 11 : i32
    %221 = vector.broadcast %220 : vector<2x1x16xf32> to vector<2x16x16xf32>
    %222 = arith.mulf %86, %221 : vector<2x16x16xf32>
    %cst_66 = arith.constant dense<0.000000e+00> : vector<2x16xf32>
    %223 = vector.multi_reduction <add>, %222, %cst_66 [2] : vector<2x16x16xf32> to vector<2x16xf32>
    %224 = vector.shape_cast %223 : vector<2x16xf32> to vector<2x16x1xf32>
    %225 = tpu.reciprocal %224 {approx = true} : vector<2x16x1xf32> -> vector<2x16x1xf32>
    %226 = vector.broadcast %87 : f32 to vector<2x16x1xf32>
    %227 = arith.mulf %226, %225 : vector<2x16x1xf32>
    %228 = vector.broadcast %227 : vector<2x16x1xf32> to vector<2x16x16xf32>
    %229 = arith.mulf %86, %228 : vector<2x16x16xf32>
    %cst_67 = arith.constant dense<0.000000e+00> : vector<2x16xf32>
    %230 = vector.multi_reduction <add>, %229, %cst_67 [1] : vector<2x16x16xf32> to vector<2x16xf32>
    %231 = vector.shape_cast %230 : vector<2x16xf32> to vector<2x1x16xf32>
    %232 = tpu.reciprocal %231 {approx = true} : vector<2x1x16xf32> -> vector<2x1x16xf32>
    %c12_i32 = arith.constant 12 : i32
    %233 = vector.broadcast %232 : vector<2x1x16xf32> to vector<2x16x16xf32>
    %234 = arith.mulf %86, %233 : vector<2x16x16xf32>
    %cst_68 = arith.constant dense<0.000000e+00> : vector<2x16xf32>
    %235 = vector.multi_reduction <add>, %234, %cst_68 [2] : vector<2x16x16xf32> to vector<2x16xf32>
    %236 = vector.shape_cast %235 : vector<2x16xf32> to vector<2x16x1xf32>
    %237 = tpu.reciprocal %236 {approx = true} : vector<2x16x1xf32> -> vector<2x16x1xf32>
    %238 = vector.broadcast %87 : f32 to vector<2x16x1xf32>
    %239 = arith.mulf %238, %237 : vector<2x16x1xf32>
    %240 = vector.broadcast %239 : vector<2x16x1xf32> to vector<2x16x16xf32>
    %241 = arith.mulf %86, %240 : vector<2x16x16xf32>
    %cst_69 = arith.constant dense<0.000000e+00> : vector<2x16xf32>
    %242 = vector.multi_reduction <add>, %241, %cst_69 [1] : vector<2x16x16xf32> to vector<2x16xf32>
    %243 = vector.shape_cast %242 : vector<2x16xf32> to vector<2x1x16xf32>
    %244 = tpu.reciprocal %243 {approx = true} : vector<2x1x16xf32> -> vector<2x1x16xf32>
    %c13_i32 = arith.constant 13 : i32
    %245 = vector.broadcast %244 : vector<2x1x16xf32> to vector<2x16x16xf32>
    %246 = arith.mulf %86, %245 : vector<2x16x16xf32>
    %cst_70 = arith.constant dense<0.000000e+00> : vector<2x16xf32>
    %247 = vector.multi_reduction <add>, %246, %cst_70 [2] : vector<2x16x16xf32> to vector<2x16xf32>
    %248 = vector.shape_cast %247 : vector<2x16xf32> to vector<2x16x1xf32>
    %249 = tpu.reciprocal %248 {approx = true} : vector<2x16x1xf32> -> vector<2x16x1xf32>
    %250 = vector.broadcast %87 : f32 to vector<2x16x1xf32>
    %251 = arith.mulf %250, %249 : vector<2x16x1xf32>
    %252 = vector.broadcast %251 : vector<2x16x1xf32> to vector<2x16x16xf32>
    %253 = arith.mulf %86, %252 : vector<2x16x16xf32>
    %cst_71 = arith.constant dense<0.000000e+00> : vector<2x16xf32>
    %254 = vector.multi_reduction <add>, %253, %cst_71 [1] : vector<2x16x16xf32> to vector<2x16xf32>
    %255 = vector.shape_cast %254 : vector<2x16xf32> to vector<2x1x16xf32>
    %256 = tpu.reciprocal %255 {approx = true} : vector<2x1x16xf32> -> vector<2x1x16xf32>
    %c14_i32 = arith.constant 14 : i32
    %257 = vector.broadcast %256 : vector<2x1x16xf32> to vector<2x16x16xf32>
    %258 = arith.mulf %86, %257 : vector<2x16x16xf32>
    %cst_72 = arith.constant dense<0.000000e+00> : vector<2x16xf32>
    %259 = vector.multi_reduction <add>, %258, %cst_72 [2] : vector<2x16x16xf32> to vector<2x16xf32>
    %260 = vector.shape_cast %259 : vector<2x16xf32> to vector<2x16x1xf32>
    %261 = tpu.reciprocal %260 {approx = true} : vector<2x16x1xf32> -> vector<2x16x1xf32>
    %262 = vector.broadcast %87 : f32 to vector<2x16x1xf32>
    %263 = arith.mulf %262, %261 : vector<2x16x1xf32>
    %264 = vector.broadcast %263 : vector<2x16x1xf32> to vector<2x16x16xf32>
    %265 = arith.mulf %86, %264 : vector<2x16x16xf32>
    %cst_73 = arith.constant dense<0.000000e+00> : vector<2x16xf32>
    %266 = vector.multi_reduction <add>, %265, %cst_73 [1] : vector<2x16x16xf32> to vector<2x16xf32>
    %267 = vector.shape_cast %266 : vector<2x16xf32> to vector<2x1x16xf32>
    %268 = tpu.reciprocal %267 {approx = true} : vector<2x1x16xf32> -> vector<2x1x16xf32>
    %c15_i32 = arith.constant 15 : i32
    %269 = vector.broadcast %268 : vector<2x1x16xf32> to vector<2x16x16xf32>
    %270 = arith.mulf %86, %269 : vector<2x16x16xf32>
    %cst_74 = arith.constant dense<0.000000e+00> : vector<2x16xf32>
    %271 = vector.multi_reduction <add>, %270, %cst_74 [2] : vector<2x16x16xf32> to vector<2x16xf32>
    %272 = vector.shape_cast %271 : vector<2x16xf32> to vector<2x16x1xf32>
    %273 = tpu.reciprocal %272 {approx = true} : vector<2x16x1xf32> -> vector<2x16x1xf32>
    %274 = vector.broadcast %87 : f32 to vector<2x16x1xf32>
    %275 = arith.mulf %274, %273 : vector<2x16x1xf32>
    %276 = vector.broadcast %275 : vector<2x16x1xf32> to vector<2x16x16xf32>
    %277 = arith.mulf %86, %276 : vector<2x16x16xf32>
    %cst_75 = arith.constant dense<0.000000e+00> : vector<2x16xf32>
    %278 = vector.multi_reduction <add>, %277, %cst_75 [1] : vector<2x16x16xf32> to vector<2x16xf32>
    %279 = vector.shape_cast %278 : vector<2x16xf32> to vector<2x1x16xf32>
    %280 = tpu.reciprocal %279 {approx = true} : vector<2x1x16xf32> -> vector<2x1x16xf32>
    %c16_i32 = arith.constant 16 : i32
    %281 = vector.broadcast %280 : vector<2x1x16xf32> to vector<2x16x16xf32>
    %282 = arith.mulf %86, %281 : vector<2x16x16xf32>
    %cst_76 = arith.constant dense<0.000000e+00> : vector<2x16xf32>
    %283 = vector.multi_reduction <add>, %282, %cst_76 [2] : vector<2x16x16xf32> to vector<2x16xf32>
    %284 = vector.shape_cast %283 : vector<2x16xf32> to vector<2x16x1xf32>
    %285 = tpu.reciprocal %284 {approx = true} : vector<2x16x1xf32> -> vector<2x16x1xf32>
    %286 = vector.broadcast %87 : f32 to vector<2x16x1xf32>
    %287 = arith.mulf %286, %285 : vector<2x16x1xf32>
    %288 = vector.broadcast %287 : vector<2x16x1xf32> to vector<2x16x16xf32>
    %289 = arith.mulf %86, %288 : vector<2x16x16xf32>
    %cst_77 = arith.constant dense<0.000000e+00> : vector<2x16xf32>
    %290 = vector.multi_reduction <add>, %289, %cst_77 [1] : vector<2x16x16xf32> to vector<2x16xf32>
    %291 = vector.shape_cast %290 : vector<2x16xf32> to vector<2x1x16xf32>
    %292 = tpu.reciprocal %291 {approx = true} : vector<2x1x16xf32> -> vector<2x1x16xf32>
    %c17_i32 = arith.constant 17 : i32
    %293 = vector.broadcast %292 : vector<2x1x16xf32> to vector<2x16x16xf32>
    %294 = arith.mulf %86, %293 : vector<2x16x16xf32>
    %cst_78 = arith.constant dense<0.000000e+00> : vector<2x16xf32>
    %295 = vector.multi_reduction <add>, %294, %cst_78 [2] : vector<2x16x16xf32> to vector<2x16xf32>
    %296 = vector.shape_cast %295 : vector<2x16xf32> to vector<2x16x1xf32>
    %297 = tpu.reciprocal %296 {approx = true} : vector<2x16x1xf32> -> vector<2x16x1xf32>
    %298 = vector.broadcast %87 : f32 to vector<2x16x1xf32>
    %299 = arith.mulf %298, %297 : vector<2x16x1xf32>
    %300 = vector.broadcast %299 : vector<2x16x1xf32> to vector<2x16x16xf32>
    %301 = arith.mulf %86, %300 : vector<2x16x16xf32>
    %cst_79 = arith.constant dense<0.000000e+00> : vector<2x16xf32>
    %302 = vector.multi_reduction <add>, %301, %cst_79 [1] : vector<2x16x16xf32> to vector<2x16xf32>
    %303 = vector.shape_cast %302 : vector<2x16xf32> to vector<2x1x16xf32>
    %304 = tpu.reciprocal %303 {approx = true} : vector<2x1x16xf32> -> vector<2x1x16xf32>
    %c18_i32 = arith.constant 18 : i32
    %305 = vector.broadcast %304 : vector<2x1x16xf32> to vector<2x16x16xf32>
    %306 = arith.mulf %86, %305 : vector<2x16x16xf32>
    %cst_80 = arith.constant dense<0.000000e+00> : vector<2x16xf32>
    %307 = vector.multi_reduction <add>, %306, %cst_80 [2] : vector<2x16x16xf32> to vector<2x16xf32>
    %308 = vector.shape_cast %307 : vector<2x16xf32> to vector<2x16x1xf32>
    %309 = tpu.reciprocal %308 {approx = true} : vector<2x16x1xf32> -> vector<2x16x1xf32>
    %310 = vector.broadcast %87 : f32 to vector<2x16x1xf32>
    %311 = arith.mulf %310, %309 : vector<2x16x1xf32>
    %312 = vector.broadcast %311 : vector<2x16x1xf32> to vector<2x16x16xf32>
    %313 = arith.mulf %86, %312 : vector<2x16x16xf32>
    %cst_81 = arith.constant dense<0.000000e+00> : vector<2x16xf32>
    %314 = vector.multi_reduction <add>, %313, %cst_81 [1] : vector<2x16x16xf32> to vector<2x16xf32>
    %315 = vector.shape_cast %314 : vector<2x16xf32> to vector<2x1x16xf32>
    %316 = tpu.reciprocal %315 {approx = true} : vector<2x1x16xf32> -> vector<2x1x16xf32>
    %c19_i32 = arith.constant 19 : i32
    %317 = vector.broadcast %316 : vector<2x1x16xf32> to vector<2x16x16xf32>
    %318 = arith.mulf %86, %317 : vector<2x16x16xf32>
    %cst_82 = arith.constant dense<0.000000e+00> : vector<2x16xf32>
    %319 = vector.multi_reduction <add>, %318, %cst_82 [2] : vector<2x16x16xf32> to vector<2x16xf32>
    %320 = vector.shape_cast %319 : vector<2x16xf32> to vector<2x16x1xf32>
    %321 = tpu.reciprocal %320 {approx = true} : vector<2x16x1xf32> -> vector<2x16x1xf32>
    %322 = vector.broadcast %87 : f32 to vector<2x16x1xf32>
    %323 = arith.mulf %322, %321 : vector<2x16x1xf32>
    %324 = vector.broadcast %323 : vector<2x16x1xf32> to vector<2x16x16xf32>
    %325 = arith.mulf %86, %324 : vector<2x16x16xf32>
    %cst_83 = arith.constant dense<0.000000e+00> : vector<2x16xf32>
    %326 = vector.multi_reduction <add>, %325, %cst_83 [1] : vector<2x16x16xf32> to vector<2x16xf32>
    %327 = vector.shape_cast %326 : vector<2x16xf32> to vector<2x1x16xf32>
    %328 = tpu.reciprocal %327 {approx = true} : vector<2x1x16xf32> -> vector<2x1x16xf32>
    %c20_i32 = arith.constant 20 : i32
    %329 = vector.broadcast %328 : vector<2x1x16xf32> to vector<2x16x16xf32>
    %330 = arith.mulf %86, %329 : vector<2x16x16xf32>
    %cst_84 = arith.constant dense<0.000000e+00> : vector<2x16xf32>
    %331 = vector.multi_reduction <add>, %330, %cst_84 [2] : vector<2x16x16xf32> to vector<2x16xf32>
    %332 = vector.shape_cast %331 : vector<2x16xf32> to vector<2x16x1xf32>
    %333 = tpu.reciprocal %332 {approx = true} : vector<2x16x1xf32> -> vector<2x16x1xf32>
    %334 = vector.broadcast %87 : f32 to vector<2x16x1xf32>
    %335 = arith.mulf %334, %333 : vector<2x16x1xf32>
    %336 = vector.broadcast %335 : vector<2x16x1xf32> to vector<2x16x16xf32>
    %337 = arith.mulf %86, %336 : vector<2x16x16xf32>
    %cst_85 = arith.constant dense<0.000000e+00> : vector<2x16xf32>
    %338 = vector.multi_reduction <add>, %337, %cst_85 [1] : vector<2x16x16xf32> to vector<2x16xf32>
    %339 = vector.shape_cast %338 : vector<2x16xf32> to vector<2x1x16xf32>
    %340 = tpu.reciprocal %339 {approx = true} : vector<2x1x16xf32> -> vector<2x1x16xf32>
    %c21_i32 = arith.constant 21 : i32
    %341 = vector.broadcast %340 : vector<2x1x16xf32> to vector<2x16x16xf32>
    %342 = arith.mulf %86, %341 : vector<2x16x16xf32>
    %cst_86 = arith.constant dense<0.000000e+00> : vector<2x16xf32>
    %343 = vector.multi_reduction <add>, %342, %cst_86 [2] : vector<2x16x16xf32> to vector<2x16xf32>
    %344 = vector.shape_cast %343 : vector<2x16xf32> to vector<2x16x1xf32>
    %345 = tpu.reciprocal %344 {approx = true} : vector<2x16x1xf32> -> vector<2x16x1xf32>
    %346 = vector.broadcast %87 : f32 to vector<2x16x1xf32>
    %347 = arith.mulf %346, %345 : vector<2x16x1xf32>
    %348 = vector.broadcast %347 : vector<2x16x1xf32> to vector<2x16x16xf32>
    %349 = arith.mulf %86, %348 : vector<2x16x16xf32>
    %cst_87 = arith.constant dense<0.000000e+00> : vector<2x16xf32>
    %350 = vector.multi_reduction <add>, %349, %cst_87 [1] : vector<2x16x16xf32> to vector<2x16xf32>
    %351 = vector.shape_cast %350 : vector<2x16xf32> to vector<2x1x16xf32>
    %352 = tpu.reciprocal %351 {approx = true} : vector<2x1x16xf32> -> vector<2x1x16xf32>
    %c22_i32 = arith.constant 22 : i32
    %353 = vector.broadcast %352 : vector<2x1x16xf32> to vector<2x16x16xf32>
    %354 = arith.mulf %86, %353 : vector<2x16x16xf32>
    %cst_88 = arith.constant dense<0.000000e+00> : vector<2x16xf32>
    %355 = vector.multi_reduction <add>, %354, %cst_88 [2] : vector<2x16x16xf32> to vector<2x16xf32>
    %356 = vector.shape_cast %355 : vector<2x16xf32> to vector<2x16x1xf32>
    %357 = tpu.reciprocal %356 {approx = true} : vector<2x16x1xf32> -> vector<2x16x1xf32>
    %358 = vector.broadcast %87 : f32 to vector<2x16x1xf32>
    %359 = arith.mulf %358, %357 : vector<2x16x1xf32>
    %360 = vector.broadcast %359 : vector<2x16x1xf32> to vector<2x16x16xf32>
    %361 = arith.mulf %86, %360 : vector<2x16x16xf32>
    %cst_89 = arith.constant dense<0.000000e+00> : vector<2x16xf32>
    %362 = vector.multi_reduction <add>, %361, %cst_89 [1] : vector<2x16x16xf32> to vector<2x16xf32>
    %363 = vector.shape_cast %362 : vector<2x16xf32> to vector<2x1x16xf32>
    %364 = tpu.reciprocal %363 {approx = true} : vector<2x1x16xf32> -> vector<2x1x16xf32>
    %c23_i32 = arith.constant 23 : i32
    %365 = vector.broadcast %364 : vector<2x1x16xf32> to vector<2x16x16xf32>
    %366 = arith.mulf %86, %365 : vector<2x16x16xf32>
    %cst_90 = arith.constant dense<0.000000e+00> : vector<2x16xf32>
    %367 = vector.multi_reduction <add>, %366, %cst_90 [2] : vector<2x16x16xf32> to vector<2x16xf32>
    %368 = vector.shape_cast %367 : vector<2x16xf32> to vector<2x16x1xf32>
    %369 = tpu.reciprocal %368 {approx = true} : vector<2x16x1xf32> -> vector<2x16x1xf32>
    %370 = vector.broadcast %87 : f32 to vector<2x16x1xf32>
    %371 = arith.mulf %370, %369 : vector<2x16x1xf32>
    %372 = vector.broadcast %371 : vector<2x16x1xf32> to vector<2x16x16xf32>
    %373 = arith.mulf %86, %372 : vector<2x16x16xf32>
    %cst_91 = arith.constant dense<0.000000e+00> : vector<2x16xf32>
    %374 = vector.multi_reduction <add>, %373, %cst_91 [1] : vector<2x16x16xf32> to vector<2x16xf32>
    %375 = vector.shape_cast %374 : vector<2x16xf32> to vector<2x1x16xf32>
    %376 = tpu.reciprocal %375 {approx = true} : vector<2x1x16xf32> -> vector<2x1x16xf32>
    %c24_i32 = arith.constant 24 : i32
    %377 = vector.broadcast %376 : vector<2x1x16xf32> to vector<2x16x16xf32>
    %378 = arith.mulf %86, %377 : vector<2x16x16xf32>
    %cst_92 = arith.constant dense<0.000000e+00> : vector<2x16xf32>
    %379 = vector.multi_reduction <add>, %378, %cst_92 [2] : vector<2x16x16xf32> to vector<2x16xf32>
    %380 = vector.shape_cast %379 : vector<2x16xf32> to vector<2x16x1xf32>
    %381 = tpu.reciprocal %380 {approx = true} : vector<2x16x1xf32> -> vector<2x16x1xf32>
    %382 = vector.broadcast %87 : f32 to vector<2x16x1xf32>
    %383 = arith.mulf %382, %381 : vector<2x16x1xf32>
    %384 = vector.broadcast %383 : vector<2x16x1xf32> to vector<2x16x16xf32>
    %385 = arith.mulf %86, %384 : vector<2x16x16xf32>
    %cst_93 = arith.constant dense<0.000000e+00> : vector<2x16xf32>
    %386 = vector.multi_reduction <add>, %385, %cst_93 [1] : vector<2x16x16xf32> to vector<2x16xf32>
    %387 = vector.shape_cast %386 : vector<2x16xf32> to vector<2x1x16xf32>
    %388 = tpu.reciprocal %387 {approx = true} : vector<2x1x16xf32> -> vector<2x1x16xf32>
    %c25_i32 = arith.constant 25 : i32
    %389 = vector.broadcast %388 : vector<2x1x16xf32> to vector<2x16x16xf32>
    %390 = arith.mulf %86, %389 : vector<2x16x16xf32>
    %cst_94 = arith.constant dense<0.000000e+00> : vector<2x16xf32>
    %391 = vector.multi_reduction <add>, %390, %cst_94 [2] : vector<2x16x16xf32> to vector<2x16xf32>
    %392 = vector.shape_cast %391 : vector<2x16xf32> to vector<2x16x1xf32>
    %393 = tpu.reciprocal %392 {approx = true} : vector<2x16x1xf32> -> vector<2x16x1xf32>
    %394 = vector.broadcast %87 : f32 to vector<2x16x1xf32>
    %395 = arith.mulf %394, %393 : vector<2x16x1xf32>
    %396 = vector.broadcast %395 : vector<2x16x1xf32> to vector<2x16x16xf32>
    %397 = arith.mulf %86, %396 : vector<2x16x16xf32>
    %cst_95 = arith.constant dense<0.000000e+00> : vector<2x16xf32>
    %398 = vector.multi_reduction <add>, %397, %cst_95 [1] : vector<2x16x16xf32> to vector<2x16xf32>
    %399 = vector.shape_cast %398 : vector<2x16xf32> to vector<2x1x16xf32>
    %400 = tpu.reciprocal %399 {approx = true} : vector<2x1x16xf32> -> vector<2x1x16xf32>
    %c26_i32 = arith.constant 26 : i32
    %401 = vector.broadcast %400 : vector<2x1x16xf32> to vector<2x16x16xf32>
    %402 = arith.mulf %86, %401 : vector<2x16x16xf32>
    %cst_96 = arith.constant dense<0.000000e+00> : vector<2x16xf32>
    %403 = vector.multi_reduction <add>, %402, %cst_96 [2] : vector<2x16x16xf32> to vector<2x16xf32>
    %404 = vector.shape_cast %403 : vector<2x16xf32> to vector<2x16x1xf32>
    %405 = tpu.reciprocal %404 {approx = true} : vector<2x16x1xf32> -> vector<2x16x1xf32>
    %406 = vector.broadcast %87 : f32 to vector<2x16x1xf32>
    %407 = arith.mulf %406, %405 : vector<2x16x1xf32>
    %408 = vector.broadcast %407 : vector<2x16x1xf32> to vector<2x16x16xf32>
    %409 = arith.mulf %86, %408 : vector<2x16x16xf32>
    %cst_97 = arith.constant dense<0.000000e+00> : vector<2x16xf32>
    %410 = vector.multi_reduction <add>, %409, %cst_97 [1] : vector<2x16x16xf32> to vector<2x16xf32>
    %411 = vector.shape_cast %410 : vector<2x16xf32> to vector<2x1x16xf32>
    %412 = tpu.reciprocal %411 {approx = true} : vector<2x1x16xf32> -> vector<2x1x16xf32>
    %c27_i32 = arith.constant 27 : i32
    %413 = vector.broadcast %412 : vector<2x1x16xf32> to vector<2x16x16xf32>
    %414 = arith.mulf %86, %413 : vector<2x16x16xf32>
    %cst_98 = arith.constant dense<0.000000e+00> : vector<2x16xf32>
    %415 = vector.multi_reduction <add>, %414, %cst_98 [2] : vector<2x16x16xf32> to vector<2x16xf32>
    %416 = vector.shape_cast %415 : vector<2x16xf32> to vector<2x16x1xf32>
    %417 = tpu.reciprocal %416 {approx = true} : vector<2x16x1xf32> -> vector<2x16x1xf32>
    %418 = vector.broadcast %87 : f32 to vector<2x16x1xf32>
    %419 = arith.mulf %418, %417 : vector<2x16x1xf32>
    %420 = vector.broadcast %419 : vector<2x16x1xf32> to vector<2x16x16xf32>
    %421 = arith.mulf %86, %420 : vector<2x16x16xf32>
    %cst_99 = arith.constant dense<0.000000e+00> : vector<2x16xf32>
    %422 = vector.multi_reduction <add>, %421, %cst_99 [1] : vector<2x16x16xf32> to vector<2x16xf32>
    %423 = vector.shape_cast %422 : vector<2x16xf32> to vector<2x1x16xf32>
    %424 = tpu.reciprocal %423 {approx = true} : vector<2x1x16xf32> -> vector<2x1x16xf32>
    %c28_i32 = arith.constant 28 : i32
    %425 = vector.broadcast %424 : vector<2x1x16xf32> to vector<2x16x16xf32>
    %426 = arith.mulf %86, %425 : vector<2x16x16xf32>
    %cst_100 = arith.constant dense<0.000000e+00> : vector<2x16xf32>
    %427 = vector.multi_reduction <add>, %426, %cst_100 [2] : vector<2x16x16xf32> to vector<2x16xf32>
    %428 = vector.shape_cast %427 : vector<2x16xf32> to vector<2x16x1xf32>
    %429 = tpu.reciprocal %428 {approx = true} : vector<2x16x1xf32> -> vector<2x16x1xf32>
    %430 = vector.broadcast %87 : f32 to vector<2x16x1xf32>
    %431 = arith.mulf %430, %429 : vector<2x16x1xf32>
    %432 = vector.broadcast %431 : vector<2x16x1xf32> to vector<2x16x16xf32>
    %433 = arith.mulf %86, %432 : vector<2x16x16xf32>
    %cst_101 = arith.constant dense<0.000000e+00> : vector<2x16xf32>
    %434 = vector.multi_reduction <add>, %433, %cst_101 [1] : vector<2x16x16xf32> to vector<2x16xf32>
    %435 = vector.shape_cast %434 : vector<2x16xf32> to vector<2x1x16xf32>
    %436 = tpu.reciprocal %435 {approx = true} : vector<2x1x16xf32> -> vector<2x1x16xf32>
    %437 = vector.broadcast %436 : vector<2x1x16xf32> to vector<2x16x16xf32>
    %438 = arith.mulf %86, %437 : vector<2x16x16xf32>
    %cst_102 = arith.constant dense<0.000000e+00> : vector<2x16xf32>
    %439 = vector.multi_reduction <add>, %438, %cst_102 [2] : vector<2x16x16xf32> to vector<2x16xf32>
    %440 = vector.shape_cast %439 : vector<2x16xf32> to vector<2x16x1xf32>
    %441 = vector.broadcast %87 : f32 to vector<2x16x1xf32>
    %442 = arith.divf %441, %440 : vector<2x16x1xf32>
    %443 = vector.broadcast %442 : vector<2x16x1xf32> to vector<2x16x16xf32>
    %444 = arith.mulf %86, %443 : vector<2x16x16xf32>
    %cst_103 = arith.constant dense<0.000000e+00> : vector<2x16xf32>
    %445 = vector.multi_reduction <add>, %444, %cst_103 [1] : vector<2x16x16xf32> to vector<2x16xf32>
    %446 = vector.shape_cast %445 : vector<2x16xf32> to vector<2x1x16xf32>
    %cst_104 = arith.constant 1.000000e+00 : f32
    %447 = vector.broadcast %cst_104 : f32 to vector<2x1x16xf32>
    %448 = arith.divf %447, %446 : vector<2x1x16xf32>
    %449 = vector.broadcast %442 : vector<2x16x1xf32> to vector<2x16x16xf32>
    %450 = arith.mulf %449, %86 : vector<2x16x16xf32>
    %451 = vector.broadcast %448 : vector<2x1x16xf32> to vector<2x16x16xf32>
    %452 = arith.mulf %450, %451 : vector<2x16x16xf32>
    %453 = vector.extract_strided_slice %452 {offsets = [0, 0, 0], sizes = [1, 16, 16], strides = [1, 1, 1]} : vector<2x16x16xf32> to vector<1x16x16xf32>
    %454 = vector.shape_cast %453 : vector<1x16x16xf32> to vector<16x16xf32>
    %455 = vector.extract_strided_slice %65 {offsets = [0, 0], sizes = [16, 32], strides = [1, 1]} : vector<32x32xf32> to vector<16x32xf32>
    %cst_105 = arith.constant dense<0.000000e+00> : vector<16x32xf32>
    %456 = tpu.matmul %454, %455, %cst_105 {dimension_numbers = #tpu.dot_dimension_numbers<[1], [0], [0], [1], [0, 0, 1, 1], [], []>} : vector<16x16xf32>, vector<16x32xf32>, vector<16x32xf32> -> vector<16x32xf32>
    %457 = vector.extract_strided_slice %452 {offsets = [1, 0, 0], sizes = [1, 16, 16], strides = [1, 1, 1]} : vector<2x16x16xf32> to vector<1x16x16xf32>
    %458 = vector.shape_cast %457 : vector<1x16x16xf32> to vector<16x16xf32>
    %459 = vector.extract_strided_slice %65 {offsets = [16, 0], sizes = [16, 32], strides = [1, 1]} : vector<32x32xf32> to vector<16x32xf32>
    %cst_106 = arith.constant dense<0.000000e+00> : vector<16x32xf32>
    %460 = tpu.matmul %458, %459, %cst_106 {dimension_numbers = #tpu.dot_dimension_numbers<[1], [0], [0], [1], [0, 0, 1, 1], [], []>} : vector<16x16xf32>, vector<16x32xf32>, vector<16x32xf32> -> vector<16x32xf32>
    %461 = tpu.concatenate %456, %460 in 0 : vector<16x32xf32>, vector<16x32xf32> -> vector<32x32xf32>
    %462 = arith.cmpf one, %461, %461 : vector<32x32xf32>
    %cst_107 = arith.constant 0.000000e+00 : f32
    %463 = vector.broadcast %cst_107 : f32 to vector<32x32xf32>
    %464 = arith.select %462, %463, %461 : vector<32x32xi1>, vector<32x32xf32>
    %cst_108 = arith.constant -3.40282347E+38 : f32
    %cst_109 = arith.constant 3.40282347E+38 : f32
    %465 = vector.broadcast %cst_108 : f32 to vector<32x32xf32>
    %466 = arith.maximumf %465, %464 : vector<32x32xf32>
    %467 = vector.broadcast %cst_109 : f32 to vector<32x32xf32>
    %468 = arith.minimumf %467, %466 : vector<32x32xf32>
    %cst_110 = arith.constant dense<0.000000e+00> : vector<32xf32>
    %469 = vector.multi_reduction <add>, %468, %cst_110 [1] : vector<32x32xf32> to vector<32xf32>
    %470 = vector.shape_cast %469 : vector<32xf32> to vector<32x1xf32>
    %cst_111 = arith.constant 3.200000e+01 : f32
    %471 = vector.broadcast %cst_111 : f32 to vector<32x1xf32>
    %472 = arith.divf %470, %471 : vector<32x1xf32>
    %473 = vector.broadcast %472 : vector<32x1xf32> to vector<32x32xf32>
    %474 = arith.subf %468, %473 : vector<32x32xf32>
    %475 = arith.mulf %474, %474 : vector<32x32xf32>
    %cst_112 = arith.constant dense<0.000000e+00> : vector<32xf32>
    %476 = vector.multi_reduction <add>, %475, %cst_112 [1] : vector<32x32xf32> to vector<32xf32>
    %477 = vector.shape_cast %476 : vector<32xf32> to vector<32x1xf32>
    %cst_113 = arith.constant 3.200000e+01 : f32
    %478 = vector.broadcast %cst_113 : f32 to vector<32x1xf32>
    %479 = arith.divf %477, %478 : vector<32x1xf32>
    %480 = vector.broadcast %472 : vector<32x1xf32> to vector<32x32xf32>
    %481 = arith.subf %468, %480 : vector<32x32xf32>
    %cst_114 = arith.constant 9.99999974E-6 : f32
    %482 = vector.broadcast %cst_114 : f32 to vector<32x1xf32>
    %483 = arith.addf %479, %482 : vector<32x1xf32>
    %484 = math.rsqrt %483 : vector<32x1xf32>
    %485 = vector.broadcast %484 : vector<32x1xf32> to vector<32x32xf32>
    %486 = arith.mulf %481, %485 : vector<32x32xf32>
    %487 = vector.broadcast %11 : vector<1x32xf32> to vector<32x32xf32>
    %488 = arith.mulf %486, %487 : vector<32x32xf32>
    %489 = vector.broadcast %12 : vector<1x32xf32> to vector<32x32xf32>
    %490 = arith.addf %488, %489 : vector<32x32xf32>
    %c0_115 = arith.constant 0 : index
    %c0_116 = arith.constant 0 : index
    %491 = vector.load %arg4[%c0_115, %c0_116] : memref<32x32xf32, #tpu.memory_space<vmem>>, vector<32x32xf32>
    tpu.vector_store %arg4[%c0_115, %c0_116], %490 {strides = array<i32>} : memref<32x32xf32, #tpu.memory_space<vmem>>, vector<32x32xf32>,
    return
  }
  func.func @transform_0(%arg0: i32) -> (i32, i32) {
    %c0_i32 = arith.constant 0 : i32
    %c0_i32_0 = arith.constant 0 : i32
    return %arg0, %c0_i32 : i32, i32
  }
  func.func @transform_1(%arg0: i32) -> (i32, i32) {
    %c0_i32 = arith.constant 0 : i32
    %c0_i32_0 = arith.constant 0 : i32
    return %arg0, %c0_i32 : i32, i32
  }
  func.func @transform_2(%arg0: i32) -> (i32, i32) {
    %c0_i32 = arith.constant 0 : i32
    %c0_i32_0 = arith.constant 0 : i32
    %c0_i32_1 = arith.constant 0 : i32
    return %c0_i32, %c0_i32_0 : i32, i32
  }
  func.func @transform_3(%arg0: i32) -> (i32, i32) {
    %c0_i32 = arith.constant 0 : i32
    %c0_i32_0 = arith.constant 0 : i32
    return %arg0, %c0_i32 : i32, i32
  }
}

</mosaic_0001>

<llo_original>
// kernel: tpu_custom_call.1
$region0: #{tpu_custom_call.1}
  #allocation0 [shape = 'u32[]', space=smem, size = 0x4, offset = 0x4, fixed_abs, tag = 'smem constant byte address 0x4 - core index']
  #allocation1 [shape = 'u32[72,128]{1,0:T(1,128)}', space=vmem, size = 0x9000, scoped, tag = 'internal scratch']
  %s0 = inlined_call_operand.vmem [shape: f32[16,32], index: 0, kind: input, shape index: {}]
  %s1 = inlined_call_operand.vmem [shape: f32[32,32], index: 1, kind: input, shape index: {}]
  %s2 = inlined_call_operand.vmem [shape: f32[248,32], index: 2, kind: input, shape index: {}]
  %s3 = inlined_call_operand.hbm [shape: f32[32,32], index: 3, kind: output, shape index: {}]
  %s4 = sld [smem:[#allocation0]]
  $region22: #{tpu_custom_call.1} parent=0
    _
  %s6 = ssub.s32 1, %s4
  %s7 = scalar_select 0, %s6, %s4
  $region1: #{tpu_custom_call.1} parent=0
    #allocation2 [shape = 'u8[16384]{0}', space=vmem, size = 0x4000, scoped, tag = 'output window, operand 0, single buffered']
    #allocation3 [shape = 's32[1]{0}', space=sflag, size = 0x4, scoped, tag = 'scoped memory for tpu_custom_call.1']
    %8 = vsyncpa [#allocation3], 0
    // Predicated region
    $region2: #{tpu_custom_call.1} parent=1 // pred_check
      _
    $region3: #{tpu_custom_call.1} parent=1 // pred_check_branch
      %10 = sbr.rel (0) target = $region5
    $region4: #{tpu_custom_call.1} parent=1 // pred_region
      _
    $region5: #{tpu_custom_call.1} parent=1 // pred_fallthru
      _
    // Predicated region
    $region6: #{tpu_custom_call.1} parent=1 // pred_check
      _
    $region7: #{tpu_custom_call.1} parent=1 // pred_check_branch
      %12 = sbr.rel (0) target = $region9
    $region8: #{tpu_custom_call.1} parent=1 // pred_region
      _
    $region9: #{tpu_custom_call.1} parent=1 // pred_fallthru
      _
    // Predicated region
    $region10: #{tpu_custom_call.1} parent=1 // pred_check
      _
    $region11: #{tpu_custom_call.1} parent=1 // pred_check_branch
      %14 = sbr.rel (0) target = $region13
    $region12: #{tpu_custom_call.1} parent=1 // pred_region
      _
    $region13: #{tpu_custom_call.1} parent=1 // pred_fallthru
      _
    %v15 = vld [vmem:[%s2] sm:$0xff]
    %v16 = vld [vmem:[%s2 + $0x8] sm:$0xff]
    %v17 = vld [vmem:[%s2 + $0x10] sm:$0xff]
    %v18 = vld [vmem:[%s2 + $0x18] sm:$0xff]
    %v19 = vld [vmem:[%s2 + $0x20] sm:$0xff]
    %v20 = vld [vmem:[%s2 + $0x28] sm:$0xff]
    %v21 = vld [vmem:[%s2 + $0x30] sm:$0xff]
    %v22 = vld [vmem:[%s2 + $0x38] sm:$0xff]
    %v23 = vld [vmem:[%s2 + $0x40] sm:$0xff]
    %v24 = vld [vmem:[%s2 + $0x48] sm:$0xff]
    %v25 = vld [vmem:[%s2 + $0x50] sm:$0xff]
    %v26 = vld [vmem:[%s2 + $0x58] sm:$0xff]
    %v27 = vld [vmem:[%s2 + $0x60] sm:$0xff]
    %v28 = vld [vmem:[%s2 + $0x68] sm:$0xff]
    %v29 = vld [vmem:[%s2 + $0x70] sm:$0xff]
    %v30 = vld [vmem:[%s2 + $0x78] sm:$0xff]
    %v31 = vld [vmem:[%s2 + $0x80] sm:$0xff]
    %v32 = vld [vmem:[%s2 + $0x88] sm:$0xff]
    %v33 = vld [vmem:[%s2 + $0x90] sm:$0xff]
    %v34 = vld [vmem:[%s2 + $0x98] sm:$0xff]
    %v35 = vld [vmem:[%s2 + $0xa0] sm:$0xff]
    %v36 = vld [vmem:[%s2 + $0xa8] sm:$0xff]
    %v37 = vld [vmem:[%s2 + $0xb0] sm:$0xff]
    %v38 = vld [vmem:[%s2 + $0xb8] sm:$0xff]
    %v39 = vld [vmem:[%s2 + $0xc0] sm:$0xff]
    %v40 = vld [vmem:[%s2 + $0xc8] sm:$0xff]
    %v41 = vld [vmem:[%s2 + $0xd0] sm:$0xff]
    %v42 = vld [vmem:[%s2 + $0xd8] sm:$0xff]
    %v43 = vld [vmem:[%s2 + $0xe0] sm:$0xff]
    %v44 = vld [vmem:[%s2 + $0xe8] sm:$0xff]
    %v45 = vld [vmem:[%s2 + $0xf0] sm:$0x1]
    %v46 = vld [vmem:[%s2 + $0xf1] sm:$0x1]
    %v47 = vld [vmem:[%s2 + $0xf2] sm:$0x1]
    %v48 = vld [vmem:[%s2 + $0xf3] sm:$0x1]
    %v49 = vld [vmem:[%s2 + $0xf4] sm:$0x1]
    %v50 = vld [vmem:[%s0] sm:$0xff]
    %v51 = vld [vmem:[%s0 + $0x8] sm:$0xff]
    %v52 = vld [vmem:[%s1] sm:$0xff]
    %v53 = vld [vmem:[%s1 + $0x8] sm:$0xff]
    %v54 = vld [vmem:[%s1 + $0x10] sm:$0xff]
    %v55 = vld [vmem:[%s1 + $0x18] sm:$0xff]
    %vm56 = vcmask 130048
    %v58 = vsel %vm56, %v15, 0
    %v61 = vsel %vm56, %v16, 0
    %v64 = vsel %vm56, %v17, 0
    %v67 = vsel %vm56, %v18, 0
    %69 = vmatpush.msra.mxu0 0.0
    %70 = vmatpush.msra.mxu0 0.0
    %71 = vmatpush.msra.mxu0 0.0
    %72 = vmatpush.msra.mxu0 0.0
    %73 = vmatpush.msra.mxu0 0.0
    %74 = vmatpush.msra.mxu0 0.0
    %75 = vmatpush.msra.mxu0 0.0
    %76 = vmatpush.msra.mxu0 0.0
    %77 = vmatpush.msra.mxu0 0.0
    %78 = vmatpush.msra.mxu0 0.0
    %79 = vmatpush.msra.mxu0 0.0
    %80 = vmatpush.msra.mxu0 0.0
    %81 = vmatpush.msra.mxu0 0.0
    %82 = vmatpush.msra.mxu0 0.0
    %83 = vmatpush.msra.mxu0 %v51
    %84 = vmatpush.msra.mxu0 %v50
    %85 = vmatmul.f32.gmra.mxu0 %v58
    %v86 = vpop.f32.mrf.mxu0
    %v87 = vadd.f32 %v19, %v86
    %88 = vmatmul.f32.gmra.mxu0 %v61
    %v89 = vpop.f32.mrf.mxu0
    %v90 = vadd.f32 %v20, %v89
    %91 = vmatmul.f32.gmra.mxu0 %v64
    %v92 = vpop.f32.mrf.mxu0
    %v93 = vadd.f32 %v21, %v92
    %94 = vmatmul.f32.gmra.mxu0 %v67
    %v95 = vpop.f32.mrf.mxu0
    %v96 = vadd.f32 %v22, %v95
    %97 = vdwg.mxu0
    %v98 = vmax.f32 %v87, 0.0
    %v99 = vmax.f32 %v90, 0.0
    %v100 = vmax.f32 %v93, 0.0
    %v101 = vmax.f32 %v96, 0.0
    %v102 = vperm.slane %v45, 0
    %vm103 = vcmask 261120
    %v105 = vsel %vm103, %v98, 0
    %v108 = vsel %vm103, %v99, 0
    %v111 = vsel %vm103, %v100, 0
    %v114 = vsel %vm103, %v101, 0
    %116 = vmatpush.msra.mxu0 0.0
    %117 = vmatpush.msra.mxu0 0.0
    %118 = vmatpush.msra.mxu0 0.0
    %119 = vmatpush.msra.mxu0 0.0
    %120 = vmatpush.msra.mxu0 0.0
    %121 = vmatpush.msra.mxu0 0.0
    %122 = vmatpush.msra.mxu0 0.0
    %123 = vmatpush.msra.mxu0 0.0
    %124 = vmatpush.msra.mxu0 0.0
    %125 = vmatpush.msra.mxu0 0.0
    %126 = vmatpush.msra.mxu0 0.0
    %127 = vmatpush.msra.mxu0 0.0
    %128 = vmatpush.msra.mxu0 %v30
    %129 = vmatpush.msra.mxu0 %v29
    %130 = vmatpush.msra.mxu0 %v28
    %131 = vmatpush.msra.mxu0 %v27
    %132 = vmatmul.f32.gmra.mxu0 %v105
    %v133 = vpop.f32.mrf.mxu0
    %v134 = vadd.f32 %v102, %v133
    %135 = vmatmul.f32.gmra.mxu0 %v108
    %v136 = vpop.f32.mrf.mxu0
    %v137 = vadd.f32 %v102, %v136
    %138 = vmatmul.f32.gmra.mxu0 %v111
    %v139 = vpop.f32.mrf.mxu0
    %v140 = vadd.f32 %v102, %v139
    %141 = vmatmul.f32.gmra.mxu0 %v114
    %v142 = vpop.f32.mrf.mxu0
    %v143 = vadd.f32 %v102, %v142
    %144 = vdwg.mxu0
    %v145 = vmax.f32 %v134, 0.0
    %v146 = vmax.f32 %v137, 0.0
    %v147 = vmax.f32 %v140, 0.0
    %v148 = vmax.f32 %v143, 0.0
    %v150 = vsel %vm103, %v145, 0
    %v153 = vsel %vm103, %v146, 0
    %v156 = vsel %vm103, %v147, 0
    %v159 = vsel %vm103, %v148, 0
    %161 = vmatpush.xpose.msra.mxu0 0.0
    %162 = vmatpush.xpose.msra.mxu0 0.0
    %163 = vmatpush.xpose.msra.mxu0 0.0
    %164 = vmatpush.xpose.msra.mxu0 0.0
    %165 = vmatpush.xpose.msra.mxu0 0.0
    %166 = vmatpush.xpose.msra.mxu0 0.0
    %167 = vmatpush.xpose.msra.mxu0 0.0
    %168 = vmatpush.xpose.msra.mxu0 0.0
    %169 = vmatpush.xpose.msra.mxu0 0.0
    %170 = vmatpush.xpose.msra.mxu0 0.0
    %171 = vmatpush.xpose.msra.mxu0 0.0
    %172 = vmatpush.xpose.msra.mxu0 0.0
    %173 = vmatpush.xpose.msra.mxu0 %v159
    %174 = vmatpush.xpose.msra.mxu0 %v156
    %175 = vmatpush.xpose.msra.mxu0 %v153
    %176 = vmatpush.xpose.msra.mxu0 %v150
    %177 = vmatmul.f32.gmra.mxu0 %v150
    %v178 = vpop.f32.mrf.mxu0
    %v179 = vadd.f32 0.0, %v178
    %180 = vmatmul.f32.gmra.mxu0 %v153
    %v181 = vpop.f32.mrf.mxu0
    %v182 = vadd.f32 0.0, %v181
    %183 = vmatmul.f32.gmra.mxu0 %v156
    %v184 = vpop.f32.mrf.mxu0
    %v185 = vadd.f32 0.0, %v184
    %186 = vmatmul.f32.gmra.mxu0 %v159
    %v187 = vpop.f32.mrf.mxu0
    %v188 = vadd.f32 0.0, %v187
    %189 = vdwg.mxu0
    %v190 = vmul.f32 %v179, 0.17677669
    %v191 = vmul.f32 %v182, 0.17677669
    %v192 = vmul.f32 %v185, 0.17677669
    %v193 = vmul.f32 %v188, 0.17677669
    %v194 = vadd.f32 %v190, %v23
    %v195 = vadd.f32 %v191, %v24
    %v196 = vadd.f32 %v192, %v25
    %v197 = vadd.f32 %v193, %v26
    %v198 = vsel %vm103, %v194, -inf
    %199 = vmax.xlane.f32.xlu0 %v198
    %v200 = vpop.xlane.xlu0 %199
    %v201 = vsel %vm103, %v195, -inf
    %202 = vmax.xlane.f32.xlu0 %v201
    %v203 = vpop.xlane.xlu0 %202
    %v204 = vsel %vm103, %v196, -inf
    %205 = vmax.xlane.f32.xlu0 %v204
    %v206 = vpop.xlane.xlu0 %205
    %v207 = vsel %vm103, %v197, -inf
    %208 = vmax.xlane.f32.xlu0 %v207
    %v209 = vpop.xlane.xlu0 %208
    %v210 = vsub.f32 %v194, %v200
    %v211 = vsub.f32 %v195, %v203
    %v212 = vsub.f32 %v196, %v206
    %v213 = vsub.f32 %v197, %v209
    %v214 = vmul.f32 %v210, 1.442695
    %v215 = vpow.pop %v214
    %v216 = vmul.f32 %v211, 1.442695
    %v217 = vpow.pop %v216
    %v218 = vmul.f32 %v212, 1.442695
    %v219 = vpow.pop %v218
    %v220 = vmul.f32 %v213, 1.442695
    %v221 = vpow.pop %v220
    %v222 = vsel %vm103, %v215, 0.0
    %223 = vadd.xlane.f32.xlu0 %v222
    %v224 = vpop.xlane.xlu0 %223
    %v225 = vsel %vm103, %v217, 0.0
    %226 = vadd.xlane.f32.xlu0 %v225
    %v227 = vpop.xlane.xlu0 %226
    %v228 = vsel %vm103, %v219, 0.0
    %229 = vadd.xlane.f32.xlu0 %v228
    %v230 = vpop.xlane.xlu0 %229
    %v231 = vsel %vm103, %v221, 0.0
    %232 = vadd.xlane.f32.xlu0 %v231
    %v233 = vpop.xlane.xlu0 %232
    %v234 = vrcp.pop %v224
    %v235 = vrcp.pop %v227
    %v236 = vrcp.pop %v230
    %v237 = vrcp.pop %v233
    %v238 = vmul.f32 %v215, %v234
    %v239 = vmul.f32 %v217, %v235
    %v240 = vmul.f32 %v219, %v236
    %v241 = vmul.f32 %v221, %v237
    %v243 = vsel %vm103, %v238, 0
    %v246 = vsel %vm103, %v239, 0
    %v249 = vsel %vm103, %v240, 0
    %v252 = vsel %vm103, %v241, 0
    %254 = vmatpush.msra.mxu0 0.0
    %255 = vmatpush.msra.mxu0 0.0
    %256 = vmatpush.msra.mxu0 0.0
    %257 = vmatpush.msra.mxu0 0.0
    %258 = vmatpush.msra.mxu0 0.0
    %259 = vmatpush.msra.mxu0 0.0
    %260 = vmatpush.msra.mxu0 0.0
    %261 = vmatpush.msra.mxu0 0.0
    %262 = vmatpush.msra.mxu0 0.0
    %263 = vmatpush.msra.mxu0 0.0
    %264 = vmatpush.msra.mxu0 0.0
    %265 = vmatpush.msra.mxu0 0.0
    %266 = vmatpush.msra.mxu0 %v148
    %267 = vmatpush.msra.mxu0 %v147
    %268 = vmatpush.msra.mxu0 %v146
    %269 = vmatpush.msra.mxu0 %v145
    %270 = vmatmul.f32.gmra.mxu0 %v243
    %v271 = vpop.f32.mrf.mxu0
    %v272 = vadd.f32 0.0, %v271
    %273 = vmatmul.f32.gmra.mxu0 %v246
    %v274 = vpop.f32.mrf.mxu0
    %v275 = vadd.f32 0.0, %v274
    %276 = vmatmul.f32.gmra.mxu0 %v249
    %v277 = vpop.f32.mrf.mxu0
    %v278 = vadd.f32 0.0, %v277
    %279 = vmatmul.f32.gmra.mxu0 %v252
    %v280 = vpop.f32.mrf.mxu0
    %v281 = vadd.f32 0.0, %v280
    %282 = vdwg.mxu0
    %v283 = vperm.slane %v46, 0
    %v285 = vsel %vm103, %v52, 0
    %v288 = vsel %vm103, %v53, 0
    %v291 = vsel %vm103, %v54, 0
    %v294 = vsel %vm103, %v55, 0
    %296 = vmatpush.msra.mxu0 0.0
    %297 = vmatpush.msra.mxu0 0.0
    %298 = vmatpush.msra.mxu0 0.0
    %299 = vmatpush.msra.mxu0 0.0
    %300 = vmatpush.msra.mxu0 0.0
    %301 = vmatpush.msra.mxu0 0.0
    %302 = vmatpush.msra.mxu0 0.0
    %303 = vmatpush.msra.mxu0 0.0
    %304 = vmatpush.msra.mxu0 0.0
    %305 = vmatpush.msra.mxu0 0.0
    %306 = vmatpush.msra.mxu0 0.0
    %307 = vmatpush.msra.mxu0 0.0
    %308 = vmatpush.msra.mxu0 %v34
    %309 = vmatpush.msra.mxu0 %v33
    %310 = vmatpush.msra.mxu0 %v32
    %311 = vmatpush.msra.mxu0 %v31
    %312 = vmatmul.f32.gmra.mxu0 %v285
    %v313 = vpop.f32.mrf.mxu0
    %v314 = vadd.f32 %v283, %v313
    %315 = vmatmul.f32.gmra.mxu0 %v288
    %v316 = vpop.f32.mrf.mxu0
    %v317 = vadd.f32 %v283, %v316
    %318 = vmatmul.f32.gmra.mxu0 %v291
    %v319 = vpop.f32.mrf.mxu0
    %v320 = vadd.f32 %v283, %v319
    %321 = vmatmul.f32.gmra.mxu0 %v294
    %v322 = vpop.f32.mrf.mxu0
    %v323 = vadd.f32 %v283, %v322
    %324 = vdwg.mxu0
    %v325 = vmax.f32 %v314, 0.0
    %v326 = vmax.f32 %v317, 0.0
    %v327 = vmax.f32 %v320, 0.0
    %v328 = vmax.f32 %v323, 0.0
    %v330 = vsel %vm103, %v325, 0
    %v333 = vsel %vm103, %v326, 0
    %v336 = vsel %vm103, %v327, 0
    %v339 = vsel %vm103, %v328, 0
    %341 = vmatpush.xpose.msra.mxu0 0.0
    %342 = vmatpush.xpose.msra.mxu0 0.0
    %343 = vmatpush.xpose.msra.mxu0 0.0
    %344 = vmatpush.xpose.msra.mxu0 0.0
    %345 = vmatpush.xpose.msra.mxu0 0.0
    %346 = vmatpush.xpose.msra.mxu0 0.0
    %347 = vmatpush.xpose.msra.mxu0 0.0
    %348 = vmatpush.xpose.msra.mxu0 0.0
    %349 = vmatpush.xpose.msra.mxu0 0.0
    %350 = vmatpush.xpose.msra.mxu0 0.0
    %351 = vmatpush.xpose.msra.mxu0 0.0
    %352 = vmatpush.xpose.msra.mxu0 0.0
    %353 = vmatpush.xpose.msra.mxu0 %v339
    %354 = vmatpush.xpose.msra.mxu0 %v336
    %355 = vmatpush.xpose.msra.mxu0 %v333
    %356 = vmatpush.xpose.msra.mxu0 %v330
    %357 = vmatmul.f32.gmra.mxu0 %v330
    %v358 = vpop.f32.mrf.mxu0
    %v359 = vadd.f32 0.0, %v358
    %360 = vmatmul.f32.gmra.mxu0 %v333
    %v361 = vpop.f32.mrf.mxu0
    %v362 = vadd.f32 0.0, %v361
    %363 = vmatmul.f32.gmra.mxu0 %v336
    %v364 = vpop.f32.mrf.mxu0
    %v365 = vadd.f32 0.0, %v364
    %366 = vmatmul.f32.gmra.mxu0 %v339
    %v367 = vpop.f32.mrf.mxu0
    %v368 = vadd.f32 0.0, %v367
    %369 = vdwg.mxu0
    %v370 = vmul.f32 %v359, 0.17677669
    %v371 = vmul.f32 %v362, 0.17677669
    %v372 = vmul.f32 %v365, 0.17677669
    %v373 = vmul.f32 %v368, 0.17677669
    %v374 = vadd.f32 %v370, %v23
    %v375 = vadd.f32 %v371, %v24
    %v376 = vadd.f32 %v372, %v25
    %v377 = vadd.f32 %v373, %v26
    %v378 = vsel %vm103, %v374, -inf
    %379 = vmax.xlane.f32.xlu0 %v378
    %v380 = vpop.xlane.xlu0 %379
    %v381 = vsel %vm103, %v375, -inf
    %382 = vmax.xlane.f32.xlu0 %v381
    %v383 = vpop.xlane.xlu0 %382
    %v384 = vsel %vm103, %v376, -inf
    %385 = vmax.xlane.f32.xlu0 %v384
    %v386 = vpop.xlane.xlu0 %385
    %v387 = vsel %vm103, %v377, -inf
    %388 = vmax.xlane.f32.xlu0 %v387
    %v389 = vpop.xlane.xlu0 %388
    %v390 = vsub.f32 %v374, %v380
    %v391 = vsub.f32 %v375, %v383
    %v392 = vsub.f32 %v376, %v386
    %v393 = vsub.f32 %v377, %v389
    %v394 = vmul.f32 %v390, 1.442695
    %v395 = vpow.pop %v394
    %v396 = vmul.f32 %v391, 1.442695
    %v397 = vpow.pop %v396
    %v398 = vmul.f32 %v392, 1.442695
    %v399 = vpow.pop %v398
    %v400 = vmul.f32 %v393, 1.442695
    %v401 = vpow.pop %v400
    %v402 = vsel %vm103, %v395, 0.0
    %403 = vadd.xlane.f32.xlu0 %v402
    %v404 = vpop.xlane.xlu0 %403
    %v405 = vsel %vm103, %v397, 0.0
    %406 = vadd.xlane.f32.xlu0 %v405
    %v407 = vpop.xlane.xlu0 %406
    %v408 = vsel %vm103, %v399, 0.0
    %409 = vadd.xlane.f32.xlu0 %v408
    %v410 = vpop.xlane.xlu0 %409
    %v411 = vsel %vm103, %v401, 0.0
    %412 = vadd.xlane.f32.xlu0 %v411
    %v413 = vpop.xlane.xlu0 %412
    %v414 = vrcp.pop %v404
    %v415 = vrcp.pop %v407
    %v416 = vrcp.pop %v410
    %v417 = vrcp.pop %v413
    %v418 = vmul.f32 %v395, %v414
    %v419 = vmul.f32 %v397, %v415
    %v420 = vmul.f32 %v399, %v416
    %v421 = vmul.f32 %v401, %v417
    %v423 = vsel %vm103, %v418, 0
    %v426 = vsel %vm103, %v419, 0
    %v429 = vsel %vm103, %v420, 0
    %v432 = vsel %vm103, %v421, 0
    %434 = vmatpush.msra.mxu0 0.0
    %435 = vmatpush.msra.mxu0 0.0
    %436 = vmatpush.msra.mxu0 0.0
    %437 = vmatpush.msra.mxu0 0.0
    %438 = vmatpush.msra.mxu0 0.0
    %439 = vmatpush.msra.mxu0 0.0
    %440 = vmatpush.msra.mxu0 0.0
    %441 = vmatpush.msra.mxu0 0.0
    %442 = vmatpush.msra.mxu0 0.0
    %443 = vmatpush.msra.mxu0 0.0
    %444 = vmatpush.msra.mxu0 0.0
    %445 = vmatpush.msra.mxu0 0.0
    %446 = vmatpush.msra.mxu0 %v328
    %447 = vmatpush.msra.mxu0 %v327
    %448 = vmatpush.msra.mxu0 %v326
    %449 = vmatpush.msra.mxu0 %v325
    %450 = vmatmul.f32.gmra.mxu0 %v423
    %v451 = vpop.f32.mrf.mxu0
    %v452 = vadd.f32 0.0, %v451
    %453 = vmatmul.f32.gmra.mxu0 %v426
    %v454 = vpop.f32.mrf.mxu0
    %v455 = vadd.f32 0.0, %v454
    %456 = vmatmul.f32.gmra.mxu0 %v429
    %v457 = vpop.f32.mrf.mxu0
    %v458 = vadd.f32 0.0, %v457
    %459 = vmatmul.f32.gmra.mxu0 %v432
    %v460 = vpop.f32.mrf.mxu0
    %v461 = vadd.f32 0.0, %v460
    %462 = vdwg.mxu0
    %v464 = vsel %vm103, %v272, 0
    %v467 = vsel %vm103, %v275, 0
    %v470 = vsel %vm103, %v278, 0
    %v473 = vsel %vm103, %v281, 0
    %475 = vmatpush.msra.mxu0 0.0
    %476 = vmatpush.msra.mxu0 0.0
    %477 = vmatpush.msra.mxu0 0.0
    %478 = vmatpush.msra.mxu0 0.0
    %479 = vmatpush.msra.mxu0 0.0
    %480 = vmatpush.msra.mxu0 0.0
    %481 = vmatpush.msra.mxu0 0.0
    %482 = vmatpush.msra.mxu0 0.0
    %483 = vmatpush.msra.mxu0 0.0
    %484 = vmatpush.msra.mxu0 0.0
    %485 = vmatpush.msra.mxu0 0.0
    %486 = vmatpush.msra.mxu0 0.0
    %487 = vmatpush.msra.mxu0 %v42
    %488 = vmatpush.msra.mxu0 %v41
    %489 = vmatpush.msra.mxu0 %v40
    %490 = vmatpush.msra.mxu0 %v39
    %491 = vmatmul.f32.gmra.mxu0 %v464
    %v492 = vpop.f32.mrf.mxu0
    %v493 = vadd.f32 0.0, %v492
    %494 = vmatmul.f32.gmra.mxu0 %v467
    %v495 = vpop.f32.mrf.mxu0
    %v496 = vadd.f32 0.0, %v495
    %497 = vmatmul.f32.gmra.mxu0 %v470
    %v498 = vpop.f32.mrf.mxu0
    %v499 = vadd.f32 0.0, %v498
    %500 = vmatmul.f32.gmra.mxu0 %v473
    %v501 = vpop.f32.mrf.mxu0
    %v502 = vadd.f32 0.0, %v501
    %503 = vdwg.mxu0
    %v505 = vsel %vm103, %v452, 0
    %v508 = vsel %vm103, %v455, 0
    %v511 = vsel %vm103, %v458, 0
    %v514 = vsel %vm103, %v461, 0
    %516 = vmatpush.msra.mxu0 0.0
    %517 = vmatpush.msra.mxu0 0.0
    %518 = vmatpush.msra.mxu0 0.0
    %519 = vmatpush.msra.mxu0 0.0
    %520 = vmatpush.msra.mxu0 0.0
    %521 = vmatpush.msra.mxu0 0.0
    %522 = vmatpush.msra.mxu0 0.0
    %523 = vmatpush.msra.mxu0 0.0
    %524 = vmatpush.msra.mxu0 0.0
    %525 = vmatpush.msra.mxu0 0.0
    %526 = vmatpush.msra.mxu0 0.0
    %527 = vmatpush.msra.mxu0 0.0
    %528 = vmatpush.msra.mxu0 %v38
    %529 = vmatpush.msra.mxu0 %v37
    %530 = vmatpush.msra.mxu0 %v36
    %531 = vmatpush.msra.mxu0 %v35
    %532 = vmatmul.f32.gmra.mxu0 %v505
    %v533 = vpop.f32.mrf.mxu0
    %v534 = vadd.f32 %v493, %v533
    %535 = vmatmul.f32.gmra.mxu0 %v508
    %v536 = vpop.f32.mrf.mxu0
    %v537 = vadd.f32 %v496, %v536
    %538 = vmatmul.f32.gmra.mxu0 %v511
    %v539 = vpop.f32.mrf.mxu0
    %v540 = vadd.f32 %v499, %v539
    %541 = vmatmul.f32.gmra.mxu0 %v514
    %v542 = vpop.f32.mrf.mxu0
    %v543 = vadd.f32 %v502, %v542
    %544 = vdwg.mxu0
    %v545 = vperm.slane %v47, 0
    %v546 = vadd.f32 %v534, %v545
    %v547 = vadd.f32 %v537, %v545
    %v548 = vadd.f32 %v540, %v545
    %v549 = vadd.f32 %v543, %v545
    %v550 = vmax.f32 %v546, 0.0
    %v551 = vmax.f32 %v547, 0.0
    %v552 = vmax.f32 %v548, 0.0
    %v553 = vmax.f32 %v549, 0.0
    %v555 = vsel %vm103, %v43, 0
    %v558 = vsel %vm103, %v44, 0
    %v561 = vsel %vm103, %v550, 0
    %v564 = vsel %vm103, %v551, 0
    %566 = vmatpush.xpose.msra.mxu0 0.0
    %567 = vmatpush.xpose.msra.mxu0 0.0
    %568 = vmatpush.xpose.msra.mxu0 0.0
    %569 = vmatpush.xpose.msra.mxu0 0.0
    %570 = vmatpush.xpose.msra.mxu0 0.0
    %571 = vmatpush.xpose.msra.mxu0 0.0
    %572 = vmatpush.xpose.msra.mxu0 0.0
    %573 = vmatpush.xpose.msra.mxu0 0.0
    %574 = vmatpush.xpose.msra.mxu0 0.0
    %575 = vmatpush.xpose.msra.mxu0 0.0
    %576 = vmatpush.xpose.msra.mxu0 0.0
    %577 = vmatpush.xpose.msra.mxu0 0.0
    %578 = vmatpush.xpose.msra.mxu0 0.0
    %579 = vmatpush.xpose.msra.mxu0 0.0
    %580 = vmatpush.xpose.msra.mxu0 %v564
    %581 = vmatpush.xpose.msra.mxu0 %v561
    %582 = vmatmul.f32.gmra.mxu0 %v555
    %v583 = vpop.f32.mrf.mxu0
    %v584 = vadd.f32 0.0, %v583
    %585 = vmatmul.f32.gmra.mxu0 %v558
    %v586 = vpop.f32.mrf.mxu0
    %v587 = vadd.f32 0.0, %v586
    %588 = vdwg.mxu0
    %v589 = vsel %vm56, %v584, -inf
    %590 = vmax.xlane.f32.xlu0 %v589
    %v591 = vpop.xlane.xlu0 %590
    %v592 = vsel %vm56, %v587, -inf
    %593 = vmax.xlane.f32.xlu0 %v592
    %v594 = vpop.xlane.xlu0 %593
    %v595 = vsub.f32 %v584, %v591
    %v596 = vsub.f32 %v587, %v594
    %v597 = vmul.f32 %v595, 10.0
    %v598 = vmul.f32 %v596, 10.0
    %v599 = vmul.f32 %v597, 1.442695
    %v600 = vpow.pop %v599
    %v601 = vmul.f32 %v598, 1.442695
    %v602 = vpow.pop %v601
    %v604 = vsel %vm103, %v552, 0
    %v607 = vsel %vm103, %v553, 0
    %609 = vmatpush.xpose.msra.mxu0 0.0
    %610 = vmatpush.xpose.msra.mxu0 0.0
    %611 = vmatpush.xpose.msra.mxu0 0.0
    %612 = vmatpush.xpose.msra.mxu0 0.0
    %613 = vmatpush.xpose.msra.mxu0 0.0
    %614 = vmatpush.xpose.msra.mxu0 0.0
    %615 = vmatpush.xpose.msra.mxu0 0.0
    %616 = vmatpush.xpose.msra.mxu0 0.0
    %617 = vmatpush.xpose.msra.mxu0 0.0
    %618 = vmatpush.xpose.msra.mxu0 0.0
    %619 = vmatpush.xpose.msra.mxu0 0.0
    %620 = vmatpush.xpose.msra.mxu0 0.0
    %621 = vmatpush.xpose.msra.mxu0 0.0
    %622 = vmatpush.xpose.msra.mxu0 0.0
    %623 = vmatpush.xpose.msra.mxu0 %v607
    %624 = vmatpush.xpose.msra.mxu0 %v604
    %625 = vmatmul.f32.gmra.mxu0 %v555
    %v626 = vpop.f32.mrf.mxu0
    %v627 = vadd.f32 0.0, %v626
    %628 = vmatmul.f32.gmra.mxu0 %v558
    %v629 = vpop.f32.mrf.mxu0
    %v630 = vadd.f32 0.0, %v629
    %631 = vdwg.mxu0
    %v632 = vsel %vm56, %v627, -inf
    %633 = vmax.xlane.f32.xlu0 %v632
    %v634 = vpop.xlane.xlu0 %633
    %v635 = vsel %vm56, %v630, -inf
    %636 = vmax.xlane.f32.xlu0 %v635
    %v637 = vpop.xlane.xlu0 %636
    %v638 = vsub.f32 %v627, %v634
    %v639 = vsub.f32 %v630, %v637
    %v640 = vmul.f32 %v638, 10.0
    %v641 = vmul.f32 %v639, 10.0
    %v642 = vmul.f32 %v640, 1.442695
    %v643 = vpow.pop %v642
    %v644 = vmul.f32 %v641, 1.442695
    %v645 = vpow.pop %v644
    %v646 = vsel %vm56, %v600, 0.0
    %647 = vadd.xlane.f32.xlu0 %v646
    %v648 = vpop.xlane.xlu0 %647
    %v649 = vsel %vm56, %v602, 0.0
    %650 = vadd.xlane.f32.xlu0 %v649
    %v651 = vpop.xlane.xlu0 %650
    %v652 = vsel %vm56, %v643, 0.0
    %653 = vadd.xlane.f32.xlu0 %v652
    %v654 = vpop.xlane.xlu0 %653
    %v655 = vsel %vm56, %v645, 0.0
    %656 = vadd.xlane.f32.xlu0 %v655
    %v657 = vpop.xlane.xlu0 %656
    %v658 = vrcp.pop %v648
    %v659 = vrcp.pop %v651
    %v660 = vrcp.pop %v654
    %v661 = vrcp.pop %v657
    %v662 = vmul.f32 %v600, %v658
    %v663 = vmul.f32 %v602, %v659
    %v664 = vmul.f32 %v643, %v660
    %v665 = vmul.f32 %v645, %v661
    %v666 = vsel %vm56, %v662, 0.0
    %v667 = vsel %vm56, %v663, 0.0
    %v668 = vadd.f32 %v666, %v667
    %v669 = vrot.slane %v668, 4
    %v670 = vadd.f32 %v668, %v669
    %v671 = vrot.slane %v670, 2
    %v672 = vadd.f32 %v670, %v671
    %v673 = vrot.slane %v672, 1
    %v674 = vadd.f32 %v672, %v673
    %v675 = vsel %vm56, %v664, 0.0
    %v676 = vsel %vm56, %v665, 0.0
    %v677 = vadd.f32 %v675, %v676
    %v678 = vrot.slane %v677, 4
    %v679 = vadd.f32 %v677, %v678
    %v680 = vrot.slane %v679, 2
    %v681 = vadd.f32 %v679, %v680
    %v682 = vrot.slane %v681, 1
    %v683 = vadd.f32 %v681, %v682
    %v684 = vrcp.pop %v674
    %v685 = vrcp.pop %v683
    %v686 = vmul.f32 %v600, %v684
    %v687 = vmul.f32 %v602, %v684
    %v688 = vmul.f32 %v643, %v685
    %v689 = vmul.f32 %v645, %v685
    %v690 = vsel %vm56, %v686, 0.0
    %691 = vadd.xlane.f32.xlu0 %v690
    %v692 = vpop.xlane.xlu0 %691
    %v693 = vsel %vm56, %v687, 0.0
    %694 = vadd.xlane.f32.xlu0 %v693
    %v695 = vpop.xlane.xlu0 %694
    %v696 = vsel %vm56, %v688, 0.0
    %697 = vadd.xlane.f32.xlu0 %v696
    %v698 = vpop.xlane.xlu0 %697
    %v699 = vsel %vm56, %v689, 0.0
    %700 = vadd.xlane.f32.xlu0 %v699
    %v701 = vpop.xlane.xlu0 %700
    %v702 = vrcp.pop %v692
    %v703 = vrcp.pop %v695
    %v704 = vrcp.pop %v698
    %v705 = vrcp.pop %v701
    %v706 = vmul.f32 %v600, %v702
    %v707 = vmul.f32 %v602, %v703
    %v708 = vmul.f32 %v643, %v704
    %v709 = vmul.f32 %v645, %v705
    %v710 = vsel %vm56, %v706, 0.0
    %v711 = vsel %vm56, %v707, 0.0
    %v712 = vadd.f32 %v710, %v711
    %v713 = vrot.slane %v712, 4
    %v714 = vadd.f32 %v712, %v713
    %v715 = vrot.slane %v714, 2
    %v716 = vadd.f32 %v714, %v715
    %v717 = vrot.slane %v716, 1
    %v718 = vadd.f32 %v716, %v717
    %v719 = vsel %vm56, %v708, 0.0
    %v720 = vsel %vm56, %v709, 0.0
    %v721 = vadd.f32 %v719, %v720
    %v722 = vrot.slane %v721, 4
    %v723 = vadd.f32 %v721, %v722
    %v724 = vrot.slane %v723, 2
    %v725 = vadd.f32 %v723, %v724
    %v726 = vrot.slane %v725, 1
    %v727 = vadd.f32 %v725, %v726
    %v728 = vrcp.pop %v718
    %v729 = vrcp.pop %v727
    %v730 = vmul.f32 %v600, %v728
    %v731 = vmul.f32 %v602, %v728
    %v732 = vmul.f32 %v643, %v729
    %v733 = vmul.f32 %v645, %v729
    %v734 = vsel %vm56, %v730, 0.0
    %735 = vadd.xlane.f32.xlu0 %v734
    %v736 = vpop.xlane.xlu0 %735
    %v737 = vsel %vm56, %v731, 0.0
    %738 = vadd.xlane.f32.xlu0 %v737
    %v739 = vpop.xlane.xlu0 %738
    %v740 = vsel %vm56, %v732, 0.0
    %741 = vadd.xlane.f32.xlu0 %v740
    %v742 = vpop.xlane.xlu0 %741
    %v743 = vsel %vm56, %v733, 0.0
    %744 = vadd.xlane.f32.xlu0 %v743
    %v745 = vpop.xlane.xlu0 %744
    %v746 = vrcp.pop %v736
    %v747 = vrcp.pop %v739
    %v748 = vrcp.pop %v742
    %v749 = vrcp.pop %v745
    %v750 = vmul.f32 %v600, %v746
    %v751 = vmul.f32 %v602, %v747
    %v752 = vmul.f32 %v643, %v748
    %v753 = vmul.f32 %v645, %v749
    %v754 = vsel %vm56, %v750, 0.0
    %v755 = vsel %vm56, %v751, 0.0
    %v756 = vadd.f32 %v754, %v755
    %v757 = vrot.slane %v756, 4
    %v758 = vadd.f32 %v756, %v757
    %v759 = vrot.slane %v758, 2
    %v760 = vadd.f32 %v758, %v759
    %v761 = vrot.slane %v760, 1
    %v762 = vadd.f32 %v760, %v761
    %v763 = vsel %vm56, %v752, 0.0
    %v764 = vsel %vm56, %v753, 0.0
    %v765 = vadd.f32 %v763, %v764
    %v766 = vrot.slane %v765, 4
    %v767 = vadd.f32 %v765, %v766
    %v768 = vrot.slane %v767, 2
    %v769 = vadd.f32 %v767, %v768
    %v770 = vrot.slane %v769, 1
    %v771 = vadd.f32 %v769, %v770
    %v772 = vrcp.pop %v762
    %v773 = vrcp.pop %v771
    %v774 = vmul.f32 %v600, %v772
    %v775 = vmul.f32 %v602, %v772
    %v776 = vmul.f32 %v643, %v773
    %v777 = vmul.f32 %v645, %v773
    %v778 = vsel %vm56, %v774, 0.0
    %779 = vadd.xlane.f32.xlu0 %v778
    %v780 = vpop.xlane.xlu0 %779
    %v781 = vsel %vm56, %v775, 0.0
    %782 = vadd.xlane.f32.xlu0 %v781
    %v783 = vpop.xlane.xlu0 %782
    %v784 = vsel %vm56, %v776, 0.0
    %785 = vadd.xlane.f32.xlu0 %v784
    %v786 = vpop.xlane.xlu0 %785
    %v787 = vsel %vm56, %v777, 0.0
    %788 = vadd.xlane.f32.xlu0 %v787
    %v789 = vpop.xlane.xlu0 %788
    %v790 = vrcp.pop %v780
    %v791 = vrcp.pop %v783
    %v792 = vrcp.pop %v786
    %v793 = vrcp.pop %v789
    %v794 = vmul.f32 %v600, %v790
    %v795 = vmul.f32 %v602, %v791
    %v796 = vmul.f32 %v643, %v792
    %v797 = vmul.f32 %v645, %v793
    %v798 = vsel %vm56, %v794, 0.0
    %v799 = vsel %vm56, %v795, 0.0
    %v800 = vadd.f32 %v798, %v799
    %v801 = vrot.slane %v800, 4
    %v802 = vadd.f32 %v800, %v801
    %v803 = vrot.slane %v802, 2
    %v804 = vadd.f32 %v802, %v803
    %v805 = vrot.slane %v804, 1
    %v806 = vadd.f32 %v804, %v805
    %v807 = vsel %vm56, %v796, 0.0
    %v808 = vsel %vm56, %v797, 0.0
    %v809 = vadd.f32 %v807, %v808
    %v810 = vrot.slane %v809, 4
    %v811 = vadd.f32 %v809, %v810
    %v812 = vrot.slane %v811, 2
    %v813 = vadd.f32 %v811, %v812
    %v814 = vrot.slane %v813, 1
    %v815 = vadd.f32 %v813, %v814
    %v816 = vrcp.pop %v806
    %v817 = vrcp.pop %v815
    %v818 = vmul.f32 %v600, %v816
    %v819 = vmul.f32 %v602, %v816
    %v820 = vmul.f32 %v643, %v817
    %v821 = vmul.f32 %v645, %v817
    %v822 = vsel %vm56, %v818, 0.0
    %823 = vadd.xlane.f32.xlu0 %v822
    %v824 = vpop.xlane.xlu0 %823
    %v825 = vsel %vm56, %v819, 0.0
    %826 = vadd.xlane.f32.xlu0 %v825
    %v827 = vpop.xlane.xlu0 %826
    %v828 = vsel %vm56, %v820, 0.0
    %829 = vadd.xlane.f32.xlu0 %v828
    %v830 = vpop.xlane.xlu0 %829
    %v831 = vsel %vm56, %v821, 0.0
    %832 = vadd.xlane.f32.xlu0 %v831
    %v833 = vpop.xlane.xlu0 %832
    %v834 = vrcp.pop %v824
    %v835 = vrcp.pop %v827
    %v836 = vrcp.pop %v830
    %v837 = vrcp.pop %v833
    %v838 = vmul.f32 %v600, %v834
    %v839 = vmul.f32 %v602, %v835
    %v840 = vmul.f32 %v643, %v836
    %v841 = vmul.f32 %v645, %v837
    %v842 = vsel %vm56, %v838, 0.0
    %v843 = vsel %vm56, %v839, 0.0
    %v844 = vadd.f32 %v842, %v843
    %v845 = vrot.slane %v844, 4
    %v846 = vadd.f32 %v844, %v845
    %v847 = vrot.slane %v846, 2
    %v848 = vadd.f32 %v846, %v847
    %v849 = vrot.slane %v848, 1
    %v850 = vadd.f32 %v848, %v849
    %v851 = vsel %vm56, %v840, 0.0
    %v852 = vsel %vm56, %v841, 0.0
    %v853 = vadd.f32 %v851, %v852
    %v854 = vrot.slane %v853, 4
    %v855 = vadd.f32 %v853, %v854
    %v856 = vrot.slane %v855, 2
    %v857 = vadd.f32 %v855, %v856
    %v858 = vrot.slane %v857, 1
    %v859 = vadd.f32 %v857, %v858
    %v860 = vrcp.pop %v850
    %v861 = vrcp.pop %v859
    %v862 = vmul.f32 %v600, %v860
    %v863 = vmul.f32 %v602, %v860
    %v864 = vmul.f32 %v643, %v861
    %v865 = vmul.f32 %v645, %v861
    %v866 = vsel %vm56, %v862, 0.0
    %867 = vadd.xlane.f32.xlu0 %v866
    %v868 = vpop.xlane.xlu0 %867
    %v869 = vsel %vm56, %v863, 0.0
    %870 = vadd.xlane.f32.xlu0 %v869
    %v871 = vpop.xlane.xlu0 %870
    %v872 = vsel %vm56, %v864, 0.0
    %873 = vadd.xlane.f32.xlu0 %v872
    %v874 = vpop.xlane.xlu0 %873
    %v875 = vsel %vm56, %v865, 0.0
    %876 = vadd.xlane.f32.xlu0 %v875
    %v877 = vpop.xlane.xlu0 %876
    %v878 = vrcp.pop %v868
    %v879 = vrcp.pop %v871
    %v880 = vrcp.pop %v874
    %v881 = vrcp.pop %v877
    %v882 = vmul.f32 %v600, %v878
    %v883 = vmul.f32 %v602, %v879
    %v884 = vmul.f32 %v643, %v880
    %v885 = vmul.f32 %v645, %v881
    %v886 = vsel %vm56, %v882, 0.0
    %v887 = vsel %vm56, %v883, 0.0
    %v888 = vadd.f32 %v886, %v887
    %v889 = vrot.slane %v888, 4
    %v890 = vadd.f32 %v888, %v889
    %v891 = vrot.slane %v890, 2
    %v892 = vadd.f32 %v890, %v891
    %v893 = vrot.slane %v892, 1
    %v894 = vadd.f32 %v892, %v893
    %v895 = vsel %vm56, %v884, 0.0
    %v896 = vsel %vm56, %v885, 0.0
    %v897 = vadd.f32 %v895, %v896
    %v898 = vrot.slane %v897, 4
    %v899 = vadd.f32 %v897, %v898
    %v900 = vrot.slane %v899, 2
    %v901 = vadd.f32 %v899, %v900
    %v902 = vrot.slane %v901, 1
    %v903 = vadd.f32 %v901, %v902
    %v904 = vrcp.pop %v894
    %v905 = vrcp.pop %v903
    %v906 = vmul.f32 %v600, %v904
    %v907 = vmul.f32 %v602, %v904
    %v908 = vmul.f32 %v643, %v905
    %v909 = vmul.f32 %v645, %v905
    %v910 = vsel %vm56, %v906, 0.0
    %911 = vadd.xlane.f32.xlu0 %v910
    %v912 = vpop.xlane.xlu0 %911
    %v913 = vsel %vm56, %v907, 0.0
    %914 = vadd.xlane.f32.xlu0 %v913
    %v915 = vpop.xlane.xlu0 %914
    %v916 = vsel %vm56, %v908, 0.0
    %917 = vadd.xlane.f32.xlu0 %v916
    %v918 = vpop.xlane.xlu0 %917
    %v919 = vsel %vm56, %v909, 0.0
    %920 = vadd.xlane.f32.xlu0 %v919
    %v921 = vpop.xlane.xlu0 %920
    %v922 = vrcp.pop %v912
    %v923 = vrcp.pop %v915
    %v924 = vrcp.pop %v918
    %v925 = vrcp.pop %v921
    %v926 = vmul.f32 %v600, %v922
    %v927 = vmul.f32 %v602, %v923
    %v928 = vmul.f32 %v643, %v924
    %v929 = vmul.f32 %v645, %v925
    %v930 = vsel %vm56, %v926, 0.0
    %v931 = vsel %vm56, %v927, 0.0
    %v932 = vadd.f32 %v930, %v931
    %v933 = vrot.slane %v932, 4
    %v934 = vadd.f32 %v932, %v933
    %v935 = vrot.slane %v934, 2
    %v936 = vadd.f32 %v934, %v935
    %v937 = vrot.slane %v936, 1
    %v938 = vadd.f32 %v936, %v937
    %v939 = vsel %vm56, %v928, 0.0
    %v940 = vsel %vm56, %v929, 0.0
    %v941 = vadd.f32 %v939, %v940
    %v942 = vrot.slane %v941, 4
    %v943 = vadd.f32 %v941, %v942
    %v944 = vrot.slane %v943, 2
    %v945 = vadd.f32 %v943, %v944
    %v946 = vrot.slane %v945, 1
    %v947 = vadd.f32 %v945, %v946
    %v948 = vrcp.pop %v938
    %v949 = vrcp.pop %v947
    %v950 = vmul.f32 %v600, %v948
    %v951 = vmul.f32 %v602, %v948
    %v952 = vmul.f32 %v643, %v949
    %v953 = vmul.f32 %v645, %v949
    %v954 = vsel %vm56, %v950, 0.0
    %955 = vadd.xlane.f32.xlu0 %v954
    %v956 = vpop.xlane.xlu0 %955
    %v957 = vsel %vm56, %v951, 0.0
    %958 = vadd.xlane.f32.xlu0 %v957
    %v959 = vpop.xlane.xlu0 %958
    %v960 = vsel %vm56, %v952, 0.0
    %961 = vadd.xlane.f32.xlu0 %v960
    %v962 = vpop.xlane.xlu0 %961
    %v963 = vsel %vm56, %v953, 0.0
    %964 = vadd.xlane.f32.xlu0 %v963
    %v965 = vpop.xlane.xlu0 %964
    %v966 = vrcp.pop %v956
    %v967 = vrcp.pop %v959
    %v968 = vrcp.pop %v962
    %v969 = vrcp.pop %v965
    %v970 = vmul.f32 %v600, %v966
    %v971 = vmul.f32 %v602, %v967
    %v972 = vmul.f32 %v643, %v968
    %v973 = vmul.f32 %v645, %v969
    %v974 = vsel %vm56, %v970, 0.0
    %v975 = vsel %vm56, %v971, 0.0
    %v976 = vadd.f32 %v974, %v975
    %v977 = vrot.slane %v976, 4
    %v978 = vadd.f32 %v976, %v977
    %v979 = vrot.slane %v978, 2
    %v980 = vadd.f32 %v978, %v979
    %v981 = vrot.slane %v980, 1
    %v982 = vadd.f32 %v980, %v981
    %v983 = vsel %vm56, %v972, 0.0
    %v984 = vsel %vm56, %v973, 0.0
    %v985 = vadd.f32 %v983, %v984
    %v986 = vrot.slane %v985, 4
    %v987 = vadd.f32 %v985, %v986
    %v988 = vrot.slane %v987, 2
    %v989 = vadd.f32 %v987, %v988
    %v990 = vrot.slane %v989, 1
    %v991 = vadd.f32 %v989, %v990
    %v992 = vrcp.pop %v982
    %v993 = vrcp.pop %v991
    %v994 = vmul.f32 %v600, %v992
    %v995 = vmul.f32 %v602, %v992
    %v996 = vmul.f32 %v643, %v993
    %v997 = vmul.f32 %v645, %v993
    %v998 = vsel %vm56, %v994, 0.0
    %999 = vadd.xlane.f32.xlu0 %v998
    %v1000 = vpop.xlane.xlu0 %999
    %v1001 = vsel %vm56, %v995, 0.0
    %1002 = vadd.xlane.f32.xlu0 %v1001
    %v1003 = vpop.xlane.xlu0 %1002
    %v1004 = vsel %vm56, %v996, 0.0
    %1005 = vadd.xlane.f32.xlu0 %v1004
    %v1006 = vpop.xlane.xlu0 %1005
    %v1007 = vsel %vm56, %v997, 0.0
    %1008 = vadd.xlane.f32.xlu0 %v1007
    %v1009 = vpop.xlane.xlu0 %1008
    %v1010 = vrcp.pop %v1000
    %v1011 = vrcp.pop %v1003
    %v1012 = vrcp.pop %v1006
    %v1013 = vrcp.pop %v1009
    %v1014 = vmul.f32 %v600, %v1010
    %v1015 = vmul.f32 %v602, %v1011
    %v1016 = vmul.f32 %v643, %v1012
    %v1017 = vmul.f32 %v645, %v1013
    %v1018 = vsel %vm56, %v1014, 0.0
    %v1019 = vsel %vm56, %v1015, 0.0
    %v1020 = vadd.f32 %v1018, %v1019
    %v1021 = vrot.slane %v1020, 4
    %v1022 = vadd.f32 %v1020, %v1021
    %v1023 = vrot.slane %v1022, 2
    %v1024 = vadd.f32 %v1022, %v1023
    %v1025 = vrot.slane %v1024, 1
    %v1026 = vadd.f32 %v1024, %v1025
    %v1027 = vsel %vm56, %v1016, 0.0
    %v1028 = vsel %vm56, %v1017, 0.0
    %v1029 = vadd.f32 %v1027, %v1028
    %v1030 = vrot.slane %v1029, 4
    %v1031 = vadd.f32 %v1029, %v1030
    %v1032 = vrot.slane %v1031, 2
    %v1033 = vadd.f32 %v1031, %v1032
    %v1034 = vrot.slane %v1033, 1
    %v1035 = vadd.f32 %v1033, %v1034
    %v1036 = vrcp.pop %v1026
    %v1037 = vrcp.pop %v1035
    %v1038 = vmul.f32 %v600, %v1036
    %v1039 = vmul.f32 %v602, %v1036
    %v1040 = vmul.f32 %v643, %v1037
    %v1041 = vmul.f32 %v645, %v1037
    %v1042 = vsel %vm56, %v1038, 0.0
    %1043 = vadd.xlane.f32.xlu0 %v1042
    %v1044 = vpop.xlane.xlu0 %1043
    %v1045 = vsel %vm56, %v1039, 0.0
    %1046 = vadd.xlane.f32.xlu0 %v1045
    %v1047 = vpop.xlane.xlu0 %1046
    %v1048 = vsel %vm56, %v1040, 0.0
    %1049 = vadd.xlane.f32.xlu0 %v1048
    %v1050 = vpop.xlane.xlu0 %1049
    %v1051 = vsel %vm56, %v1041, 0.0
    %1052 = vadd.xlane.f32.xlu0 %v1051
    %v1053 = vpop.xlane.xlu0 %1052
    %v1054 = vrcp.pop %v1044
    %v1055 = vrcp.pop %v1047
    %v1056 = vrcp.pop %v1050
    %v1057 = vrcp.pop %v1053
    %v1058 = vmul.f32 %v600, %v1054
    %v1059 = vmul.f32 %v602, %v1055
    %v1060 = vmul.f32 %v643, %v1056
    %v1061 = vmul.f32 %v645, %v1057
    %v1062 = vsel %vm56, %v1058, 0.0
    %v1063 = vsel %vm56, %v1059, 0.0
    %v1064 = vadd.f32 %v1062, %v1063
    %v1065 = vrot.slane %v1064, 4
    %v1066 = vadd.f32 %v1064, %v1065
    %v1067 = vrot.slane %v1066, 2
    %v1068 = vadd.f32 %v1066, %v1067
    %v1069 = vrot.slane %v1068, 1
    %v1070 = vadd.f32 %v1068, %v1069
    %v1071 = vsel %vm56, %v1060, 0.0
    %v1072 = vsel %vm56, %v1061, 0.0
    %v1073 = vadd.f32 %v1071, %v1072
    %v1074 = vrot.slane %v1073, 4
    %v1075 = vadd.f32 %v1073, %v1074
    %v1076 = vrot.slane %v1075, 2
    %v1077 = vadd.f32 %v1075, %v1076
    %v1078 = vrot.slane %v1077, 1
    %v1079 = vadd.f32 %v1077, %v1078
    %v1080 = vrcp.pop %v1070
    %v1081 = vrcp.pop %v1079
    %v1082 = vmul.f32 %v600, %v1080
    %v1083 = vmul.f32 %v602, %v1080
    %v1084 = vmul.f32 %v643, %v1081
    %v1085 = vmul.f32 %v645, %v1081
    %v1086 = vsel %vm56, %v1082, 0.0
    %1087 = vadd.xlane.f32.xlu0 %v1086
    %v1088 = vpop.xlane.xlu0 %1087
    %v1089 = vsel %vm56, %v1083, 0.0
    %1090 = vadd.xlane.f32.xlu0 %v1089
    %v1091 = vpop.xlane.xlu0 %1090
    %v1092 = vsel %vm56, %v1084, 0.0
    %1093 = vadd.xlane.f32.xlu0 %v1092
    %v1094 = vpop.xlane.xlu0 %1093
    %v1095 = vsel %vm56, %v1085, 0.0
    %1096 = vadd.xlane.f32.xlu0 %v1095
    %v1097 = vpop.xlane.xlu0 %1096
    %v1098 = vrcp.pop %v1088
    %v1099 = vrcp.pop %v1091
    %v1100 = vrcp.pop %v1094
    %v1101 = vrcp.pop %v1097
    %v1102 = vmul.f32 %v600, %v1098
    %v1103 = vmul.f32 %v602, %v1099
    %v1104 = vmul.f32 %v643, %v1100
    %v1105 = vmul.f32 %v645, %v1101
    %v1106 = vsel %vm56, %v1102, 0.0
    %v1107 = vsel %vm56, %v1103, 0.0
    %v1108 = vadd.f32 %v1106, %v1107
    %v1109 = vrot.slane %v1108, 4
    %v1110 = vadd.f32 %v1108, %v1109
    %v1111 = vrot.slane %v1110, 2
    %v1112 = vadd.f32 %v1110, %v1111
    %v1113 = vrot.slane %v1112, 1
    %v1114 = vadd.f32 %v1112, %v1113
    %v1115 = vsel %vm56, %v1104, 0.0
    %v1116 = vsel %vm56, %v1105, 0.0
    %v1117 = vadd.f32 %v1115, %v1116
    %v1118 = vrot.slane %v1117, 4
    %v1119 = vadd.f32 %v1117, %v1118
    %v1120 = vrot.slane %v1119, 2
    %v1121 = vadd.f32 %v1119, %v1120
    %v1122 = vrot.slane %v1121, 1
    %v1123 = vadd.f32 %v1121, %v1122
    %v1124 = vrcp.pop %v1114
    %v1125 = vrcp.pop %v1123
    %v1126 = vmul.f32 %v600, %v1124
    %v1127 = vmul.f32 %v602, %v1124
    %v1128 = vmul.f32 %v643, %v1125
    %v1129 = vmul.f32 %v645, %v1125
    %v1130 = vsel %vm56, %v1126, 0.0
    %1131 = vadd.xlane.f32.xlu0 %v1130
    %v1132 = vpop.xlane.xlu0 %1131
    %v1133 = vsel %vm56, %v1127, 0.0
    %1134 = vadd.xlane.f32.xlu0 %v1133
    %v1135 = vpop.xlane.xlu0 %1134
    %v1136 = vsel %vm56, %v1128, 0.0
    %1137 = vadd.xlane.f32.xlu0 %v1136
    %v1138 = vpop.xlane.xlu0 %1137
    %v1139 = vsel %vm56, %v1129, 0.0
    %1140 = vadd.xlane.f32.xlu0 %v1139
    %v1141 = vpop.xlane.xlu0 %1140
    %v1142 = vrcp.pop %v1132
    %v1143 = vrcp.pop %v1135
    %v1144 = vrcp.pop %v1138
    %v1145 = vrcp.pop %v1141
    %v1146 = vmul.f32 %v600, %v1142
    %v1147 = vmul.f32 %v602, %v1143
    %v1148 = vmul.f32 %v643, %v1144
    %v1149 = vmul.f32 %v645, %v1145
    %v1150 = vsel %vm56, %v1146, 0.0
    %v1151 = vsel %vm56, %v1147, 0.0
    %v1152 = vadd.f32 %v1150, %v1151
    %v1153 = vrot.slane %v1152, 4
    %v1154 = vadd.f32 %v1152, %v1153
    %v1155 = vrot.slane %v1154, 2
    %v1156 = vadd.f32 %v1154, %v1155
    %v1157 = vrot.slane %v1156, 1
    %v1158 = vadd.f32 %v1156, %v1157
    %v1159 = vsel %vm56, %v1148, 0.0
    %v1160 = vsel %vm56, %v1149, 0.0
    %v1161 = vadd.f32 %v1159, %v1160
    %v1162 = vrot.slane %v1161, 4
    %v1163 = vadd.f32 %v1161, %v1162
    %v1164 = vrot.slane %v1163, 2
    %v1165 = vadd.f32 %v1163, %v1164
    %v1166 = vrot.slane %v1165, 1
    %v1167 = vadd.f32 %v1165, %v1166
    %v1168 = vrcp.pop %v1158
    %v1169 = vrcp.pop %v1167
    %v1170 = vmul.f32 %v600, %v1168
    %v1171 = vmul.f32 %v602, %v1168
    %v1172 = vmul.f32 %v643, %v1169
    %v1173 = vmul.f32 %v645, %v1169
    %v1174 = vsel %vm56, %v1170, 0.0
    %1175 = vadd.xlane.f32.xlu0 %v1174
    %v1176 = vpop.xlane.xlu0 %1175
    %v1177 = vsel %vm56, %v1171, 0.0
    %1178 = vadd.xlane.f32.xlu0 %v1177
    %v1179 = vpop.xlane.xlu0 %1178
    %v1180 = vsel %vm56, %v1172, 0.0
    %1181 = vadd.xlane.f32.xlu0 %v1180
    %v1182 = vpop.xlane.xlu0 %1181
    %v1183 = vsel %vm56, %v1173, 0.0
    %1184 = vadd.xlane.f32.xlu0 %v1183
    %v1185 = vpop.xlane.xlu0 %1184
    %v1186 = vrcp.pop %v1176
    %v1187 = vrcp.pop %v1179
    %v1188 = vrcp.pop %v1182
    %v1189 = vrcp.pop %v1185
    %v1190 = vmul.f32 %v600, %v1186
    %v1191 = vmul.f32 %v602, %v1187
    %v1192 = vmul.f32 %v643, %v1188
    %v1193 = vmul.f32 %v645, %v1189
    %v1194 = vsel %vm56, %v1190, 0.0
    %v1195 = vsel %vm56, %v1191, 0.0
    %v1196 = vadd.f32 %v1194, %v1195
    %v1197 = vrot.slane %v1196, 4
    %v1198 = vadd.f32 %v1196, %v1197
    %v1199 = vrot.slane %v1198, 2
    %v1200 = vadd.f32 %v1198, %v1199
    %v1201 = vrot.slane %v1200, 1
    %v1202 = vadd.f32 %v1200, %v1201
    %v1203 = vsel %vm56, %v1192, 0.0
    %v1204 = vsel %vm56, %v1193, 0.0
    %v1205 = vadd.f32 %v1203, %v1204
    %v1206 = vrot.slane %v1205, 4
    %v1207 = vadd.f32 %v1205, %v1206
    %v1208 = vrot.slane %v1207, 2
    %v1209 = vadd.f32 %v1207, %v1208
    %v1210 = vrot.slane %v1209, 1
    %v1211 = vadd.f32 %v1209, %v1210
    %v1212 = vrcp.pop %v1202
    %v1213 = vrcp.pop %v1211
    %v1214 = vmul.f32 %v600, %v1212
    %v1215 = vmul.f32 %v602, %v1212
    %v1216 = vmul.f32 %v643, %v1213
    %v1217 = vmul.f32 %v645, %v1213
    %v1218 = vsel %vm56, %v1214, 0.0
    %1219 = vadd.xlane.f32.xlu0 %v1218
    %v1220 = vpop.xlane.xlu0 %1219
    %v1221 = vsel %vm56, %v1215, 0.0
    %1222 = vadd.xlane.f32.xlu0 %v1221
    %v1223 = vpop.xlane.xlu0 %1222
    %v1224 = vsel %vm56, %v1216, 0.0
    %1225 = vadd.xlane.f32.xlu0 %v1224
    %v1226 = vpop.xlane.xlu0 %1225
    %v1227 = vsel %vm56, %v1217, 0.0
    %1228 = vadd.xlane.f32.xlu0 %v1227
    %v1229 = vpop.xlane.xlu0 %1228
    %v1230 = vrcp.pop %v1220
    %v1231 = vrcp.pop %v1223
    %v1232 = vrcp.pop %v1226
    %v1233 = vrcp.pop %v1229
    %v1234 = vmul.f32 %v600, %v1230
    %v1235 = vmul.f32 %v602, %v1231
    %v1236 = vmul.f32 %v643, %v1232
    %v1237 = vmul.f32 %v645, %v1233
    %v1238 = vsel %vm56, %v1234, 0.0
    %v1239 = vsel %vm56, %v1235, 0.0
    %v1240 = vadd.f32 %v1238, %v1239
    %v1241 = vrot.slane %v1240, 4
    %v1242 = vadd.f32 %v1240, %v1241
    %v1243 = vrot.slane %v1242, 2
    %v1244 = vadd.f32 %v1242, %v1243
    %v1245 = vrot.slane %v1244, 1
    %v1246 = vadd.f32 %v1244, %v1245
    %v1247 = vsel %vm56, %v1236, 0.0
    %v1248 = vsel %vm56, %v1237, 0.0
    %v1249 = vadd.f32 %v1247, %v1248
    %v1250 = vrot.slane %v1249, 4
    %v1251 = vadd.f32 %v1249, %v1250
    %v1252 = vrot.slane %v1251, 2
    %v1253 = vadd.f32 %v1251, %v1252
    %v1254 = vrot.slane %v1253, 1
    %v1255 = vadd.f32 %v1253, %v1254
    %v1256 = vrcp.pop %v1246
    %v1257 = vrcp.pop %v1255
    %v1258 = vmul.f32 %v600, %v1256
    %v1259 = vmul.f32 %v602, %v1256
    %v1260 = vmul.f32 %v643, %v1257
    %v1261 = vmul.f32 %v645, %v1257
    %v1262 = vsel %vm56, %v1258, 0.0
    %1263 = vadd.xlane.f32.xlu0 %v1262
    %v1264 = vpop.xlane.xlu0 %1263
    %v1265 = vsel %vm56, %v1259, 0.0
    %1266 = vadd.xlane.f32.xlu0 %v1265
    %v1267 = vpop.xlane.xlu0 %1266
    %v1268 = vsel %vm56, %v1260, 0.0
    %1269 = vadd.xlane.f32.xlu0 %v1268
    %v1270 = vpop.xlane.xlu0 %1269
    %v1271 = vsel %vm56, %v1261, 0.0
    %1272 = vadd.xlane.f32.xlu0 %v1271
    %v1273 = vpop.xlane.xlu0 %1272
    %v1274 = vrcp.pop %v1264
    %v1275 = vrcp.pop %v1267
    %v1276 = vrcp.pop %v1270
    %v1277 = vrcp.pop %v1273
    %v1278 = vmul.f32 %v600, %v1274
    %v1279 = vmul.f32 %v602, %v1275
    %v1280 = vmul.f32 %v643, %v1276
    %v1281 = vmul.f32 %v645, %v1277
    %v1282 = vsel %vm56, %v1278, 0.0
    %v1283 = vsel %vm56, %v1279, 0.0
    %v1284 = vadd.f32 %v1282, %v1283
    %v1285 = vrot.slane %v1284, 4
    %v1286 = vadd.f32 %v1284, %v1285
    %v1287 = vrot.slane %v1286, 2
    %v1288 = vadd.f32 %v1286, %v1287
    %v1289 = vrot.slane %v1288, 1
    %v1290 = vadd.f32 %v1288, %v1289
    %v1291 = vsel %vm56, %v1280, 0.0
    %v1292 = vsel %vm56, %v1281, 0.0
    %v1293 = vadd.f32 %v1291, %v1292
    %v1294 = vrot.slane %v1293, 4
    %v1295 = vadd.f32 %v1293, %v1294
    %v1296 = vrot.slane %v1295, 2
    %v1297 = vadd.f32 %v1295, %v1296
    %v1298 = vrot.slane %v1297, 1
    %v1299 = vadd.f32 %v1297, %v1298
    %v1300 = vrcp.pop %v1290
    %v1301 = vrcp.pop %v1299
    %v1302 = vmul.f32 %v600, %v1300
    %v1303 = vmul.f32 %v602, %v1300
    %v1304 = vmul.f32 %v643, %v1301
    %v1305 = vmul.f32 %v645, %v1301
    %v1306 = vsel %vm56, %v1302, 0.0
    %1307 = vadd.xlane.f32.xlu0 %v1306
    %v1308 = vpop.xlane.xlu0 %1307
    %v1309 = vsel %vm56, %v1303, 0.0
    %1310 = vadd.xlane.f32.xlu0 %v1309
    %v1311 = vpop.xlane.xlu0 %1310
    %v1312 = vsel %vm56, %v1304, 0.0
    %1313 = vadd.xlane.f32.xlu0 %v1312
    %v1314 = vpop.xlane.xlu0 %1313
    %v1315 = vsel %vm56, %v1305, 0.0
    %1316 = vadd.xlane.f32.xlu0 %v1315
    %v1317 = vpop.xlane.xlu0 %1316
    %v1318 = vrcp.pop %v1308
    %v1319 = vrcp.pop %v1311
    %v1320 = vrcp.pop %v1314
    %v1321 = vrcp.pop %v1317
    %v1322 = vmul.f32 %v600, %v1318
    %v1323 = vmul.f32 %v602, %v1319
    %v1324 = vmul.f32 %v643, %v1320
    %v1325 = vmul.f32 %v645, %v1321
    %v1326 = vsel %vm56, %v1322, 0.0
    %v1327 = vsel %vm56, %v1323, 0.0
    %v1328 = vadd.f32 %v1326, %v1327
    %v1329 = vrot.slane %v1328, 4
    %v1330 = vadd.f32 %v1328, %v1329
    %v1331 = vrot.slane %v1330, 2
    %v1332 = vadd.f32 %v1330, %v1331
    %v1333 = vrot.slane %v1332, 1
    %v1334 = vadd.f32 %v1332, %v1333
    %v1335 = vsel %vm56, %v1324, 0.0
    %v1336 = vsel %vm56, %v1325, 0.0
    %v1337 = vadd.f32 %v1335, %v1336
    %v1338 = vrot.slane %v1337, 4
    %v1339 = vadd.f32 %v1337, %v1338
    %v1340 = vrot.slane %v1339, 2
    %v1341 = vadd.f32 %v1339, %v1340
    %v1342 = vrot.slane %v1341, 1
    %v1343 = vadd.f32 %v1341, %v1342
    %v1344 = vrcp.pop %v1334
    %v1345 = vrcp.pop %v1343
    %v1346 = vmul.f32 %v600, %v1344
    %v1347 = vmul.f32 %v602, %v1344
    %v1348 = vmul.f32 %v643, %v1345
    %v1349 = vmul.f32 %v645, %v1345
    %v1350 = vsel %vm56, %v1346, 0.0
    %1351 = vadd.xlane.f32.xlu0 %v1350
    %v1352 = vpop.xlane.xlu0 %1351
    %v1353 = vsel %vm56, %v1347, 0.0
    %1354 = vadd.xlane.f32.xlu0 %v1353
    %v1355 = vpop.xlane.xlu0 %1354
    %v1356 = vsel %vm56, %v1348, 0.0
    %1357 = vadd.xlane.f32.xlu0 %v1356
    %v1358 = vpop.xlane.xlu0 %1357
    %v1359 = vsel %vm56, %v1349, 0.0
    %1360 = vadd.xlane.f32.xlu0 %v1359
    %v1361 = vpop.xlane.xlu0 %1360
    %v1362 = vrcp.pop %v1352
    %v1363 = vrcp.pop %v1355
    %v1364 = vrcp.pop %v1358
    %v1365 = vrcp.pop %v1361
    %v1366 = vmul.f32 %v600, %v1362
    %v1367 = vmul.f32 %v602, %v1363
    %v1368 = vmul.f32 %v643, %v1364
    %v1369 = vmul.f32 %v645, %v1365
    %v1370 = vsel %vm56, %v1366, 0.0
    %v1371 = vsel %vm56, %v1367, 0.0
    %v1372 = vadd.f32 %v1370, %v1371
    %v1373 = vrot.slane %v1372, 4
    %v1374 = vadd.f32 %v1372, %v1373
    %v1375 = vrot.slane %v1374, 2
    %v1376 = vadd.f32 %v1374, %v1375
    %v1377 = vrot.slane %v1376, 1
    %v1378 = vadd.f32 %v1376, %v1377
    %v1379 = vsel %vm56, %v1368, 0.0
    %v1380 = vsel %vm56, %v1369, 0.0
    %v1381 = vadd.f32 %v1379, %v1380
    %v1382 = vrot.slane %v1381, 4
    %v1383 = vadd.f32 %v1381, %v1382
    %v1384 = vrot.slane %v1383, 2
    %v1385 = vadd.f32 %v1383, %v1384
    %v1386 = vrot.slane %v1385, 1
    %v1387 = vadd.f32 %v1385, %v1386
    %v1388 = vrcp.pop %v1378
    %v1389 = vrcp.pop %v1387
    %v1390 = vmul.f32 %v600, %v1388
    %v1391 = vmul.f32 %v602, %v1388
    %v1392 = vmul.f32 %v643, %v1389
    %v1393 = vmul.f32 %v645, %v1389
    %v1394 = vsel %vm56, %v1390, 0.0
    %1395 = vadd.xlane.f32.xlu0 %v1394
    %v1396 = vpop.xlane.xlu0 %1395
    %v1397 = vsel %vm56, %v1391, 0.0
    %1398 = vadd.xlane.f32.xlu0 %v1397
    %v1399 = vpop.xlane.xlu0 %1398
    %v1400 = vsel %vm56, %v1392, 0.0
    %1401 = vadd.xlane.f32.xlu0 %v1400
    %v1402 = vpop.xlane.xlu0 %1401
    %v1403 = vsel %vm56, %v1393, 0.0
    %1404 = vadd.xlane.f32.xlu0 %v1403
    %v1405 = vpop.xlane.xlu0 %1404
    %v1406 = vrcp.pop %v1396
    %v1407 = vrcp.pop %v1399
    %v1408 = vrcp.pop %v1402
    %v1409 = vrcp.pop %v1405
    %v1410 = vmul.f32 %v600, %v1406
    %v1411 = vmul.f32 %v602, %v1407
    %v1412 = vmul.f32 %v643, %v1408
    %v1413 = vmul.f32 %v645, %v1409
    %v1414 = vsel %vm56, %v1410, 0.0
    %v1415 = vsel %vm56, %v1411, 0.0
    %v1416 = vadd.f32 %v1414, %v1415
    %v1417 = vrot.slane %v1416, 4
    %v1418 = vadd.f32 %v1416, %v1417
    %v1419 = vrot.slane %v1418, 2
    %v1420 = vadd.f32 %v1418, %v1419
    %v1421 = vrot.slane %v1420, 1
    %v1422 = vadd.f32 %v1420, %v1421
    %v1423 = vsel %vm56, %v1412, 0.0
    %v1424 = vsel %vm56, %v1413, 0.0
    %v1425 = vadd.f32 %v1423, %v1424
    %v1426 = vrot.slane %v1425, 4
    %v1427 = vadd.f32 %v1425, %v1426
    %v1428 = vrot.slane %v1427, 2
    %v1429 = vadd.f32 %v1427, %v1428
    %v1430 = vrot.slane %v1429, 1
    %v1431 = vadd.f32 %v1429, %v1430
    %v1432 = vrcp.pop %v1422
    %v1433 = vrcp.pop %v1431
    %v1434 = vmul.f32 %v600, %v1432
    %v1435 = vmul.f32 %v602, %v1432
    %v1436 = vmul.f32 %v643, %v1433
    %v1437 = vmul.f32 %v645, %v1433
    %v1438 = vsel %vm56, %v1434, 0.0
    %1439 = vadd.xlane.f32.xlu0 %v1438
    %v1440 = vpop.xlane.xlu0 %1439
    %v1441 = vsel %vm56, %v1435, 0.0
    %1442 = vadd.xlane.f32.xlu0 %v1441
    %v1443 = vpop.xlane.xlu0 %1442
    %v1444 = vsel %vm56, %v1436, 0.0
    %1445 = vadd.xlane.f32.xlu0 %v1444
    %v1446 = vpop.xlane.xlu0 %1445
    %v1447 = vsel %vm56, %v1437, 0.0
    %1448 = vadd.xlane.f32.xlu0 %v1447
    %v1449 = vpop.xlane.xlu0 %1448
    %v1450 = vrcp.pop %v1440
    %v1451 = vrcp.pop %v1443
    %v1452 = vrcp.pop %v1446
    %v1453 = vrcp.pop %v1449
    %v1454 = vmul.f32 %v600, %v1450
    %v1455 = vmul.f32 %v602, %v1451
    %v1456 = vmul.f32 %v643, %v1452
    %v1457 = vmul.f32 %v645, %v1453
    %v1458 = vsel %vm56, %v1454, 0.0
    %v1459 = vsel %vm56, %v1455, 0.0
    %v1460 = vadd.f32 %v1458, %v1459
    %v1461 = vrot.slane %v1460, 4
    %v1462 = vadd.f32 %v1460, %v1461
    %v1463 = vrot.slane %v1462, 2
    %v1464 = vadd.f32 %v1462, %v1463
    %v1465 = vrot.slane %v1464, 1
    %v1466 = vadd.f32 %v1464, %v1465
    %v1467 = vsel %vm56, %v1456, 0.0
    %v1468 = vsel %vm56, %v1457, 0.0
    %v1469 = vadd.f32 %v1467, %v1468
    %v1470 = vrot.slane %v1469, 4
    %v1471 = vadd.f32 %v1469, %v1470
    %v1472 = vrot.slane %v1471, 2
    %v1473 = vadd.f32 %v1471, %v1472
    %v1474 = vrot.slane %v1473, 1
    %v1475 = vadd.f32 %v1473, %v1474
    %v1476 = vrcp.pop %v1466
    %v1477 = vrcp.pop %v1475
    %v1478 = vmul.f32 %v600, %v1476
    %v1479 = vmul.f32 %v602, %v1476
    %v1480 = vmul.f32 %v643, %v1477
    %v1481 = vmul.f32 %v645, %v1477
    %v1482 = vsel %vm56, %v1478, 0.0
    %1483 = vadd.xlane.f32.xlu0 %v1482
    %v1484 = vpop.xlane.xlu0 %1483
    %v1485 = vsel %vm56, %v1479, 0.0
    %1486 = vadd.xlane.f32.xlu0 %v1485
    %v1487 = vpop.xlane.xlu0 %1486
    %v1488 = vsel %vm56, %v1480, 0.0
    %1489 = vadd.xlane.f32.xlu0 %v1488
    %v1490 = vpop.xlane.xlu0 %1489
    %v1491 = vsel %vm56, %v1481, 0.0
    %1492 = vadd.xlane.f32.xlu0 %v1491
    %v1493 = vpop.xlane.xlu0 %1492
    %v1494 = vrcp.pop %v1484
    %v1495 = vrcp.pop %v1487
    %v1496 = vrcp.pop %v1490
    %v1497 = vrcp.pop %v1493
    %v1498 = vmul.f32 %v600, %v1494
    %v1499 = vmul.f32 %v602, %v1495
    %v1500 = vmul.f32 %v643, %v1496
    %v1501 = vmul.f32 %v645, %v1497
    %v1502 = vsel %vm56, %v1498, 0.0
    %v1503 = vsel %vm56, %v1499, 0.0
    %v1504 = vadd.f32 %v1502, %v1503
    %v1505 = vrot.slane %v1504, 4
    %v1506 = vadd.f32 %v1504, %v1505
    %v1507 = vrot.slane %v1506, 2
    %v1508 = vadd.f32 %v1506, %v1507
    %v1509 = vrot.slane %v1508, 1
    %v1510 = vadd.f32 %v1508, %v1509
    %v1511 = vsel %vm56, %v1500, 0.0
    %v1512 = vsel %vm56, %v1501, 0.0
    %v1513 = vadd.f32 %v1511, %v1512
    %v1514 = vrot.slane %v1513, 4
    %v1515 = vadd.f32 %v1513, %v1514
    %v1516 = vrot.slane %v1515, 2
    %v1517 = vadd.f32 %v1515, %v1516
    %v1518 = vrot.slane %v1517, 1
    %v1519 = vadd.f32 %v1517, %v1518
    %v1520 = vrcp.pop %v1510
    %v1521 = vrcp.pop %v1519
    %v1522 = vmul.f32 %v600, %v1520
    %v1523 = vmul.f32 %v602, %v1520
    %v1524 = vmul.f32 %v643, %v1521
    %v1525 = vmul.f32 %v645, %v1521
    %v1526 = vsel %vm56, %v1522, 0.0
    %1527 = vadd.xlane.f32.xlu0 %v1526
    %v1528 = vpop.xlane.xlu0 %1527
    %v1529 = vsel %vm56, %v1523, 0.0
    %1530 = vadd.xlane.f32.xlu0 %v1529
    %v1531 = vpop.xlane.xlu0 %1530
    %v1532 = vsel %vm56, %v1524, 0.0
    %1533 = vadd.xlane.f32.xlu0 %v1532
    %v1534 = vpop.xlane.xlu0 %1533
    %v1535 = vsel %vm56, %v1525, 0.0
    %1536 = vadd.xlane.f32.xlu0 %v1535
    %v1537 = vpop.xlane.xlu0 %1536
    %v1538 = vrcp.pop %v1528
    %v1539 = vrcp.pop %v1531
    %v1540 = vrcp.pop %v1534
    %v1541 = vrcp.pop %v1537
    %v1542 = vmul.f32 %v600, %v1538
    %v1543 = vmul.f32 %v602, %v1539
    %v1544 = vmul.f32 %v643, %v1540
    %v1545 = vmul.f32 %v645, %v1541
    %v1546 = vsel %vm56, %v1542, 0.0
    %v1547 = vsel %vm56, %v1543, 0.0
    %v1548 = vadd.f32 %v1546, %v1547
    %v1549 = vrot.slane %v1548, 4
    %v1550 = vadd.f32 %v1548, %v1549
    %v1551 = vrot.slane %v1550, 2
    %v1552 = vadd.f32 %v1550, %v1551
    %v1553 = vrot.slane %v1552, 1
    %v1554 = vadd.f32 %v1552, %v1553
    %v1555 = vsel %vm56, %v1544, 0.0
    %v1556 = vsel %vm56, %v1545, 0.0
    %v1557 = vadd.f32 %v1555, %v1556
    %v1558 = vrot.slane %v1557, 4
    %v1559 = vadd.f32 %v1557, %v1558
    %v1560 = vrot.slane %v1559, 2
    %v1561 = vadd.f32 %v1559, %v1560
    %v1562 = vrot.slane %v1561, 1
    %v1563 = vadd.f32 %v1561, %v1562
    %v1564 = vrcp.pop %v1554
    %v1565 = vrcp.pop %v1563
    %v1566 = vmul.f32 %v600, %v1564
    %v1567 = vmul.f32 %v602, %v1564
    %v1568 = vmul.f32 %v643, %v1565
    %v1569 = vmul.f32 %v645, %v1565
    %v1570 = vsel %vm56, %v1566, 0.0
    %1571 = vadd.xlane.f32.xlu0 %v1570
    %v1572 = vpop.xlane.xlu0 %1571
    %v1573 = vsel %vm56, %v1567, 0.0
    %1574 = vadd.xlane.f32.xlu0 %v1573
    %v1575 = vpop.xlane.xlu0 %1574
    %v1576 = vsel %vm56, %v1568, 0.0
    %1577 = vadd.xlane.f32.xlu0 %v1576
    %v1578 = vpop.xlane.xlu0 %1577
    %v1579 = vsel %vm56, %v1569, 0.0
    %1580 = vadd.xlane.f32.xlu0 %v1579
    %v1581 = vpop.xlane.xlu0 %1580
    %v1582 = vrcp.pop %v1572
    %v1583 = vrcp.pop %v1575
    %v1584 = vrcp.pop %v1578
    %v1585 = vrcp.pop %v1581
    %v1586 = vmul.f32 %v600, %v1582
    %v1587 = vmul.f32 %v602, %v1583
    %v1588 = vmul.f32 %v643, %v1584
    %v1589 = vmul.f32 %v645, %v1585
    %v1590 = vsel %vm56, %v1586, 0.0
    %v1591 = vsel %vm56, %v1587, 0.0
    %v1592 = vadd.f32 %v1590, %v1591
    %v1593 = vrot.slane %v1592, 4
    %v1594 = vadd.f32 %v1592, %v1593
    %v1595 = vrot.slane %v1594, 2
    %v1596 = vadd.f32 %v1594, %v1595
    %v1597 = vrot.slane %v1596, 1
    %v1598 = vadd.f32 %v1596, %v1597
    %v1599 = vsel %vm56, %v1588, 0.0
    %v1600 = vsel %vm56, %v1589, 0.0
    %v1601 = vadd.f32 %v1599, %v1600
    %v1602 = vrot.slane %v1601, 4
    %v1603 = vadd.f32 %v1601, %v1602
    %v1604 = vrot.slane %v1603, 2
    %v1605 = vadd.f32 %v1603, %v1604
    %v1606 = vrot.slane %v1605, 1
    %v1607 = vadd.f32 %v1605, %v1606
    %v1608 = vrcp.pop %v1598
    %v1609 = vrcp.pop %v1607
    %v1610 = vmul.f32 %v600, %v1608
    %v1611 = vmul.f32 %v602, %v1608
    %v1612 = vmul.f32 %v643, %v1609
    %v1613 = vmul.f32 %v645, %v1609
    %v1614 = vsel %vm56, %v1610, 0.0
    %1615 = vadd.xlane.f32.xlu0 %v1614
    %v1616 = vpop.xlane.xlu0 %1615
    %v1617 = vsel %vm56, %v1611, 0.0
    %1618 = vadd.xlane.f32.xlu0 %v1617
    %v1619 = vpop.xlane.xlu0 %1618
    %v1620 = vsel %vm56, %v1612, 0.0
    %1621 = vadd.xlane.f32.xlu0 %v1620
    %v1622 = vpop.xlane.xlu0 %1621
    %v1623 = vsel %vm56, %v1613, 0.0
    %1624 = vadd.xlane.f32.xlu0 %v1623
    %v1625 = vpop.xlane.xlu0 %1624
    %v1626 = vrcp.pop %v1616
    %v1627 = vrcp.pop %v1619
    %v1628 = vrcp.pop %v1622
    %v1629 = vrcp.pop %v1625
    %v1630 = vmul.f32 %v600, %v1626
    %v1631 = vmul.f32 %v602, %v1627
    %v1632 = vmul.f32 %v643, %v1628
    %v1633 = vmul.f32 %v645, %v1629
    %v1634 = vsel %vm56, %v1630, 0.0
    %v1635 = vsel %vm56, %v1631, 0.0
    %v1636 = vadd.f32 %v1634, %v1635
    %v1637 = vrot.slane %v1636, 4
    %v1638 = vadd.f32 %v1636, %v1637
    %v1639 = vrot.slane %v1638, 2
    %v1640 = vadd.f32 %v1638, %v1639
    %v1641 = vrot.slane %v1640, 1
    %v1642 = vadd.f32 %v1640, %v1641
    %v1643 = vsel %vm56, %v1632, 0.0
    %v1644 = vsel %vm56, %v1633, 0.0
    %v1645 = vadd.f32 %v1643, %v1644
    %v1646 = vrot.slane %v1645, 4
    %v1647 = vadd.f32 %v1645, %v1646
    %v1648 = vrot.slane %v1647, 2
    %v1649 = vadd.f32 %v1647, %v1648
    %v1650 = vrot.slane %v1649, 1
    %v1651 = vadd.f32 %v1649, %v1650
    %v1652 = vrcp.pop %v1642
    %v1653 = vrcp.pop %v1651
    %v1654 = vmul.f32 %v600, %v1652
    %v1655 = vmul.f32 %v602, %v1652
    %v1656 = vmul.f32 %v643, %v1653
    %v1657 = vmul.f32 %v645, %v1653
    %v1658 = vsel %vm56, %v1654, 0.0
    %1659 = vadd.xlane.f32.xlu0 %v1658
    %v1660 = vpop.xlane.xlu0 %1659
    %v1661 = vsel %vm56, %v1655, 0.0
    %1662 = vadd.xlane.f32.xlu0 %v1661
    %v1663 = vpop.xlane.xlu0 %1662
    %v1664 = vsel %vm56, %v1656, 0.0
    %1665 = vadd.xlane.f32.xlu0 %v1664
    %v1666 = vpop.xlane.xlu0 %1665
    %v1667 = vsel %vm56, %v1657, 0.0
    %1668 = vadd.xlane.f32.xlu0 %v1667
    %v1669 = vpop.xlane.xlu0 %1668
    %v1670 = vrcp.pop %v1660
    %v1671 = vrcp.pop %v1663
    %v1672 = vrcp.pop %v1666
    %v1673 = vrcp.pop %v1669
    %v1674 = vmul.f32 %v600, %v1670
    %v1675 = vmul.f32 %v602, %v1671
    %v1676 = vmul.f32 %v643, %v1672
    %v1677 = vmul.f32 %v645, %v1673
    %v1678 = vsel %vm56, %v1674, 0.0
    %v1679 = vsel %vm56, %v1675, 0.0
    %v1680 = vadd.f32 %v1678, %v1679
    %v1681 = vrot.slane %v1680, 4
    %v1682 = vadd.f32 %v1680, %v1681
    %v1683 = vrot.slane %v1682, 2
    %v1684 = vadd.f32 %v1682, %v1683
    %v1685 = vrot.slane %v1684, 1
    %v1686 = vadd.f32 %v1684, %v1685
    %v1687 = vsel %vm56, %v1676, 0.0
    %v1688 = vsel %vm56, %v1677, 0.0
    %v1689 = vadd.f32 %v1687, %v1688
    %v1690 = vrot.slane %v1689, 4
    %v1691 = vadd.f32 %v1689, %v1690
    %v1692 = vrot.slane %v1691, 2
    %v1693 = vadd.f32 %v1691, %v1692
    %v1694 = vrot.slane %v1693, 1
    %v1695 = vadd.f32 %v1693, %v1694
    %v1696 = vrcp.pop %v1686
    %v1697 = vrcp.pop %v1695
    %v1698 = vmul.f32 %v600, %v1696
    %v1699 = vmul.f32 %v602, %v1696
    %v1700 = vmul.f32 %v643, %v1697
    %v1701 = vmul.f32 %v645, %v1697
    %v1702 = vsel %vm56, %v1698, 0.0
    %1703 = vadd.xlane.f32.xlu0 %v1702
    %v1704 = vpop.xlane.xlu0 %1703
    %v1705 = vsel %vm56, %v1699, 0.0
    %1706 = vadd.xlane.f32.xlu0 %v1705
    %v1707 = vpop.xlane.xlu0 %1706
    %v1708 = vsel %vm56, %v1700, 0.0
    %1709 = vadd.xlane.f32.xlu0 %v1708
    %v1710 = vpop.xlane.xlu0 %1709
    %v1711 = vsel %vm56, %v1701, 0.0
    %1712 = vadd.xlane.f32.xlu0 %v1711
    %v1713 = vpop.xlane.xlu0 %1712
    %v1714 = vrcp.pop %v1704
    %v1715 = vrcp.pop %v1707
    %v1716 = vrcp.pop %v1710
    %v1717 = vrcp.pop %v1713
    %v1718 = vmul.f32 %v600, %v1714
    %v1719 = vmul.f32 %v602, %v1715
    %v1720 = vmul.f32 %v643, %v1716
    %v1721 = vmul.f32 %v645, %v1717
    %v1722 = vsel %vm56, %v1718, 0.0
    %v1723 = vsel %vm56, %v1719, 0.0
    %v1724 = vadd.f32 %v1722, %v1723
    %v1725 = vrot.slane %v1724, 4
    %v1726 = vadd.f32 %v1724, %v1725
    %v1727 = vrot.slane %v1726, 2
    %v1728 = vadd.f32 %v1726, %v1727
    %v1729 = vrot.slane %v1728, 1
    %v1730 = vadd.f32 %v1728, %v1729
    %v1731 = vsel %vm56, %v1720, 0.0
    %v1732 = vsel %vm56, %v1721, 0.0
    %v1733 = vadd.f32 %v1731, %v1732
    %v1734 = vrot.slane %v1733, 4
    %v1735 = vadd.f32 %v1733, %v1734
    %v1736 = vrot.slane %v1735, 2
    %v1737 = vadd.f32 %v1735, %v1736
    %v1738 = vrot.slane %v1737, 1
    %v1739 = vadd.f32 %v1737, %v1738
    %v1740 = vrcp.pop %v1730
    %v1741 = vrcp.pop %v1739
    %v1742 = vmul.f32 %v600, %v1740
    %v1743 = vmul.f32 %v602, %v1740
    %v1744 = vmul.f32 %v643, %v1741
    %v1745 = vmul.f32 %v645, %v1741
    %v1746 = vsel %vm56, %v1742, 0.0
    %1747 = vadd.xlane.f32.xlu0 %v1746
    %v1748 = vpop.xlane.xlu0 %1747
    %v1749 = vsel %vm56, %v1743, 0.0
    %1750 = vadd.xlane.f32.xlu0 %v1749
    %v1751 = vpop.xlane.xlu0 %1750
    %v1752 = vsel %vm56, %v1744, 0.0
    %1753 = vadd.xlane.f32.xlu0 %v1752
    %v1754 = vpop.xlane.xlu0 %1753
    %v1755 = vsel %vm56, %v1745, 0.0
    %1756 = vadd.xlane.f32.xlu0 %v1755
    %v1757 = vpop.xlane.xlu0 %1756
    %v1758 = vrcp.pop %v1748
    %v1759 = vrcp.pop %v1751
    %v1760 = vrcp.pop %v1754
    %v1761 = vrcp.pop %v1757
    %v1762 = vmul.f32 %v600, %v1758
    %v1763 = vmul.f32 %v602, %v1759
    %v1764 = vmul.f32 %v643, %v1760
    %v1765 = vmul.f32 %v645, %v1761
    %v1766 = vsel %vm56, %v1762, 0.0
    %v1767 = vsel %vm56, %v1763, 0.0
    %v1768 = vadd.f32 %v1766, %v1767
    %v1769 = vrot.slane %v1768, 4
    %v1770 = vadd.f32 %v1768, %v1769
    %v1771 = vrot.slane %v1770, 2
    %v1772 = vadd.f32 %v1770, %v1771
    %v1773 = vrot.slane %v1772, 1
    %v1774 = vadd.f32 %v1772, %v1773
    %v1775 = vsel %vm56, %v1764, 0.0
    %v1776 = vsel %vm56, %v1765, 0.0
    %v1777 = vadd.f32 %v1775, %v1776
    %v1778 = vrot.slane %v1777, 4
    %v1779 = vadd.f32 %v1777, %v1778
    %v1780 = vrot.slane %v1779, 2
    %v1781 = vadd.f32 %v1779, %v1780
    %v1782 = vrot.slane %v1781, 1
    %v1783 = vadd.f32 %v1781, %v1782
    %v1784 = vrcp.pop %v1774
    %v1785 = vrcp.pop %v1783
    %v1786 = vmul.f32 %v600, %v1784
    %v1787 = vmul.f32 %v602, %v1784
    %v1788 = vmul.f32 %v643, %v1785
    %v1789 = vmul.f32 %v645, %v1785
    %v1790 = vsel %vm56, %v1786, 0.0
    %1791 = vadd.xlane.f32.xlu0 %v1790
    %v1792 = vpop.xlane.xlu0 %1791
    %v1793 = vsel %vm56, %v1787, 0.0
    %1794 = vadd.xlane.f32.xlu0 %v1793
    %v1795 = vpop.xlane.xlu0 %1794
    %v1796 = vsel %vm56, %v1788, 0.0
    %1797 = vadd.xlane.f32.xlu0 %v1796
    %v1798 = vpop.xlane.xlu0 %1797
    %v1799 = vsel %vm56, %v1789, 0.0
    %1800 = vadd.xlane.f32.xlu0 %v1799
    %v1801 = vpop.xlane.xlu0 %1800
    %v1802 = vrcp.pop %v1792
    %v1803 = vrcp.pop %v1795
    %v1804 = vrcp.pop %v1798
    %v1805 = vrcp.pop %v1801
    %v1806 = vmul.f32 %v600, %v1802
    %v1807 = vmul.f32 %v602, %v1803
    %v1808 = vmul.f32 %v643, %v1804
    %v1809 = vmul.f32 %v645, %v1805
    %v1810 = vsel %vm56, %v1806, 0.0
    %v1811 = vsel %vm56, %v1807, 0.0
    %v1812 = vadd.f32 %v1810, %v1811
    %v1813 = vrot.slane %v1812, 4
    %v1814 = vadd.f32 %v1812, %v1813
    %v1815 = vrot.slane %v1814, 2
    %v1816 = vadd.f32 %v1814, %v1815
    %v1817 = vrot.slane %v1816, 1
    %v1818 = vadd.f32 %v1816, %v1817
    %v1819 = vsel %vm56, %v1808, 0.0
    %v1820 = vsel %vm56, %v1809, 0.0
    %v1821 = vadd.f32 %v1819, %v1820
    %v1822 = vrot.slane %v1821, 4
    %v1823 = vadd.f32 %v1821, %v1822
    %v1824 = vrot.slane %v1823, 2
    %v1825 = vadd.f32 %v1823, %v1824
    %v1826 = vrot.slane %v1825, 1
    %v1827 = vadd.f32 %v1825, %v1826
    %v1828 = vrcp.pop %v1818
    %v1829 = vrcp.pop %v1827
    %v1830 = vmul.f32 %v600, %v1828
    %v1831 = vmul.f32 %v602, %v1828
    %v1832 = vmul.f32 %v643, %v1829
    %v1833 = vmul.f32 %v645, %v1829
    %v1834 = vsel %vm56, %v1830, 0.0
    %1835 = vadd.xlane.f32.xlu0 %v1834
    %v1836 = vpop.xlane.xlu0 %1835
    %v1837 = vsel %vm56, %v1831, 0.0
    %1838 = vadd.xlane.f32.xlu0 %v1837
    %v1839 = vpop.xlane.xlu0 %1838
    %v1840 = vsel %vm56, %v1832, 0.0
    %1841 = vadd.xlane.f32.xlu0 %v1840
    %v1842 = vpop.xlane.xlu0 %1841
    %v1843 = vsel %vm56, %v1833, 0.0
    %1844 = vadd.xlane.f32.xlu0 %v1843
    %v1845 = vpop.xlane.xlu0 %1844
    %v1846 = vrcp.pop %v1836
    %v1847 = vrcp.pop %v1839
    %v1848 = vrcp.pop %v1842
    %v1849 = vrcp.pop %v1845
    %v1850 = vmul.f32 %v600, %v1846
    %v1851 = vmul.f32 %v602, %v1847
    %v1852 = vmul.f32 %v643, %v1848
    %v1853 = vmul.f32 %v645, %v1849
    %v1854 = vsel %vm56, %v1850, 0.0
    %v1855 = vsel %vm56, %v1851, 0.0
    %v1856 = vadd.f32 %v1854, %v1855
    %v1857 = vrot.slane %v1856, 4
    %v1858 = vadd.f32 %v1856, %v1857
    %v1859 = vrot.slane %v1858, 2
    %v1860 = vadd.f32 %v1858, %v1859
    %v1861 = vrot.slane %v1860, 1
    %v1862 = vadd.f32 %v1860, %v1861
    %v1863 = vsel %vm56, %v1852, 0.0
    %v1864 = vsel %vm56, %v1853, 0.0
    %v1865 = vadd.f32 %v1863, %v1864
    %v1866 = vrot.slane %v1865, 4
    %v1867 = vadd.f32 %v1865, %v1866
    %v1868 = vrot.slane %v1867, 2
    %v1869 = vadd.f32 %v1867, %v1868
    %v1870 = vrot.slane %v1869, 1
    %v1871 = vadd.f32 %v1869, %v1870
    %v1872 = vrcp.pop %v1862
    %v1873 = vrcp.pop %v1871
    %v1874 = vmul.f32 %v600, %v1872
    %v1875 = vmul.f32 %v602, %v1872
    %v1876 = vmul.f32 %v643, %v1873
    %v1877 = vmul.f32 %v645, %v1873
    %v1878 = vsel %vm56, %v1874, 0.0
    %1879 = vadd.xlane.f32.xlu0 %v1878
    %v1880 = vpop.xlane.xlu0 %1879
    %v1881 = vsel %vm56, %v1875, 0.0
    %1882 = vadd.xlane.f32.xlu0 %v1881
    %v1883 = vpop.xlane.xlu0 %1882
    %v1884 = vsel %vm56, %v1876, 0.0
    %1885 = vadd.xlane.f32.xlu0 %v1884
    %v1886 = vpop.xlane.xlu0 %1885
    %v1887 = vsel %vm56, %v1877, 0.0
    %1888 = vadd.xlane.f32.xlu0 %v1887
    %v1889 = vpop.xlane.xlu0 %1888
    %v1890 = vrcp.pop %v1880
    %v1891 = vrcp.pop %v1883
    %v1892 = vrcp.pop %v1886
    %v1893 = vrcp.pop %v1889
    %v1894 = vmul.f32 %v600, %v1890
    %v1895 = vmul.f32 %v602, %v1891
    %v1896 = vmul.f32 %v643, %v1892
    %v1897 = vmul.f32 %v645, %v1893
    %v1898 = vsel %vm56, %v1894, 0.0
    %v1899 = vsel %vm56, %v1895, 0.0
    %v1900 = vadd.f32 %v1898, %v1899
    %v1901 = vrot.slane %v1900, 4
    %v1902 = vadd.f32 %v1900, %v1901
    %v1903 = vrot.slane %v1902, 2
    %v1904 = vadd.f32 %v1902, %v1903
    %v1905 = vrot.slane %v1904, 1
    %v1906 = vadd.f32 %v1904, %v1905
    %v1907 = vsel %vm56, %v1896, 0.0
    %v1908 = vsel %vm56, %v1897, 0.0
    %v1909 = vadd.f32 %v1907, %v1908
    %v1910 = vrot.slane %v1909, 4
    %v1911 = vadd.f32 %v1909, %v1910
    %v1912 = vrot.slane %v1911, 2
    %v1913 = vadd.f32 %v1911, %v1912
    %v1914 = vrot.slane %v1913, 1
    %v1915 = vadd.f32 %v1913, %v1914
    %v1916 = vrcp.pop %v1906
    %v1917 = vrcp.pop %v1915
    %v1918 = vmul.f32 %v600, %v1916
    %v1919 = vmul.f32 %v602, %v1916
    %v1920 = vmul.f32 %v643, %v1917
    %v1921 = vmul.f32 %v645, %v1917
    %v1922 = vsel %vm56, %v1918, 0.0
    %1923 = vadd.xlane.f32.xlu0 %v1922
    %v1924 = vpop.xlane.xlu0 %1923
    %v1925 = vsel %vm56, %v1919, 0.0
    %1926 = vadd.xlane.f32.xlu0 %v1925
    %v1927 = vpop.xlane.xlu0 %1926
    %v1928 = vsel %vm56, %v1920, 0.0
    %1929 = vadd.xlane.f32.xlu0 %v1928
    %v1930 = vpop.xlane.xlu0 %1929
    %v1931 = vsel %vm56, %v1921, 0.0
    %1932 = vadd.xlane.f32.xlu0 %v1931
    %v1933 = vpop.xlane.xlu0 %1932
    %v1934 = vrcp.pop %v1924
    %v1935 = vmul.f32 %v1924, %v1934
    %v1936 = vsub.f32 1.0, %v1935
    %v1937 = vmul.f32 %v1934, %v1936
    %v1938 = vadd.f32 %v1934, %v1937
    %vm1939 = vweird.f32 %v1924
    %vm1940 = vweird.f32 %v1934
    %vm1941 = vmor %vm1939, %vm1940
    %v1942 = vsel %vm1941, %v1934, %v1938
    %v1943 = vand.u32 2147483647, %v1924
    %vm1944 = vcmp.eq.f32.partialorder %v1943, 8.507059e+37
    %v1945 = vand.u32 %v1924, 2147483648
    %v1946 = vor.u32 1.1754944e-38, %v1945
    %v1947 = vsel %vm1944, %v1946, %v1942
    %v1948 = vmul.f32 1.0, %v1947
    %v1949 = vrcp.pop %v1927
    %v1950 = vmul.f32 %v1927, %v1949
    %v1951 = vsub.f32 1.0, %v1950
    %v1952 = vmul.f32 %v1949, %v1951
    %v1953 = vadd.f32 %v1949, %v1952
    %vm1954 = vweird.f32 %v1927
    %vm1955 = vweird.f32 %v1949
    %vm1956 = vmor %vm1954, %vm1955
    %v1957 = vsel %vm1956, %v1949, %v1953
    %v1958 = vand.u32 2147483647, %v1927
    %vm1959 = vcmp.eq.f32.partialorder %v1958, 8.507059e+37
    %v1960 = vand.u32 %v1927, 2147483648
    %v1961 = vor.u32 1.1754944e-38, %v1960
    %v1962 = vsel %vm1959, %v1961, %v1957
    %v1963 = vmul.f32 1.0, %v1962
    %v1964 = vrcp.pop %v1930
    %v1965 = vmul.f32 %v1930, %v1964
    %v1966 = vsub.f32 1.0, %v1965
    %v1967 = vmul.f32 %v1964, %v1966
    %v1968 = vadd.f32 %v1964, %v1967
    %vm1969 = vweird.f32 %v1930
    %vm1970 = vweird.f32 %v1964
    %vm1971 = vmor %vm1969, %vm1970
    %v1972 = vsel %vm1971, %v1964, %v1968
    %v1973 = vand.u32 2147483647, %v1930
    %vm1974 = vcmp.eq.f32.partialorder %v1973, 8.507059e+37
    %v1975 = vand.u32 %v1930, 2147483648
    %v1976 = vor.u32 1.1754944e-38, %v1975
    %v1977 = vsel %vm1974, %v1976, %v1972
    %v1978 = vmul.f32 1.0, %v1977
    %v1979 = vrcp.pop %v1933
    %v1980 = vmul.f32 %v1933, %v1979
    %v1981 = vsub.f32 1.0, %v1980
    %v1982 = vmul.f32 %v1979, %v1981
    %v1983 = vadd.f32 %v1979, %v1982
    %vm1984 = vweird.f32 %v1933
    %vm1985 = vweird.f32 %v1979
    %vm1986 = vmor %vm1984, %vm1985
    %v1987 = vsel %vm1986, %v1979, %v1983
    %v1988 = vand.u32 2147483647, %v1933
    %vm1989 = vcmp.eq.f32.partialorder %v1988, 8.507059e+37
    %v1990 = vand.u32 %v1933, 2147483648
    %v1991 = vor.u32 1.1754944e-38, %v1990
    %v1992 = vsel %vm1989, %v1991, %v1987
    %v1993 = vmul.f32 1.0, %v1992
    %v1994 = vmul.f32 %v600, %v1948
    %v1995 = vmul.f32 %v602, %v1963
    %v1996 = vmul.f32 %v643, %v1978
    %v1997 = vmul.f32 %v645, %v1993
    %v1998 = vsel %vm56, %v1994, 0.0
    %v1999 = vsel %vm56, %v1995, 0.0
    %v2000 = vadd.f32 %v1998, %v1999
    %v2001 = vrot.slane %v2000, 4
    %v2002 = vadd.f32 %v2000, %v2001
    %v2003 = vrot.slane %v2002, 2
    %v2004 = vadd.f32 %v2002, %v2003
    %v2005 = vrot.slane %v2004, 1
    %v2006 = vadd.f32 %v2004, %v2005
    %v2007 = vsel %vm56, %v1996, 0.0
    %v2008 = vsel %vm56, %v1997, 0.0
    %v2009 = vadd.f32 %v2007, %v2008
    %v2010 = vrot.slane %v2009, 4
    %v2011 = vadd.f32 %v2009, %v2010
    %v2012 = vrot.slane %v2011, 2
    %v2013 = vadd.f32 %v2011, %v2012
    %v2014 = vrot.slane %v2013, 1
    %v2015 = vadd.f32 %v2013, %v2014
    %v2016 = vrcp.pop %v2006
    %v2017 = vmul.f32 %v2006, %v2016
    %v2018 = vsub.f32 1.0, %v2017
    %v2019 = vmul.f32 %v2016, %v2018
    %v2020 = vadd.f32 %v2016, %v2019
    %vm2021 = vweird.f32 %v2006
    %vm2022 = vweird.f32 %v2016
    %vm2023 = vmor %vm2021, %vm2022
    %v2024 = vsel %vm2023, %v2016, %v2020
    %v2025 = vand.u32 2147483647, %v2006
    %vm2026 = vcmp.eq.f32.partialorder %v2025, 8.507059e+37
    %v2027 = vand.u32 %v2006, 2147483648
    %v2028 = vor.u32 1.1754944e-38, %v2027
    %v2029 = vsel %vm2026, %v2028, %v2024
    %v2030 = vmul.f32 1.0, %v2029
    %v2031 = vrcp.pop %v2015
    %v2032 = vmul.f32 %v2015, %v2031
    %v2033 = vsub.f32 1.0, %v2032
    %v2034 = vmul.f32 %v2031, %v2033
    %v2035 = vadd.f32 %v2031, %v2034
    %vm2036 = vweird.f32 %v2015
    %vm2037 = vweird.f32 %v2031
    %vm2038 = vmor %vm2036, %vm2037
    %v2039 = vsel %vm2038, %v2031, %v2035
    %v2040 = vand.u32 2147483647, %v2015
    %vm2041 = vcmp.eq.f32.partialorder %v2040, 8.507059e+37
    %v2042 = vand.u32 %v2015, 2147483648
    %v2043 = vor.u32 1.1754944e-38, %v2042
    %v2044 = vsel %vm2041, %v2043, %v2039
    %v2045 = vmul.f32 1.0, %v2044
    %v2046 = vmul.f32 %v1994, %v2030
    %v2047 = vmul.f32 %v1995, %v2030
    %v2048 = vmul.f32 %v1996, %v2045
    %v2049 = vmul.f32 %v1997, %v2045
    %v2051 = vsel %vm56, %v2046, 0
    %v2054 = vsel %vm56, %v2047, 0
    %2056 = vmatpush.msra.mxu0 0.0
    %2057 = vmatpush.msra.mxu0 0.0
    %2058 = vmatpush.msra.mxu0 0.0
    %2059 = vmatpush.msra.mxu0 0.0
    %2060 = vmatpush.msra.mxu0 0.0
    %2061 = vmatpush.msra.mxu0 0.0
    %2062 = vmatpush.msra.mxu0 0.0
    %2063 = vmatpush.msra.mxu0 0.0
    %2064 = vmatpush.msra.mxu0 0.0
    %2065 = vmatpush.msra.mxu0 0.0
    %2066 = vmatpush.msra.mxu0 0.0
    %2067 = vmatpush.msra.mxu0 0.0
    %2068 = vmatpush.msra.mxu0 0.0
    %2069 = vmatpush.msra.mxu0 0.0
    %2070 = vmatpush.msra.mxu0 %v551
    %2071 = vmatpush.msra.mxu0 %v550
    %2072 = vmatmul.f32.gmra.mxu0 %v2051
    %v2073 = vpop.f32.mrf.mxu0
    %v2074 = vadd.f32 0.0, %v2073
    %2075 = vmatmul.f32.gmra.mxu0 %v2054
    %v2076 = vpop.f32.mrf.mxu0
    %v2077 = vadd.f32 0.0, %v2076
    %2078 = vdwg.mxu0
    %v2080 = vsel %vm56, %v2048, 0
    %v2083 = vsel %vm56, %v2049, 0
    %2085 = vmatpush.msra.mxu0 0.0
    %2086 = vmatpush.msra.mxu0 0.0
    %2087 = vmatpush.msra.mxu0 0.0
    %2088 = vmatpush.msra.mxu0 0.0
    %2089 = vmatpush.msra.mxu0 0.0
    %2090 = vmatpush.msra.mxu0 0.0
    %2091 = vmatpush.msra.mxu0 0.0
    %2092 = vmatpush.msra.mxu0 0.0
    %2093 = vmatpush.msra.mxu0 0.0
    %2094 = vmatpush.msra.mxu0 0.0
    %2095 = vmatpush.msra.mxu0 0.0
    %2096 = vmatpush.msra.mxu0 0.0
    %2097 = vmatpush.msra.mxu0 0.0
    %2098 = vmatpush.msra.mxu0 0.0
    %2099 = vmatpush.msra.mxu0 %v553
    %2100 = vmatpush.msra.mxu0 %v552
    %2101 = vmatmul.f32.gmra.mxu0 %v2080
    %v2102 = vpop.f32.mrf.mxu0
    %v2103 = vadd.f32 0.0, %v2102
    %2104 = vmatmul.f32.gmra.mxu0 %v2083
    %v2105 = vpop.f32.mrf.mxu0
    %v2106 = vadd.f32 0.0, %v2105
    %2107 = vdwg.mxu0
    %vm2108 = vcmp.ne.f32.partialorder %v2074, %v2074
    %vm2109 = vcmp.ne.f32.partialorder %v2077, %v2077
    %vm2110 = vcmp.ne.f32.partialorder %v2103, %v2103
    %vm2111 = vcmp.ne.f32.partialorder %v2106, %v2106
    %v2112 = vsel %vm2108, 0.0, %v2074
    %v2113 = vsel %vm2109, 0.0, %v2077
    %v2114 = vsel %vm2110, 0.0, %v2103
    %v2115 = vsel %vm2111, 0.0, %v2106
    %v2116 = vmax.f32 %v2112, -3.4028235e+38
    %v2117 = vmax.f32 %v2113, -3.4028235e+38
    %v2118 = vmax.f32 %v2114, -3.4028235e+38
    %v2119 = vmax.f32 %v2115, -3.4028235e+38
    %v2120 = vmin.f32 %v2116, 3.4028235e+38
    %v2121 = vmin.f32 %v2117, 3.4028235e+38
    %v2122 = vmin.f32 %v2118, 3.4028235e+38
    %v2123 = vmin.f32 %v2119, 3.4028235e+38
    %v2124 = vsel %vm103, %v2120, 0.0
    %2125 = vadd.xlane.f32.xlu0 %v2124
    %v2126 = vpop.xlane.xlu0 %2125
    %v2127 = vsel %vm103, %v2121, 0.0
    %2128 = vadd.xlane.f32.xlu0 %v2127
    %v2129 = vpop.xlane.xlu0 %2128
    %v2130 = vsel %vm103, %v2122, 0.0
    %2131 = vadd.xlane.f32.xlu0 %v2130
    %v2132 = vpop.xlane.xlu0 %2131
    %v2133 = vsel %vm103, %v2123, 0.0
    %2134 = vadd.xlane.f32.xlu0 %v2133
    %v2135 = vpop.xlane.xlu0 %2134
    %v2136 = vrcp.pop 32.0
    %v2137 = vmul.f32 32.0, %v2136
    %v2138 = vsub.f32 1.0, %v2137
    %v2139 = vmul.f32 %v2136, %v2138
    %v2140 = vadd.f32 %v2136, %v2139
    %vm2141 = vweird.f32 %v2136
    %v2142 = vsel %vm2141, %v2136, %v2140
    %v2143 = vmul.f32 %v2126, %v2142
    %v2144 = vmul.f32 %v2129, %v2142
    %v2145 = vmul.f32 %v2132, %v2142
    %v2146 = vmul.f32 %v2135, %v2142
    %v2147 = vsub.f32 %v2120, %v2143
    %v2148 = vsub.f32 %v2121, %v2144
    %v2149 = vsub.f32 %v2122, %v2145
    %v2150 = vsub.f32 %v2123, %v2146
    %v2151 = vmul.f32 %v2147, %v2147
    %v2152 = vmul.f32 %v2148, %v2148
    %v2153 = vmul.f32 %v2149, %v2149
    %v2154 = vmul.f32 %v2150, %v2150
    %v2155 = vsel %vm103, %v2151, 0.0
    %2156 = vadd.xlane.f32.xlu0 %v2155
    %v2157 = vpop.xlane.xlu0 %2156
    %v2158 = vsel %vm103, %v2152, 0.0
    %2159 = vadd.xlane.f32.xlu0 %v2158
    %v2160 = vpop.xlane.xlu0 %2159
    %v2161 = vsel %vm103, %v2153, 0.0
    %2162 = vadd.xlane.f32.xlu0 %v2161
    %v2163 = vpop.xlane.xlu0 %2162
    %v2164 = vsel %vm103, %v2154, 0.0
    %2165 = vadd.xlane.f32.xlu0 %v2164
    %v2166 = vpop.xlane.xlu0 %2165
    %v2167 = vmul.f32 %v2157, %v2142
    %v2168 = vmul.f32 %v2160, %v2142
    %v2169 = vmul.f32 %v2163, %v2142
    %v2170 = vmul.f32 %v2166, %v2142
    %v2171 = vadd.f32 %v2167, 1e-05
    %v2172 = vadd.f32 %v2168, 1e-05
    %v2173 = vadd.f32 %v2169, 1e-05
    %v2174 = vadd.f32 %v2170, 1e-05
    %v2175 = vrsqrt.pop %v2171
    %v2176 = vmul.f32 %v2175, %v2171
    %v2177 = vmul.f32 %v2176, %v2175
    %v2178 = vmul.f32 0.5, %v2177
    %v2179 = vsub.f32 1.5, %v2178
    %v2180 = vmul.f32 %v2175, %v2179
    %vm2181 = vweird.f32 %v2171
    %vm2182 = vweird.f32 %v2175
    %vm2183 = vmor %vm2181, %vm2182
    %v2184 = vsel %vm2183, %v2175, %v2180
    %v2185 = vrsqrt.pop %v2172
    %v2186 = vmul.f32 %v2185, %v2172
    %v2187 = vmul.f32 %v2186, %v2185
    %v2188 = vmul.f32 0.5, %v2187
    %v2189 = vsub.f32 1.5, %v2188
    %v2190 = vmul.f32 %v2185, %v2189
    %vm2191 = vweird.f32 %v2172
    %vm2192 = vweird.f32 %v2185
    %vm2193 = vmor %vm2191, %vm2192
    %v2194 = vsel %vm2193, %v2185, %v2190
    %v2195 = vrsqrt.pop %v2173
    %v2196 = vmul.f32 %v2195, %v2173
    %v2197 = vmul.f32 %v2196, %v2195
    %v2198 = vmul.f32 0.5, %v2197
    %v2199 = vsub.f32 1.5, %v2198
    %v2200 = vmul.f32 %v2195, %v2199
    %vm2201 = vweird.f32 %v2173
    %vm2202 = vweird.f32 %v2195
    %vm2203 = vmor %vm2201, %vm2202
    %v2204 = vsel %vm2203, %v2195, %v2200
    %v2205 = vrsqrt.pop %v2174
    %v2206 = vmul.f32 %v2205, %v2174
    %v2207 = vmul.f32 %v2206, %v2205
    %v2208 = vmul.f32 0.5, %v2207
    %v2209 = vsub.f32 1.5, %v2208
    %v2210 = vmul.f32 %v2205, %v2209
    %vm2211 = vweird.f32 %v2174
    %vm2212 = vweird.f32 %v2205
    %vm2213 = vmor %vm2211, %vm2212
    %v2214 = vsel %vm2213, %v2205, %v2210
    %v2215 = vmul.f32 %v2147, %v2184
    %v2216 = vmul.f32 %v2148, %v2194
    %v2217 = vmul.f32 %v2149, %v2204
    %v2218 = vmul.f32 %v2150, %v2214
    %v2219 = vperm.slane %v48, 0
    %v2220 = vmul.f32 %v2215, %v2219
    %v2221 = vmul.f32 %v2216, %v2219
    %v2222 = vmul.f32 %v2217, %v2219
    %v2223 = vmul.f32 %v2218, %v2219
    %v2224 = vperm.slane %v49, 0
    %v2225 = vadd.f32 %v2220, %v2224
    %v2226 = vadd.f32 %v2221, %v2224
    %v2227 = vadd.f32 %v2222, %v2224
    %v2228 = vadd.f32 %v2223, %v2224
    %2229 = vst.msk [vmem:[#allocation2] sm:$0xff] %vm103, %v2225
    %2230 = vst.msk [vmem:[#allocation2 + $0x8] sm:$0xff] %vm103, %v2226
    %2231 = vst.msk [vmem:[#allocation2 + $0x10] sm:$0xff] %vm103, %v2227
    %2232 = vst.msk [vmem:[#allocation2 + $0x18] sm:$0xff] %vm103, %v2228
    // Predicated region
    $region14: #{tpu_custom_call.1} parent=1 // pred_check
      _
    $region15: #{tpu_custom_call.1} parent=1 // pred_check_branch
      %2234 = sbr.rel (0) target = $region17
    $region16: #{tpu_custom_call.1} parent=1 // pred_region
      %2236 = vsyncadd [#allocation3], 0
      %s2237 = sshll.u32 [#allocation2], 4
      %s2238 = int_to_ptr.vmem [resolvable:$true] %s2237
      %s2239 = sshll.u32 %s3, 4
      %s2240 = int_to_ptr.hbm [resolvable:$true] %s2239
      %2245 = dma.vmem_to_hbm [thread:$0]  %s2238, 512, %s2240, [#allocation3], 128, 128, 8
    $region17: #{tpu_custom_call.1} parent=1 // pred_fallthru
      _
    // Predicated region
    $region18: #{tpu_custom_call.1} parent=1 // pred_check
      _
    $region19: #{tpu_custom_call.1} parent=1 // pred_check_branch
      %2247 = sbr.rel (0) target = $region21
    $region20: #{tpu_custom_call.1} parent=1 // pred_region
      %2249 = dma.done [#allocation3], 512
    $region21: #{tpu_custom_call.1} parent=1 // pred_fallthru
      _
    %2250 = vsyncpa [#allocation3], 1

</llo_original>
